<compile_context>
chip_gen: v6e
topology: v6e:2x2x1
jax: 0.10.0
libtpu: 0.0.40
codegen_flags: <defaults>
</compile_context>

<pallas_src>
import jax
import jax.numpy as jnp
from jax.experimental import pallas as pl
from jax.experimental.pallas import tpu as pltpu

EPS = 1e-5                      # nn.InstanceNorm1d default eps
NEG_SLOPE = 0.01                # nn.LeakyReLU default negative_slope
MATMUL_DTYPE = jnp.bfloat16     # MXU input dtype (f32 accumulation)
ACT_DTYPE = MATMUL_DTYPE        # dtype of inter-kernel activations in HBM
VMEM_LIMIT_BYTES = 64 * 1024 * 1024


# ----------------------------------------------------------------------------
# In-kernel helpers
# ----------------------------------------------------------------------------
def _mm(w, x):
    # 1x1 conv == channel matmul on the MXU; bf16 inputs, f32 accumulation.
    return jnp.dot(w.astype(MATMUL_DTYPE), x.astype(MATMUL_DTYPE),
                   preferred_element_type=jnp.float32)


def _in_lrelu(y, gamma, beta):
    # InstanceNorm1d (biased variance, one-pass stats) with the affine folded
    # into a single scale/shift, then LeakyReLU.  The Conv1d bias is omitted
    # upstream: a per-channel constant over N is cancelled by the mean subtract.
    mean = jnp.mean(y, axis=-1, keepdims=True)
    var = jnp.maximum(jnp.mean(y * y, axis=-1, keepdims=True) - mean * mean, 0.0)
    s = gamma * jax.lax.rsqrt(var + EPS)
    yn = y * s + (beta - mean * s)
    return jnp.where(yn >= 0.0, yn, NEG_SLOPE * yn)


def _conv_in_lrelu(x, w, gamma, beta):
    return _in_lrelu(_mm(w, x), gamma, beta)


# ----------------------------------------------------------------------------
# Kernels
# ----------------------------------------------------------------------------
def _data_head_kernel(x_ref, w1, g1, b1, w2, g2, b2, w3, g3, b3, o_ref):
    # fw_data_head: input_size -> 64 -> 128 -> 1024, fully fused in VMEM.
    y = _conv_in_lrelu(x_ref[0], w1[...], g1[...], b1[...])
    y = _conv_in_lrelu(y, w2[...], g2[...], b2[...])
    y = _conv_in_lrelu(y, w3[...], g3[...], b3[...])
    o_ref[0] = y.astype(o_ref.dtype)


def _des_head_kernel(d_ref, w1, g1, b1, w2, g2, b2, o_ref):
    # fw_des_head: des_size -> 256 -> 512, fully fused; runs on the (2B,...) stack.
    y = _conv_in_lrelu(d_ref[0], w1[...], g1[...], b1[...])
    y = _conv_in_lrelu(y, w2[...], g2[...], b2[...])
    o_ref[0] = y.astype(o_ref.dtype)


def _tail_kernel(x_ref, d1_ref, d2_ref,
                 w1x, w1a, w1b, g1, b1,
                 w2, g2, b2,
                 w3, b3, o_ref):
    # out1 (2048 -> 512) without materializing the channel concat:
    # split-K over the three feature groups, summed into one f32 accumulator.
    y = (_mm(w1x[...], x_ref[0])
         + _mm(w1a[...], d1_ref[0])
         + _mm(w1b[...], d2_ref[0]))
    y = _in_lrelu(y, g1[...], b1[...])                       # (512, N)
    # out2 (512 -> 256)
    y = _conv_in_lrelu(y, w2[...], g2[...], b2[...])         # (256, N)
    # final Conv1d(256, 1): broadcast multiply + sublane reduce (no M=1 matmul)
    o_ref[0] = (jnp.sum(w3[...] * y, axis=0, keepdims=True) + b3[...]).astype(o_ref.dtype)


# ----------------------------------------------------------------------------
# BlockSpec helpers
# ----------------------------------------------------------------------------
def _full_spec(shape):
    zeros = (0,) * len(shape)
    return pl.BlockSpec(tuple(shape), lambda i, _z=zeros: _z)


def _batch_spec(c, n):
    return pl.BlockSpec((1, c, n), lambda i: (i, 0, 0))


def _compiler_params():
    return pltpu.CompilerParams(dimension_semantics=("parallel",),
                                vmem_limit_bytes=VMEM_LIMIT_BYTES)


def _bytes_of(*arrs):
    return int(sum(int(a.size) * a.dtype.itemsize for a in arrs))


# ----------------------------------------------------------------------------
# pallas_call wrappers
# ----------------------------------------------------------------------------
def data_head(x, p1, p2, p3):
    B, c_in, N = x.shape
    (w1, g1, b1), (w2, g2, b2), (w3, g3, b3) = p1, p2, p3
    c1, c2, c3 = w1.shape[0], w2.shape[0], w3.shape[0]
    flops = 2 * B * N * (c1 * c_in + c2 * c1 + c3 * c2)
    bytes_io = _bytes_of(x, w1, g1, b1, w2, g2, b2, w3, g3, b3) \
        + B * c3 * N * jnp.dtype(ACT_DTYPE).itemsize
    return pl.pallas_call(
        _data_head_kernel,
        out_shape=jax.ShapeDtypeStruct((B, c3, N), ACT_DTYPE),
        grid=(B,),
        in_specs=[
            _batch_spec(c_in, N),
            _full_spec(w1.shape), _full_spec(g1.shape), _full_spec(b1.shape),
            _full_spec(w2.shape), _full_spec(g2.shape), _full_spec(b2.shape),
            _full_spec(w3.shape), _full_spec(g3.shape), _full_spec(b3.shape),
        ],
        out_specs=_batch_spec(c3, N),
        compiler_params=_compiler_params(),
        cost_estimate=pl.CostEstimate(flops=int(flops),
                                      transcendentals=int(B * (c1 + c2 + c3)),
                                      bytes_accessed=int(bytes_io)),
    )(x, w1, g1, b1, w2, g2, b2, w3, g3, b3)


def des_head(d_stacked, p1, p2):
    # d_stacked: (2B, des_size, N) — des1 and des2 stacked on the batch axis so
    # one call (and one weight DMA stream) handles both descriptor sets.
    G, c_in, N = d_stacked.shape
    (w1, g1, b1), (w2, g2, b2) = p1, p2
    c1, c2 = w1.shape[0], w2.shape[0]
    flops = 2 * G * N * (c1 * c_in + c2 * c1)
    bytes_io = _bytes_of(d_stacked, w1, g1, b1, w2, g2, b2) \
        + G * c2 * N * jnp.dtype(ACT_DTYPE).itemsize
    return pl.pallas_call(
        _des_head_kernel,
        out_shape=jax.ShapeDtypeStruct((G, c2, N), ACT_DTYPE),
        grid=(G,),
        in_specs=[
            _batch_spec(c_in, N),
            _full_spec(w1.shape), _full_spec(g1.shape), _full_spec(b1.shape),
            _full_spec(w2.shape), _full_spec(g2.shape), _full_spec(b2.shape),
        ],
        out_specs=_batch_spec(c2, N),
        compiler_params=_compiler_params(),
        cost_estimate=pl.CostEstimate(flops=int(flops),
                                      transcendentals=int(G * (c1 + c2)),
                                      bytes_accessed=int(bytes_io)),
    )(d_stacked, w1, g1, b1, w2, g2, b2)


def tail(x, d_stacked, p1, p2, p3):
    # x: (B, 1024, N);  d_stacked: (2B, 512, N) with des1 in [:B], des2 in [B:].
    B, c_x, N = x.shape
    c_d = d_stacked.shape[1]
    w1, g1, b1 = p1
    w2, g2, b2 = p2
    w3_col, b3 = p3                          # (256, 1), (1, 1)
    c1, c2 = w1.shape[0], w2.shape[0]
    # Split the 2048-wide out1 weight into the three concatenated feature groups
    # so the concat never has to be materialized in HBM.
    w1x = w1[:, :c_x]
    w1a = w1[:, c_x:c_x + c_d]
    w1b = w1[:, c_x + c_d:]
    flops = 2 * B * N * (c1 * (c_x + 2 * c_d) + c2 * c1 + c2)
    bytes_io = _bytes_of(x, d_stacked, w1, g1, b1, w2, g2, b2, w3_col, b3) \
        + B * 1 * N * 4
    return pl.pallas_call(
        _tail_kernel,
        out_shape=jax.ShapeDtypeStruct((B, 1, N), jnp.float32),
        grid=(B,),
        in_specs=[
            _batch_spec(c_x, N),
            pl.BlockSpec((1, c_d, N), lambda i: (i, 0, 0)),          # des1 half
            pl.BlockSpec((1, c_d, N), lambda i, _B=B: (_B + i, 0, 0)),  # des2 half
            _full_spec(w1x.shape), _full_spec(w1a.shape), _full_spec(w1b.shape),
            _full_spec(g1.shape), _full_spec(b1.shape),
            _full_spec(w2.shape), _full_spec(g2.shape), _full_spec(b2.shape),
            _full_spec(w3_col.shape), _full_spec(b3.shape),
        ],
        out_specs=pl.BlockSpec((1, 1, N), lambda i: (i, 0, 0)),
        compiler_params=_compiler_params(),
        cost_estimate=pl.CostEstimate(flops=int(flops),
                                      transcendentals=int(B * (c1 + c2)),
                                      bytes_accessed=int(bytes_io)),
    )(x, d_stacked, d_stacked, w1x, w1a, w1b, g1, b1, w2, g2, b2, w3_col, b3)


# ----------------------------------------------------------------------------
# Parameter construction (deterministic, synthetic)
# ----------------------------------------------------------------------------
def _conv_weight(key, c_in, c_out, std=0.05):
    return std * jax.random.normal(key, (c_out, c_in), jnp.float32)


def _in_affine(key, c):
    kg, kb = jax.random.split(key)
    gamma = 1.0 + 0.1 * jax.random.normal(kg, (c, 1), jnp.float32)
    beta = 0.1 * jax.random.normal(kb, (c, 1), jnp.float32)
    return gamma, beta


def _stage(key, c_in, c_out):
    # Conv1d(k=1) + InstanceNorm1d(affine).  The Conv1d bias is omitted: it is
    # mathematically cancelled by InstanceNorm's per-channel mean subtraction.
    kw, ki = jax.random.split(key)
    w = _conv_weight(kw, c_in, c_out)
    gamma, beta = _in_affine(ki, c_out)
    return (w, gamma, beta)


def init_params(key, input_size, des_size):
    keys = jax.random.split(key, 8)
    p = {}
    # fw_data_head: input_size -> 64 -> 128 -> 1024
    p["dh1"] = _stage(keys[0], input_size, 64)
    p["dh2"] = _stage(keys[1], 64, 128)
    p["dh3"] = _stage(keys[2], 128, 1024)
    # fw_des_head: des_size -> 256 -> 512 (shared by des1 / des2)
    p["sh1"] = _stage(keys[3], des_size, 256)
    p["sh2"] = _stage(keys[4], 256, 512)
    # fw_data_out: 2048 -> 512 -> 256 -> 1 (last conv keeps its bias)
    p["out1"] = _stage(keys[5], 2048, 512)
    p["out2"] = _stage(keys[6], 512, 256)
    kw, kb = jax.random.split(keys[7])
    w3 = _conv_weight(kw, 256, 1)                            # (1, 256)
    b3 = 0.05 * jax.random.normal(kb, (1, 1), jnp.float32)   # (1, 1)
    p["out3"] = (jnp.transpose(w3), b3)                      # stored as (256, 1)
    return p


# ----------------------------------------------------------------------------
# Forward pass
# ----------------------------------------------------------------------------
def error_estimator_des_forward(params, data, des1, des2):
    x = data_head(data, params["dh1"], params["dh2"], params["dh3"])   # (B,1024,N)
    d_stacked = jnp.concatenate([des1, des2], axis=0)                  # (2B,des,N)
    d = des_head(d_stacked, params["sh1"], params["sh2"])              # (2B,512,N)
    return tail(x, d, params["out1"], params["out2"], params["out3"])  # (B,1,N)


if __name__ == "__main__":
    key = jax.random.PRNGKey(0)
    k_p, k_d, k_1, k_2 = jax.random.split(key, 4)

    B, N = 2, 128
    input_size, des_size = 4, 8

    params = init_params(k_p, input_size, des_size)
    data = jax.random.normal(k_d, (B, input_size, N), jnp.float32)
    des1 = jax.random.normal(k_1, (B, des_size, N), jnp.float32)
    des2 = jax.random.normal(k_2, (B, des_size, N), jnp.float32)

    out = error_estimator_des_forward(params, data, des1, des2)
    out = jax.block_until_ready(out)
    assert out.shape == (B, 1, N), out.shape
    assert out.dtype == jnp.float32
    print("KERNEL_OK")
</pallas_src>

<mosaic_0001>
module attributes {stable_mosaic.version = 11 : i64} {
  func.func @_data_head_kernel(%arg0: i32, %arg1: memref<1x4x128xf32, #tpu.memory_space<vmem>>, %arg2: memref<64x4xf32, #tpu.memory_space<vmem>>, %arg3: memref<64x1xf32, #tpu.memory_space<vmem>>, %arg4: memref<64x1xf32, #tpu.memory_space<vmem>>, %arg5: memref<128x64xf32, #tpu.memory_space<vmem>>, %arg6: memref<128x1xf32, #tpu.memory_space<vmem>>, %arg7: memref<128x1xf32, #tpu.memory_space<vmem>>, %arg8: memref<1024x128xf32, #tpu.memory_space<vmem>>, %arg9: memref<1024x1xf32, #tpu.memory_space<vmem>>, %arg10: memref<1024x1xf32, #tpu.memory_space<vmem>>, %arg11: memref<1x1024x128xbf16, #tpu.memory_space<vmem>>) attributes {dimension_semantics = [#tpu.dimension_semantics<parallel>], iteration_bounds = array<i64: 2>, scalar_prefetch = 0 : i64, scratch_operands = 0 : i64, tpu.core_type = #tpu.core_type<tc>, window_params = [{transform_indices = @transform_0, window_bounds = array<i64: 1, 4, 128>}, {pipeline_mode = #tpu.pipeline_mode<synchronous>, transform_indices = @transform_1, window_bounds = array<i64: 64, 4>}, {pipeline_mode = #tpu.pipeline_mode<synchronous>, transform_indices = @transform_2, window_bounds = array<i64: 64, 1>}, {pipeline_mode = #tpu.pipeline_mode<synchronous>, transform_indices = @transform_3, window_bounds = array<i64: 64, 1>}, {pipeline_mode = #tpu.pipeline_mode<synchronous>, transform_indices = @transform_4, window_bounds = array<i64: 128, 64>}, {pipeline_mode = #tpu.pipeline_mode<synchronous>, transform_indices = @transform_5, window_bounds = array<i64: 128, 1>}, {pipeline_mode = #tpu.pipeline_mode<synchronous>, transform_indices = @transform_6, window_bounds = array<i64: 128, 1>}, {pipeline_mode = #tpu.pipeline_mode<synchronous>, transform_indices = @transform_7, window_bounds = array<i64: 1024, 128>}, {pipeline_mode = #tpu.pipeline_mode<synchronous>, transform_indices = @transform_8, window_bounds = array<i64: 1024, 1>}, {pipeline_mode = #tpu.pipeline_mode<synchronous>, transform_indices = @transform_9, window_bounds = array<i64: 1024, 1>}, {transform_indices = @transform_10, window_bounds = array<i64: 1, 1024, 128>}]} {
    %c0 = arith.constant 0 : index
    %c0_0 = arith.constant 0 : index
    %c0_1 = arith.constant 0 : index
    %0 = vector.load %arg1[%c0, %c0_0, %c0_1] : memref<1x4x128xf32, #tpu.memory_space<vmem>>, vector<1x4x128xf32>
    %1 = vector.shape_cast %0 : vector<1x4x128xf32> to vector<4x128xf32>
    %c0_2 = arith.constant 0 : index
    %c0_3 = arith.constant 0 : index
    %2 = vector.load %arg2[%c0_2, %c0_3] : memref<64x4xf32, #tpu.memory_space<vmem>>, vector<64x4xf32>
    %c0_4 = arith.constant 0 : index
    %c0_5 = arith.constant 0 : index
    %3 = vector.load %arg3[%c0_4, %c0_5] : memref<64x1xf32, #tpu.memory_space<vmem>>, vector<64x1xf32>
    %c0_6 = arith.constant 0 : index
    %c0_7 = arith.constant 0 : index
    %4 = vector.load %arg4[%c0_6, %c0_7] : memref<64x1xf32, #tpu.memory_space<vmem>>, vector<64x1xf32>
    %5 = arith.truncf %2 : vector<64x4xf32> to vector<64x4xbf16>
    %6 = arith.truncf %1 : vector<4x128xf32> to vector<4x128xbf16>
    %cst = arith.constant dense<0.000000e+00> : vector<64x128xf32>
    %7 = tpu.matmul %5, %6, %cst {dimension_numbers = #tpu.dot_dimension_numbers<[1], [0], [0], [1], [0, 0, 1, 1], [], []>} : vector<64x4xbf16>, vector<4x128xbf16>, vector<64x128xf32> -> vector<64x128xf32>
    %cst_8 = arith.constant dense<0.000000e+00> : vector<64xf32>
    %8 = vector.multi_reduction <add>, %7, %cst_8 [1] : vector<64x128xf32> to vector<64xf32>
    %9 = vector.shape_cast %8 : vector<64xf32> to vector<64x1xf32>
    %cst_9 = arith.constant 1.280000e+02 : f32
    %10 = vector.broadcast %cst_9 : f32 to vector<64x1xf32>
    %11 = arith.divf %9, %10 : vector<64x1xf32>
    %12 = arith.mulf %7, %7 : vector<64x128xf32>
    %cst_10 = arith.constant dense<0.000000e+00> : vector<64xf32>
    %13 = vector.multi_reduction <add>, %12, %cst_10 [1] : vector<64x128xf32> to vector<64xf32>
    %14 = vector.shape_cast %13 : vector<64xf32> to vector<64x1xf32>
    %cst_11 = arith.constant 1.280000e+02 : f32
    %15 = vector.broadcast %cst_11 : f32 to vector<64x1xf32>
    %16 = arith.divf %14, %15 : vector<64x1xf32>
    %17 = arith.mulf %11, %11 : vector<64x1xf32>
    %18 = arith.subf %16, %17 : vector<64x1xf32>
    %cst_12 = arith.constant 0.000000e+00 : f32
    %19 = vector.broadcast %cst_12 : f32 to vector<64x1xf32>
    %20 = arith.maximumf %18, %19 : vector<64x1xf32>
    %cst_13 = arith.constant 9.99999974E-6 : f32
    %21 = vector.broadcast %cst_13 : f32 to vector<64x1xf32>
    %22 = arith.addf %20, %21 : vector<64x1xf32>
    %23 = math.rsqrt %22 : vector<64x1xf32>
    %24 = arith.mulf %3, %23 : vector<64x1xf32>
    %25 = vector.broadcast %24 : vector<64x1xf32> to vector<64x128xf32>
    %26 = arith.mulf %7, %25 : vector<64x128xf32>
    %27 = arith.mulf %11, %24 : vector<64x1xf32>
    %28 = arith.subf %4, %27 : vector<64x1xf32>
    %29 = vector.broadcast %28 : vector<64x1xf32> to vector<64x128xf32>
    %30 = arith.addf %26, %29 : vector<64x128xf32>
    %cst_14 = arith.constant 0.000000e+00 : f32
    %31 = vector.broadcast %cst_14 : f32 to vector<64x128xf32>
    %32 = arith.cmpf oge, %30, %31 : vector<64x128xf32>
    %cst_15 = arith.constant 0.00999999977 : f32
    %33 = vector.broadcast %cst_15 : f32 to vector<64x128xf32>
    %34 = arith.mulf %33, %30 : vector<64x128xf32>
    %35 = arith.select %32, %30, %34 : vector<64x128xi1>, vector<64x128xf32>
    %c0_16 = arith.constant 0 : index
    %c0_17 = arith.constant 0 : index
    %36 = vector.load %arg5[%c0_16, %c0_17] : memref<128x64xf32, #tpu.memory_space<vmem>>, vector<128x64xf32>
    %c0_18 = arith.constant 0 : index
    %c0_19 = arith.constant 0 : index
    %37 = vector.load %arg6[%c0_18, %c0_19] : memref<128x1xf32, #tpu.memory_space<vmem>>, vector<128x1xf32>
    %c0_20 = arith.constant 0 : index
    %c0_21 = arith.constant 0 : index
    %38 = vector.load %arg7[%c0_20, %c0_21] : memref<128x1xf32, #tpu.memory_space<vmem>>, vector<128x1xf32>
    %39 = arith.truncf %36 : vector<128x64xf32> to vector<128x64xbf16>
    %40 = arith.truncf %35 : vector<64x128xf32> to vector<64x128xbf16>
    %cst_22 = arith.constant dense<0.000000e+00> : vector<128x128xf32>
    %41 = tpu.matmul %39, %40, %cst_22 {dimension_numbers = #tpu.dot_dimension_numbers<[1], [0], [0], [1], [0, 0, 1, 1], [], []>} : vector<128x64xbf16>, vector<64x128xbf16>, vector<128x128xf32> -> vector<128x128xf32>
    %cst_23 = arith.constant dense<0.000000e+00> : vector<128xf32>
    %42 = vector.multi_reduction <add>, %41, %cst_23 [1] : vector<128x128xf32> to vector<128xf32>
    %43 = vector.shape_cast %42 : vector<128xf32> to vector<128x1xf32>
    %cst_24 = arith.constant 1.280000e+02 : f32
    %44 = vector.broadcast %cst_24 : f32 to vector<128x1xf32>
    %45 = arith.divf %43, %44 : vector<128x1xf32>
    %46 = arith.mulf %41, %41 : vector<128x128xf32>
    %cst_25 = arith.constant dense<0.000000e+00> : vector<128xf32>
    %47 = vector.multi_reduction <add>, %46, %cst_25 [1] : vector<128x128xf32> to vector<128xf32>
    %48 = vector.shape_cast %47 : vector<128xf32> to vector<128x1xf32>
    %cst_26 = arith.constant 1.280000e+02 : f32
    %49 = vector.broadcast %cst_26 : f32 to vector<128x1xf32>
    %50 = arith.divf %48, %49 : vector<128x1xf32>
    %51 = arith.mulf %45, %45 : vector<128x1xf32>
    %52 = arith.subf %50, %51 : vector<128x1xf32>
    %cst_27 = arith.constant 0.000000e+00 : f32
    %53 = vector.broadcast %cst_27 : f32 to vector<128x1xf32>
    %54 = arith.maximumf %52, %53 : vector<128x1xf32>
    %cst_28 = arith.constant 9.99999974E-6 : f32
    %55 = vector.broadcast %cst_28 : f32 to vector<128x1xf32>
    %56 = arith.addf %54, %55 : vector<128x1xf32>
    %57 = math.rsqrt %56 : vector<128x1xf32>
    %58 = arith.mulf %37, %57 : vector<128x1xf32>
    %59 = vector.broadcast %58 : vector<128x1xf32> to vector<128x128xf32>
    %60 = arith.mulf %41, %59 : vector<128x128xf32>
    %61 = arith.mulf %45, %58 : vector<128x1xf32>
    %62 = arith.subf %38, %61 : vector<128x1xf32>
    %63 = vector.broadcast %62 : vector<128x1xf32> to vector<128x128xf32>
    %64 = arith.addf %60, %63 : vector<128x128xf32>
    %cst_29 = arith.constant 0.000000e+00 : f32
    %65 = vector.broadcast %cst_29 : f32 to vector<128x128xf32>
    %66 = arith.cmpf oge, %64, %65 : vector<128x128xf32>
    %cst_30 = arith.constant 0.00999999977 : f32
    %67 = vector.broadcast %cst_30 : f32 to vector<128x128xf32>
    %68 = arith.mulf %67, %64 : vector<128x128xf32>
    %69 = arith.select %66, %64, %68 : vector<128x128xi1>, vector<128x128xf32>
    %c0_31 = arith.constant 0 : index
    %c0_32 = arith.constant 0 : index
    %70 = vector.load %arg8[%c0_31, %c0_32] : memref<1024x128xf32, #tpu.memory_space<vmem>>, vector<1024x128xf32>
    %c0_33 = arith.constant 0 : index
    %c0_34 = arith.constant 0 : index
    %71 = vector.load %arg9[%c0_33, %c0_34] : memref<1024x1xf32, #tpu.memory_space<vmem>>, vector<1024x1xf32>
    %c0_35 = arith.constant 0 : index
    %c0_36 = arith.constant 0 : index
    %72 = vector.load %arg10[%c0_35, %c0_36] : memref<1024x1xf32, #tpu.memory_space<vmem>>, vector<1024x1xf32>
    %73 = arith.truncf %70 : vector<1024x128xf32> to vector<1024x128xbf16>
    %74 = arith.truncf %69 : vector<128x128xf32> to vector<128x128xbf16>
    %cst_37 = arith.constant dense<0.000000e+00> : vector<1024x128xf32>
    %75 = tpu.matmul %73, %74, %cst_37 {dimension_numbers = #tpu.dot_dimension_numbers<[1], [0], [0], [1], [0, 0, 1, 1], [], []>} : vector<1024x128xbf16>, vector<128x128xbf16>, vector<1024x128xf32> -> vector<1024x128xf32>
    %cst_38 = arith.constant dense<0.000000e+00> : vector<1024xf32>
    %76 = vector.multi_reduction <add>, %75, %cst_38 [1] : vector<1024x128xf32> to vector<1024xf32>
    %77 = vector.shape_cast %76 : vector<1024xf32> to vector<1024x1xf32>
    %cst_39 = arith.constant 1.280000e+02 : f32
    %78 = vector.broadcast %cst_39 : f32 to vector<1024x1xf32>
    %79 = arith.divf %77, %78 : vector<1024x1xf32>
    %80 = arith.mulf %75, %75 : vector<1024x128xf32>
    %cst_40 = arith.constant dense<0.000000e+00> : vector<1024xf32>
    %81 = vector.multi_reduction <add>, %80, %cst_40 [1] : vector<1024x128xf32> to vector<1024xf32>
    %82 = vector.shape_cast %81 : vector<1024xf32> to vector<1024x1xf32>
    %cst_41 = arith.constant 1.280000e+02 : f32
    %83 = vector.broadcast %cst_41 : f32 to vector<1024x1xf32>
    %84 = arith.divf %82, %83 : vector<1024x1xf32>
    %85 = arith.mulf %79, %79 : vector<1024x1xf32>
    %86 = arith.subf %84, %85 : vector<1024x1xf32>
    %cst_42 = arith.constant 0.000000e+00 : f32
    %87 = vector.broadcast %cst_42 : f32 to vector<1024x1xf32>
    %88 = arith.maximumf %86, %87 : vector<1024x1xf32>
    %cst_43 = arith.constant 9.99999974E-6 : f32
    %89 = vector.broadcast %cst_43 : f32 to vector<1024x1xf32>
    %90 = arith.addf %88, %89 : vector<1024x1xf32>
    %91 = math.rsqrt %90 : vector<1024x1xf32>
    %92 = arith.mulf %71, %91 : vector<1024x1xf32>
    %93 = vector.broadcast %92 : vector<1024x1xf32> to vector<1024x128xf32>
    %94 = arith.mulf %75, %93 : vector<1024x128xf32>
    %95 = arith.mulf %79, %92 : vector<1024x1xf32>
    %96 = arith.subf %72, %95 : vector<1024x1xf32>
    %97 = vector.broadcast %96 : vector<1024x1xf32> to vector<1024x128xf32>
    %98 = arith.addf %94, %97 : vector<1024x128xf32>
    %cst_44 = arith.constant 0.000000e+00 : f32
    %99 = vector.broadcast %cst_44 : f32 to vector<1024x128xf32>
    %100 = arith.cmpf oge, %98, %99 : vector<1024x128xf32>
    %cst_45 = arith.constant 0.00999999977 : f32
    %101 = vector.broadcast %cst_45 : f32 to vector<1024x128xf32>
    %102 = arith.mulf %101, %98 : vector<1024x128xf32>
    %103 = arith.select %100, %98, %102 : vector<1024x128xi1>, vector<1024x128xf32>
    %104 = arith.truncf %103 : vector<1024x128xf32> to vector<1024x128xbf16>
    %c0_46 = arith.constant 0 : index
    %c0_47 = arith.constant 0 : index
    %c0_48 = arith.constant 0 : index
    %105 = vector.load %arg11[%c0_46, %c0_47, %c0_48] : memref<1x1024x128xbf16, #tpu.memory_space<vmem>>, vector<1x1024x128xbf16>
    %106 = vector.shape_cast %105 : vector<1x1024x128xbf16> to vector<1024x128xbf16>
    %107 = vector.shape_cast %104 : vector<1024x128xbf16> to vector<1x1024x128xbf16>
    tpu.vector_store %arg11[%c0_46, %c0_47, %c0_48], %107 {strides = array<i32>} : memref<1x1024x128xbf16, #tpu.memory_space<vmem>>, vector<1x1024x128xbf16>,
    return
  }
  func.func @transform_0(%arg0: i32) -> (i32, i32, i32) {
    %c0_i32 = arith.constant 0 : i32
    %c0_i32_0 = arith.constant 0 : i32
    %c0_i32_1 = arith.constant 0 : i32
    return %arg0, %c0_i32, %c0_i32_0 : i32, i32, i32
  }
  func.func @transform_1(%arg0: i32) -> (i32, i32) {
    %c0_i32 = arith.constant 0 : i32
    %c0_i32_0 = arith.constant 0 : i32
    %c0_i32_1 = arith.constant 0 : i32
    return %c0_i32, %c0_i32_0 : i32, i32
  }
  func.func @transform_2(%arg0: i32) -> (i32, i32) {
    %c0_i32 = arith.constant 0 : i32
    %c0_i32_0 = arith.constant 0 : i32
    %c0_i32_1 = arith.constant 0 : i32
    return %c0_i32, %c0_i32_0 : i32, i32
  }
  func.func @transform_3(%arg0: i32) -> (i32, i32) {
    %c0_i32 = arith.constant 0 : i32
    %c0_i32_0 = arith.constant 0 : i32
    %c0_i32_1 = arith.constant 0 : i32
    return %c0_i32, %c0_i32_0 : i32, i32
  }
  func.func @transform_4(%arg0: i32) -> (i32, i32) {
    %c0_i32 = arith.constant 0 : i32
    %c0_i32_0 = arith.constant 0 : i32
    %c0_i32_1 = arith.constant 0 : i32
    return %c0_i32, %c0_i32_0 : i32, i32
  }
  func.func @transform_5(%arg0: i32) -> (i32, i32) {
    %c0_i32 = arith.constant 0 : i32
    %c0_i32_0 = arith.constant 0 : i32
    %c0_i32_1 = arith.constant 0 : i32
    return %c0_i32, %c0_i32_0 : i32, i32
  }
  func.func @transform_6(%arg0: i32) -> (i32, i32) {
    %c0_i32 = arith.constant 0 : i32
    %c0_i32_0 = arith.constant 0 : i32
    %c0_i32_1 = arith.constant 0 : i32
    return %c0_i32, %c0_i32_0 : i32, i32
  }
  func.func @transform_7(%arg0: i32) -> (i32, i32) {
    %c0_i32 = arith.constant 0 : i32
    %c0_i32_0 = arith.constant 0 : i32
    %c0_i32_1 = arith.constant 0 : i32
    return %c0_i32, %c0_i32_0 : i32, i32
  }
  func.func @transform_8(%arg0: i32) -> (i32, i32) {
    %c0_i32 = arith.constant 0 : i32
    %c0_i32_0 = arith.constant 0 : i32
    %c0_i32_1 = arith.constant 0 : i32
    return %c0_i32, %c0_i32_0 : i32, i32
  }
  func.func @transform_9(%arg0: i32) -> (i32, i32) {
    %c0_i32 = arith.constant 0 : i32
    %c0_i32_0 = arith.constant 0 : i32
    %c0_i32_1 = arith.constant 0 : i32
    return %c0_i32, %c0_i32_0 : i32, i32
  }
  func.func @transform_10(%arg0: i32) -> (i32, i32, i32) {
    %c0_i32 = arith.constant 0 : i32
    %c0_i32_0 = arith.constant 0 : i32
    %c0_i32_1 = arith.constant 0 : i32
    return %arg0, %c0_i32, %c0_i32_0 : i32, i32, i32
  }
}

</mosaic_0001>

<llo_original>
// kernel: tpu_custom_call.1
$region0: #{tpu_custom_call.1}
  #allocation0 [shape = 'u32[]', space=smem, size = 0x4, offset = 0x4, fixed_abs, tag = 'smem constant byte address 0x4 - core index']
  #allocation1 [shape = 'u32[144,128]{1,0:T(1,128)}', space=vmem, size = 0x12000, scoped, tag = 'internal scratch']
  %s0 = inlined_call_operand.vmem [shape: f32[2,4,128], index: 0, kind: input, shape index: {}]
  %s1 = inlined_call_operand.vmem [shape: f32[64,4], index: 1, kind: input, shape index: {}]
  %s2 = inlined_call_operand.vmem [shape: f32[64,1], index: 2, kind: input, shape index: {}]
  %s3 = inlined_call_operand.vmem [shape: f32[64,1], index: 3, kind: input, shape index: {}]
  %s4 = inlined_call_operand.vmem [shape: f32[128,64], index: 4, kind: input, shape index: {}]
  %s5 = inlined_call_operand.vmem [shape: f32[128,1], index: 5, kind: input, shape index: {}]
  %s6 = inlined_call_operand.vmem [shape: f32[128,1], index: 6, kind: input, shape index: {}]
  %s7 = inlined_call_operand.vmem [shape: f32[1024,128], index: 7, kind: input, shape index: {}]
  %s8 = inlined_call_operand.vmem [shape: f32[1024,1], index: 8, kind: input, shape index: {}]
  %s9 = inlined_call_operand.vmem [shape: f32[1024,1], index: 9, kind: input, shape index: {}]
  %s10 = inlined_call_operand.hbm [shape: bf16[2,1024,128], index: 10, kind: output, shape index: {}]
  %s11 = sld [smem:[#allocation0]]
  $region73: #{tpu_custom_call.1} parent=0
    _
  %s13 = ssub.s32 1, %s11
  %s14 = scalar_select 0, %s13, %s11
  $region1: #{tpu_custom_call.1} parent=0
    #allocation2 [shape = 'u8[524288]{0}', space=vmem, size = 0x80000, scoped, tag = 'output window, operand 0']
    #allocation3 [shape = 's32[2]{0}', space=sflag, size = 0x8, scoped, tag = 'scoped memory for tpu_custom_call.1']
    %15 = vsyncpa [#allocation3], 0
    %s16 = scalar_lea.sflag [#allocation3], 1
    %17 = vsyncpa %s16, 0
    loop: start=0, step=1, limit=4
    $region2: #{tpu_custom_call.1} parent=1 // loop_pre_header
      _
    $region3: #{tpu_custom_call.1} parent=1 // loop_header
      %s19 = sphi 0, %s23
      %p20 = scmp.ge.s32.totalorder %s19, 4
      %s29 = sphi 0, %s31
      %s32 = sphi 0, %s29
      %s33 = sphi 0, %s32
      %s49 = sphi 0, %s33
      %s53 = sphi 0, %s53
      %s55 = sphi 0, %s53
      %s56 = sphi 0, %s55
      %s70 = sphi 0, %s56
      %s74 = sphi 0, %s74
      %s76 = sphi 0, %s74
      %s77 = sphi 0, %s76
      %s91 = sphi 0, %s77
      %s95 = sphi 0, %s95
      %s97 = sphi 0, %s95
      %s98 = sphi 0, %s97
      %s112 = sphi 0, %s98
      %s116 = sphi 0, %s116
      %s118 = sphi 0, %s116
      %s119 = sphi 0, %s118
      %s133 = sphi 0, %s119
      %s137 = sphi 0, %s137
      %s139 = sphi 0, %s137
      %s140 = sphi 0, %s139
      %s154 = sphi 0, %s140
      %s158 = sphi 0, %s158
      %s160 = sphi 0, %s158
      %s161 = sphi 0, %s160
      %s175 = sphi 0, %s161
      %s179 = sphi 0, %s179
      %s181 = sphi 0, %s179
      %s182 = sphi 0, %s181
      %s196 = sphi 0, %s182
      %s200 = sphi 0, %s200
      %s202 = sphi 0, %s200
      %s203 = sphi 0, %s202
      %s217 = sphi 0, %s203
      %s221 = sphi 0, %s221
      %s223 = sphi 0, %s221
      %s224 = sphi 0, %s223
      %s238 = sphi 0, %s224
      %s244 = sphi 0, %s246
      %s247 = sphi 0, %s244
      %s248 = sphi 0, %s247
      %s264 = sphi 0, %s248
    $region4: #{tpu_custom_call.1} parent=1 // loop_header_branch
      %22 = sbr.rel (%p20) target = $region8
    $region5: #{tpu_custom_call.1} parent=1 // loop_body
      %s24 = ssub.s32 %s19, 1
      %s25 = ssub.s32 %s19, 2
      %s26 = sadd.s32 %s19, 1
      %s27 = ssub.s32 %s19, %s26
      %p28 = scmp.eq.s32.totalorder %s27, 0
      %s30 = sadd.s32 %s29, 1
      %s31 = scalar_select %p28, %s29, %s30
      %p34 = pneg %p28
      %p35 = scmp.eq.s32.totalorder %s19, 1
      %p36 = por %p34, %p35
      %p37 = scmp.ne.s32.totalorder %s29, %s32
      %p38 = scmp.eq.s32.totalorder %s19, 0
      %p39 = por %p37, %p38
      %p40 = scmp.ne.s32.totalorder %s29, %s32
      %p41 = scmp.eq.s32.totalorder %s24, 1
      %p42 = por %p40, %p41
      %p43 = scmp.ne.s32.totalorder %s32, %s33
      %p44 = scmp.eq.s32.totalorder %s24, 0
      %p45 = por %p43, %p44
      %p46 = scmp.ne.s32.totalorder %s32, %s33
      %p47 = scmp.eq.s32.totalorder %s25, 1
      %p48 = por %p46, %p47
      %p50 = scmp.ne.s32.totalorder %s33, %s49
      %p51 = scmp.eq.s32.totalorder %s25, 0
      %p52 = por %p50, %p51
      %s54 = sadd.s32 %s53, 1
      %p57 = scmp.eq.s32.totalorder %s19, 1
      %p58 = scmp.ne.s32.totalorder %s53, %s55
      %p59 = scmp.eq.s32.totalorder %s19, 0
      %p60 = por %p58, %p59
      %p61 = scmp.ne.s32.totalorder %s53, %s55
      %p62 = scmp.eq.s32.totalorder %s24, 1
      %p63 = por %p61, %p62
      %p64 = scmp.ne.s32.totalorder %s55, %s56
      %p65 = scmp.eq.s32.totalorder %s24, 0
      %p66 = por %p64, %p65
      %p67 = scmp.ne.s32.totalorder %s55, %s56
      %p68 = scmp.eq.s32.totalorder %s25, 1
      %p69 = por %p67, %p68
      %p71 = scmp.ne.s32.totalorder %s56, %s70
      %p72 = scmp.eq.s32.totalorder %s25, 0
      %p73 = por %p71, %p72
      %s75 = sadd.s32 %s74, 1
      %p78 = scmp.eq.s32.totalorder %s19, 1
      %p79 = scmp.ne.s32.totalorder %s74, %s76
      %p80 = scmp.eq.s32.totalorder %s19, 0
      %p81 = por %p79, %p80
      %p82 = scmp.ne.s32.totalorder %s74, %s76
      %p83 = scmp.eq.s32.totalorder %s24, 1
      %p84 = por %p82, %p83
      %p85 = scmp.ne.s32.totalorder %s76, %s77
      %p86 = scmp.eq.s32.totalorder %s24, 0
      %p87 = por %p85, %p86
      %p88 = scmp.ne.s32.totalorder %s76, %s77
      %p89 = scmp.eq.s32.totalorder %s25, 1
      %p90 = por %p88, %p89
      %p92 = scmp.ne.s32.totalorder %s77, %s91
      %p93 = scmp.eq.s32.totalorder %s25, 0
      %p94 = por %p92, %p93
      %s96 = sadd.s32 %s95, 1
      %p99 = scmp.eq.s32.totalorder %s19, 1
      %p100 = scmp.ne.s32.totalorder %s95, %s97
      %p101 = scmp.eq.s32.totalorder %s19, 0
      %p102 = por %p100, %p101
      %p103 = scmp.ne.s32.totalorder %s95, %s97
      %p104 = scmp.eq.s32.totalorder %s24, 1
      %p105 = por %p103, %p104
      %p106 = scmp.ne.s32.totalorder %s97, %s98
      %p107 = scmp.eq.s32.totalorder %s24, 0
      %p108 = por %p106, %p107
      %p109 = scmp.ne.s32.totalorder %s97, %s98
      %p110 = scmp.eq.s32.totalorder %s25, 1
      %p111 = por %p109, %p110
      %p113 = scmp.ne.s32.totalorder %s98, %s112
      %p114 = scmp.eq.s32.totalorder %s25, 0
      %p115 = por %p113, %p114
      %s117 = sadd.s32 %s116, 1
      %p120 = scmp.eq.s32.totalorder %s19, 1
      %p121 = scmp.ne.s32.totalorder %s116, %s118
      %p122 = scmp.eq.s32.totalorder %s19, 0
      %p123 = por %p121, %p122
      %p124 = scmp.ne.s32.totalorder %s116, %s118
      %p125 = scmp.eq.s32.totalorder %s24, 1
      %p126 = por %p124, %p125
      %p127 = scmp.ne.s32.totalorder %s118, %s119
      %p128 = scmp.eq.s32.totalorder %s24, 0
      %p129 = por %p127, %p128
      %p130 = scmp.ne.s32.totalorder %s118, %s119
      %p131 = scmp.eq.s32.totalorder %s25, 1
      %p132 = por %p130, %p131
      %p134 = scmp.ne.s32.totalorder %s119, %s133
      %p135 = scmp.eq.s32.totalorder %s25, 0
      %p136 = por %p134, %p135
      %s138 = sadd.s32 %s137, 1
      %p141 = scmp.eq.s32.totalorder %s19, 1
      %p142 = scmp.ne.s32.totalorder %s137, %s139
      %p143 = scmp.eq.s32.totalorder %s19, 0
      %p144 = por %p142, %p143
      %p145 = scmp.ne.s32.totalorder %s137, %s139
      %p146 = scmp.eq.s32.totalorder %s24, 1
      %p147 = por %p145, %p146
      %p148 = scmp.ne.s32.totalorder %s139, %s140
      %p149 = scmp.eq.s32.totalorder %s24, 0
      %p150 = por %p148, %p149
      %p151 = scmp.ne.s32.totalorder %s139, %s140
      %p152 = scmp.eq.s32.totalorder %s25, 1
      %p153 = por %p151, %p152
      %p155 = scmp.ne.s32.totalorder %s140, %s154
      %p156 = scmp.eq.s32.totalorder %s25, 0
      %p157 = por %p155, %p156
      %s159 = sadd.s32 %s158, 1
      %p162 = scmp.eq.s32.totalorder %s19, 1
      %p163 = scmp.ne.s32.totalorder %s158, %s160
      %p164 = scmp.eq.s32.totalorder %s19, 0
      %p165 = por %p163, %p164
      %p166 = scmp.ne.s32.totalorder %s158, %s160
      %p167 = scmp.eq.s32.totalorder %s24, 1
      %p168 = por %p166, %p167
      %p169 = scmp.ne.s32.totalorder %s160, %s161
      %p170 = scmp.eq.s32.totalorder %s24, 0
      %p171 = por %p169, %p170
      %p172 = scmp.ne.s32.totalorder %s160, %s161
      %p173 = scmp.eq.s32.totalorder %s25, 1
      %p174 = por %p172, %p173
      %p176 = scmp.ne.s32.totalorder %s161, %s175
      %p177 = scmp.eq.s32.totalorder %s25, 0
      %p178 = por %p176, %p177
      %s180 = sadd.s32 %s179, 1
      %p183 = scmp.eq.s32.totalorder %s19, 1
      %p184 = scmp.ne.s32.totalorder %s179, %s181
      %p185 = scmp.eq.s32.totalorder %s19, 0
      %p186 = por %p184, %p185
      %p187 = scmp.ne.s32.totalorder %s179, %s181
      %p188 = scmp.eq.s32.totalorder %s24, 1
      %p189 = por %p187, %p188
      %p190 = scmp.ne.s32.totalorder %s181, %s182
      %p191 = scmp.eq.s32.totalorder %s24, 0
      %p192 = por %p190, %p191
      %p193 = scmp.ne.s32.totalorder %s181, %s182
      %p194 = scmp.eq.s32.totalorder %s25, 1
      %p195 = por %p193, %p194
      %p197 = scmp.ne.s32.totalorder %s182, %s196
      %p198 = scmp.eq.s32.totalorder %s25, 0
      %p199 = por %p197, %p198
      %s201 = sadd.s32 %s200, 1
      %p204 = scmp.eq.s32.totalorder %s19, 1
      %p205 = scmp.ne.s32.totalorder %s200, %s202
      %p206 = scmp.eq.s32.totalorder %s19, 0
      %p207 = por %p205, %p206
      %p208 = scmp.ne.s32.totalorder %s200, %s202
      %p209 = scmp.eq.s32.totalorder %s24, 1
      %p210 = por %p208, %p209
      %p211 = scmp.ne.s32.totalorder %s202, %s203
      %p212 = scmp.eq.s32.totalorder %s24, 0
      %p213 = por %p211, %p212
      %p214 = scmp.ne.s32.totalorder %s202, %s203
      %p215 = scmp.eq.s32.totalorder %s25, 1
      %p216 = por %p214, %p215
      %p218 = scmp.ne.s32.totalorder %s203, %s217
      %p219 = scmp.eq.s32.totalorder %s25, 0
      %p220 = por %p218, %p219
      %s222 = sadd.s32 %s221, 1
      %p225 = scmp.eq.s32.totalorder %s19, 1
      %p226 = scmp.ne.s32.totalorder %s221, %s223
      %p227 = scmp.eq.s32.totalorder %s19, 0
      %p228 = por %p226, %p227
      %p229 = scmp.ne.s32.totalorder %s221, %s223
      %p230 = scmp.eq.s32.totalorder %s24, 1
      %p231 = por %p229, %p230
      %p232 = scmp.ne.s32.totalorder %s223, %s224
      %p233 = scmp.eq.s32.totalorder %s24, 0
      %p234 = por %p232, %p233
      %p235 = scmp.ne.s32.totalorder %s223, %s224
      %p236 = scmp.eq.s32.totalorder %s25, 1
      %p237 = por %p235, %p236
      %p239 = scmp.ne.s32.totalorder %s224, %s238
      %p240 = scmp.eq.s32.totalorder %s25, 0
      %p241 = por %p239, %p240
      %s242 = ssub.s32 %s19, %s26
      %p243 = scmp.eq.s32.totalorder %s242, 0
      %s245 = sadd.s32 %s244, 1
      %s246 = scalar_select %p243, %s244, %s245
      %p249 = pneg %p243
      %p250 = scmp.eq.s32.totalorder %s19, 1
      %p251 = por %p249, %p250
      %p252 = scmp.ne.s32.totalorder %s244, %s247
      %p253 = scmp.eq.s32.totalorder %s19, 0
      %p254 = por %p252, %p253
      %p255 = scmp.ne.s32.totalorder %s244, %s247
      %p256 = scmp.eq.s32.totalorder %s24, 1
      %p257 = por %p255, %p256
      %p258 = scmp.ne.s32.totalorder %s247, %s248
      %p259 = scmp.eq.s32.totalorder %s24, 0
      %p260 = por %p258, %p259
      %p261 = scmp.ne.s32.totalorder %s247, %s248
      %p262 = scmp.eq.s32.totalorder %s25, 1
      %p263 = por %p261, %p262
      %p265 = scmp.ne.s32.totalorder %s248, %s264
      %p266 = scmp.eq.s32.totalorder %s25, 0
      %p267 = por %p265, %p266
      %p268 = scmp.le.s32.totalorder 1, %s19
      %p269 = scmp.lt.s32.totalorder %s19, 3
      %p270 = pnand %p268, %p269
      %p271 = pneg %p270
      // Predicated region
      $region9: #{tpu_custom_call.1} parent=5 // pred_check
        _
      $region10: #{tpu_custom_call.1} parent=5 // pred_check_branch
        %273 = sbr.rel (%p270) target = $region12
      $region11: #{tpu_custom_call.1} parent=5 // pred_region
        %s274 = ssub.s32 %s19, 1
        // Predicated region
        $region13: #{tpu_custom_call.1} parent=11 // pred_check
          %p275 = pneg %p66
        $region14: #{tpu_custom_call.1} parent=11 // pred_check_branch
          %277 = sbr.rel (%p275) target = $region16
        $region15: #{tpu_custom_call.1} parent=11 // pred_region
          _
        $region16: #{tpu_custom_call.1} parent=11 // pred_fallthru
          _
        // Predicated region
        $region17: #{tpu_custom_call.1} parent=11 // pred_check
          %p278 = pneg %p87
        $region18: #{tpu_custom_call.1} parent=11 // pred_check_branch
          %280 = sbr.rel (%p278) target = $region20
        $region19: #{tpu_custom_call.1} parent=11 // pred_region
          _
        $region20: #{tpu_custom_call.1} parent=11 // pred_fallthru
          _
        // Predicated region
        $region21: #{tpu_custom_call.1} parent=11 // pred_check
          %p281 = pneg %p108
        $region22: #{tpu_custom_call.1} parent=11 // pred_check_branch
          %283 = sbr.rel (%p281) target = $region24
        $region23: #{tpu_custom_call.1} parent=11 // pred_region
          _
        $region24: #{tpu_custom_call.1} parent=11 // pred_fallthru
          _
        // Predicated region
        $region25: #{tpu_custom_call.1} parent=11 // pred_check
          %p284 = pneg %p129
        $region26: #{tpu_custom_call.1} parent=11 // pred_check_branch
          %286 = sbr.rel (%p284) target = $region28
        $region27: #{tpu_custom_call.1} parent=11 // pred_region
          _
        $region28: #{tpu_custom_call.1} parent=11 // pred_fallthru
          _
        // Predicated region
        $region29: #{tpu_custom_call.1} parent=11 // pred_check
          %p287 = pneg %p150
        $region30: #{tpu_custom_call.1} parent=11 // pred_check_branch
          %289 = sbr.rel (%p287) target = $region32
        $region31: #{tpu_custom_call.1} parent=11 // pred_region
          _
        $region32: #{tpu_custom_call.1} parent=11 // pred_fallthru
          _
        // Predicated region
        $region33: #{tpu_custom_call.1} parent=11 // pred_check
          %p290 = pneg %p171
        $region34: #{tpu_custom_call.1} parent=11 // pred_check_branch
          %292 = sbr.rel (%p290) target = $region36
        $region35: #{tpu_custom_call.1} parent=11 // pred_region
          _
        $region36: #{tpu_custom_call.1} parent=11 // pred_fallthru
          _
        // Predicated region
        $region37: #{tpu_custom_call.1} parent=11 // pred_check
          %p293 = pneg %p192
        $region38: #{tpu_custom_call.1} parent=11 // pred_check_branch
          %295 = sbr.rel (%p293) target = $region40
        $region39: #{tpu_custom_call.1} parent=11 // pred_region
          _
        $region40: #{tpu_custom_call.1} parent=11 // pred_fallthru
          _
        // Predicated region
        $region41: #{tpu_custom_call.1} parent=11 // pred_check
          %p296 = pneg %p213
        $region42: #{tpu_custom_call.1} parent=11 // pred_check_branch
          %298 = sbr.rel (%p296) target = $region44
        $region43: #{tpu_custom_call.1} parent=11 // pred_region
          _
        $region44: #{tpu_custom_call.1} parent=11 // pred_fallthru
          _
        // Predicated region
        $region45: #{tpu_custom_call.1} parent=11 // pred_check
          %p299 = pneg %p234
        $region46: #{tpu_custom_call.1} parent=11 // pred_check_branch
          %301 = sbr.rel (%p299) target = $region48
        $region47: #{tpu_custom_call.1} parent=11 // pred_region
          _
        $region48: #{tpu_custom_call.1} parent=11 // pred_fallthru
          _
      $region12: #{tpu_custom_call.1} parent=5 // pred_fallthru
        _
      %p302 = scmp.lt.s32.totalorder %s19, 2
      // Predicated region
      $region49: #{tpu_custom_call.1} parent=5 // pred_check
        %p303 = pneg %p302
      $region50: #{tpu_custom_call.1} parent=5 // pred_check_branch
        %305 = sbr.rel (%p303) target = $region52
      $region51: #{tpu_custom_call.1} parent=5 // pred_region
        // Predicated region
        $region53: #{tpu_custom_call.1} parent=51 // pred_check
          %p306 = pneg %p39
        $region54: #{tpu_custom_call.1} parent=51 // pred_check_branch
          %308 = sbr.rel (%p306) target = $region56
        $region55: #{tpu_custom_call.1} parent=51 // pred_region
          %p309 = scmp.lt.s32.totalorder %s19, 1
          %s310 = scalar_select %p309, %s19, 1
          %s311 = smul.addr %s310, 4
          %s312 = scalar_lea.vmem %s0, %s311
        $region56: #{tpu_custom_call.1} parent=51 // pred_fallthru
          _
      $region52: #{tpu_custom_call.1} parent=5 // pred_fallthru
        _
      %p313 = scmp.le.s32.totalorder 1, %s19
      %p314 = scmp.lt.s32.totalorder %s19, 3
      %p315 = pnand %p313, %p314
      %p316 = pneg %p315
      // Predicated region
      $region57: #{tpu_custom_call.1} parent=5 // pred_check
        _
      $region58: #{tpu_custom_call.1} parent=5 // pred_check_branch
        %318 = sbr.rel (%p315) target = $region60
      $region59: #{tpu_custom_call.1} parent=5 // pred_region
        %s319 = ssub.s32 %s19, 1
        %p320 = scmp.lt.s32.totalorder %s24, 1
        %s321 = scalar_select %p320, %s24, 1
        %s322 = smul.addr %s321, 4
        %s323 = scalar_lea.vmem %s0, %s322
        %p324 = pneg %p45
        %p325 = pneg %p42
        %p326 = pneg %p66
        %p327 = pneg %p63
        %p328 = pneg %p87
        %p329 = pneg %p84
        %p330 = pneg %p108
        %p331 = pneg %p105
        %p332 = pneg %p129
        %p333 = pneg %p126
        %p334 = pneg %p150
        %p335 = pneg %p147
        %p336 = pneg %p171
        %p337 = pneg %p168
        %p338 = pneg %p192
        %p339 = pneg %p189
        %p340 = pneg %p213
        %p341 = pneg %p210
        %p342 = pneg %p234
        %p343 = pneg %p231
        %p344 = pneg %p260
        %p345 = pneg %p257
        %s346 = sand.u32 %s247, 1
        %s347 = scalar_lea.sflag [#allocation3], %s346
        %s348 = sand.u32 %s247, 1
        %s349 = smul.addr %s348, 512
        %s350 = scalar_lea.vmem [#allocation2], %s349
        %p351 = scmp.lt.s32.totalorder %s24, 1
        %s352 = scalar_select %p351, %s24, 1
        %s353 = smul.addr %s352, 4
        %s354 = scalar_lea.vmem %s0, %s353
        %v356 = vld [vmem:[%s354] sm:$0xf]
        %v357 = vld [vmem:[%s1] sm:$0xff]
        %v358 = vld [vmem:[%s1 + $0x8] sm:$0xff]
        %v359 = vld [vmem:[%s1 + $0x10] sm:$0xff]
        %v360 = vld [vmem:[%s1 + $0x18] sm:$0xff]
        %v361 = vld [vmem:[%s1 + $0x20] sm:$0xff]
        %v362 = vld [vmem:[%s1 + $0x28] sm:$0xff]
        %v363 = vld [vmem:[%s1 + $0x30] sm:$0xff]
        %v364 = vld [vmem:[%s1 + $0x38] sm:$0xff]
        %v365 = vld [vmem:[%s2] sm:$0xff]
        %v366 = vld [vmem:[%s2 + $0x8] sm:$0xff]
        %v367 = vld [vmem:[%s2 + $0x10] sm:$0xff]
        %v368 = vld [vmem:[%s2 + $0x18] sm:$0xff]
        %v369 = vld [vmem:[%s2 + $0x20] sm:$0xff]
        %v370 = vld [vmem:[%s2 + $0x28] sm:$0xff]
        %v371 = vld [vmem:[%s2 + $0x30] sm:$0xff]
        %v372 = vld [vmem:[%s2 + $0x38] sm:$0xff]
        %v373 = vld [vmem:[%s3] sm:$0xff]
        %v374 = vld [vmem:[%s3 + $0x8] sm:$0xff]
        %v375 = vld [vmem:[%s3 + $0x10] sm:$0xff]
        %v376 = vld [vmem:[%s3 + $0x18] sm:$0xff]
        %v377 = vld [vmem:[%s3 + $0x20] sm:$0xff]
        %v378 = vld [vmem:[%s3 + $0x28] sm:$0xff]
        %v379 = vld [vmem:[%s3 + $0x30] sm:$0xff]
        %v380 = vld [vmem:[%s3 + $0x38] sm:$0xff]
        %v381 = vpack.c.bf16 %v358, %v357
        %v382 = vpack.c.bf16 %v360, %v359
        %v383 = vpack.c.bf16 %v362, %v361
        %v384 = vpack.c.bf16 %v364, %v363
        %v385 = vpack.c.bf16 %v356, %v356
        %vm386 = vcmask 31744
        %v388 = vsel %vm386, %v381, 0
        %v391 = vsel %vm386, %v382, 0
        %v394 = vsel %vm386, %v383, 0
        %v397 = vsel %vm386, %v384, 0
        %vm399 = vcmask 1041408
        %v401 = vsel %vm399, %v385, 0
        %403 = vmatprep.subr.bf16.mxu0 0
        %404 = vmatpush1.bf16.msra.mxu0 0
        %405 = vmatprep.subr.bf16.mxu0 0
        %406 = vmatpush1.bf16.msra.mxu0 0
        %407 = vmatprep.subr.bf16.mxu0 0
        %408 = vmatpush1.bf16.msra.mxu0 0
        %409 = vmatprep.subr.bf16.mxu0 0
        %410 = vmatpush1.bf16.msra.mxu0 0
        %411 = vmatprep.subr.bf16.mxu0 0
        %412 = vmatpush1.bf16.msra.mxu0 0
        %413 = vmatprep.subr.bf16.mxu0 0
        %414 = vmatpush1.bf16.msra.mxu0 0
        %415 = vmatprep.subr.bf16.mxu0 0
        %416 = vmatpush1.bf16.msra.mxu0 0
        %417 = vmatprep.subr.bf16.mxu0 0
        %418 = vmatpush1.bf16.msra.mxu0 %v401
        %419 = vmatprep.subr.bf16.mxu0 0
        %420 = vmatpush2.bf16.msra.mxu0 0
        %421 = vmatprep.subr.bf16.mxu0 0
        %422 = vmatpush2.bf16.msra.mxu0 0
        %423 = vmatprep.subr.bf16.mxu0 0
        %424 = vmatpush2.bf16.msra.mxu0 0
        %425 = vmatprep.subr.bf16.mxu0 0
        %426 = vmatpush2.bf16.msra.mxu0 0
        %427 = vmatprep.subr.bf16.mxu0 0
        %428 = vmatpush2.bf16.msra.mxu0 0
        %429 = vmatprep.subr.bf16.mxu0 0
        %430 = vmatpush2.bf16.msra.mxu0 0
        %431 = vmatprep.subr.bf16.mxu0 0
        %432 = vmatpush2.bf16.msra.mxu0 0
        %433 = vmatprep.subr.bf16.mxu0 0
        %434 = vmatpush2.bf16.msra.mxu0 0
        %435 = vmatprep.mubr.bf16.mxu0 0
        %436 = vmatmul.mubr.bf16.gmra.mxu0 %v388
        %v437 = vpop.f32.mrf.mxu0
        %v438 = vadd.f32 0.0, %v437
        %v439 = vpop.f32.mrf.mxu0
        %v440 = vpop.f32.mrf.mxu0
        %v441 = vadd.f32 0.0, %v440
        %v442 = vpop.f32.mrf.mxu0
        %443 = vmatprep.mubr.bf16.mxu0 0
        %444 = vmatmul.mubr.bf16.gmra.mxu0 %v391
        %v445 = vpop.f32.mrf.mxu0
        %v446 = vadd.f32 0.0, %v445
        %v447 = vpop.f32.mrf.mxu0
        %v448 = vpop.f32.mrf.mxu0
        %v449 = vadd.f32 0.0, %v448
        %v450 = vpop.f32.mrf.mxu0
        %451 = vmatprep.mubr.bf16.mxu0 0
        %452 = vmatmul.mubr.bf16.gmra.mxu0 %v394
        %v453 = vpop.f32.mrf.mxu0
        %v454 = vadd.f32 0.0, %v453
        %v455 = vpop.f32.mrf.mxu0
        %v456 = vpop.f32.mrf.mxu0
        %v457 = vadd.f32 0.0, %v456
        %v458 = vpop.f32.mrf.mxu0
        %459 = vmatprep.mubr.bf16.mxu0 0
        %460 = vmatmul.mubr.bf16.gmra.mxu0 %v397
        %v461 = vpop.f32.mrf.mxu0
        %v462 = vadd.f32 0.0, %v461
        %v463 = vpop.f32.mrf.mxu0
        %v464 = vpop.f32.mrf.mxu0
        %v465 = vadd.f32 0.0, %v464
        %v466 = vpop.f32.mrf.mxu0
        %467 = vdwg.mxu0
        %468 = vadd.xlane.f32.xlu0 %v438
        %v469 = vpop.xlane.xlu0 %468
        %470 = vadd.xlane.f32.xlu0 %v441
        %v471 = vpop.xlane.xlu0 %470
        %472 = vadd.xlane.f32.xlu0 %v446
        %v473 = vpop.xlane.xlu0 %472
        %474 = vadd.xlane.f32.xlu0 %v449
        %v475 = vpop.xlane.xlu0 %474
        %476 = vadd.xlane.f32.xlu0 %v454
        %v477 = vpop.xlane.xlu0 %476
        %478 = vadd.xlane.f32.xlu0 %v457
        %v479 = vpop.xlane.xlu0 %478
        %480 = vadd.xlane.f32.xlu0 %v462
        %v481 = vpop.xlane.xlu0 %480
        %482 = vadd.xlane.f32.xlu0 %v465
        %v483 = vpop.xlane.xlu0 %482
        %v484 = vrcp.pop 128.0
        %v485 = vmul.f32 %v469, %v484
        %v486 = vmul.f32 %v471, %v484
        %v487 = vmul.f32 %v473, %v484
        %v488 = vmul.f32 %v475, %v484
        %v489 = vmul.f32 %v477, %v484
        %v490 = vmul.f32 %v479, %v484
        %v491 = vmul.f32 %v481, %v484
        %v492 = vmul.f32 %v483, %v484
        %v493 = vmul.f32 %v438, %v438
        %v494 = vmul.f32 %v441, %v441
        %v495 = vmul.f32 %v446, %v446
        %v496 = vmul.f32 %v449, %v449
        %v497 = vmul.f32 %v454, %v454
        %v498 = vmul.f32 %v457, %v457
        %v499 = vmul.f32 %v462, %v462
        %v500 = vmul.f32 %v465, %v465
        %501 = vadd.xlane.f32.xlu0 %v493
        %v502 = vpop.xlane.xlu0 %501
        %503 = vadd.xlane.f32.xlu0 %v494
        %v504 = vpop.xlane.xlu0 %503
        %505 = vadd.xlane.f32.xlu0 %v495
        %v506 = vpop.xlane.xlu0 %505
        %507 = vadd.xlane.f32.xlu0 %v496
        %v508 = vpop.xlane.xlu0 %507
        %509 = vadd.xlane.f32.xlu0 %v497
        %v510 = vpop.xlane.xlu0 %509
        %511 = vadd.xlane.f32.xlu0 %v498
        %v512 = vpop.xlane.xlu0 %511
        %513 = vadd.xlane.f32.xlu0 %v499
        %v514 = vpop.xlane.xlu0 %513
        %515 = vadd.xlane.f32.xlu0 %v500
        %v516 = vpop.xlane.xlu0 %515
        %v517 = vmul.f32 %v502, %v484
        %v518 = vmul.f32 %v504, %v484
        %v519 = vmul.f32 %v506, %v484
        %v520 = vmul.f32 %v508, %v484
        %v521 = vmul.f32 %v510, %v484
        %v522 = vmul.f32 %v512, %v484
        %v523 = vmul.f32 %v514, %v484
        %v524 = vmul.f32 %v516, %v484
        %v525 = vmul.f32 %v485, %v485
        %v526 = vmul.f32 %v486, %v486
        %v527 = vmul.f32 %v487, %v487
        %v528 = vmul.f32 %v488, %v488
        %v529 = vmul.f32 %v489, %v489
        %v530 = vmul.f32 %v490, %v490
        %v531 = vmul.f32 %v491, %v491
        %v532 = vmul.f32 %v492, %v492
        %v533 = vsub.f32 %v517, %v525
        %v534 = vsub.f32 %v518, %v526
        %v535 = vsub.f32 %v519, %v527
        %v536 = vsub.f32 %v520, %v528
        %v537 = vsub.f32 %v521, %v529
        %v538 = vsub.f32 %v522, %v530
        %v539 = vsub.f32 %v523, %v531
        %v540 = vsub.f32 %v524, %v532
        %v541 = vmax.f32 %v533, 0.0
        %v542 = vmax.f32 %v534, 0.0
        %v543 = vmax.f32 %v535, 0.0
        %v544 = vmax.f32 %v536, 0.0
        %v545 = vmax.f32 %v537, 0.0
        %v546 = vmax.f32 %v538, 0.0
        %v547 = vmax.f32 %v539, 0.0
        %v548 = vmax.f32 %v540, 0.0
        %v549 = vadd.f32 %v541, 1e-05
        %v550 = vadd.f32 %v542, 1e-05
        %v551 = vadd.f32 %v543, 1e-05
        %v552 = vadd.f32 %v544, 1e-05
        %v553 = vadd.f32 %v545, 1e-05
        %v554 = vadd.f32 %v546, 1e-05
        %v555 = vadd.f32 %v547, 1e-05
        %v556 = vadd.f32 %v548, 1e-05
        %v557 = vrsqrt.pop %v549
        %v558 = vrsqrt.pop %v550
        %v559 = vrsqrt.pop %v551
        %v560 = vrsqrt.pop %v552
        %v561 = vrsqrt.pop %v553
        %v562 = vrsqrt.pop %v554
        %v563 = vrsqrt.pop %v555
        %v564 = vrsqrt.pop %v556
        %v565 = vmul.f32 %v365, %v557
        %v566 = vmul.f32 %v366, %v558
        %v567 = vmul.f32 %v367, %v559
        %v568 = vmul.f32 %v368, %v560
        %v569 = vmul.f32 %v369, %v561
        %v570 = vmul.f32 %v370, %v562
        %v571 = vmul.f32 %v371, %v563
        %v572 = vmul.f32 %v372, %v564
        %574 = vset.pattern.permute.xlu0 0
        %575 = vperm.xlu0 %574, %v565
        %v576 = vpop.permute.xlu0 %575
        %579 = vset.pattern.permute.xlu0 0
        %580 = vperm.xlu0 %579, %v566
        %v581 = vpop.permute.xlu0 %580
        %584 = vset.pattern.permute.xlu0 0
        %585 = vperm.xlu0 %584, %v567
        %v586 = vpop.permute.xlu0 %585
        %589 = vset.pattern.permute.xlu0 0
        %590 = vperm.xlu0 %589, %v568
        %v591 = vpop.permute.xlu0 %590
        %594 = vset.pattern.permute.xlu0 0
        %595 = vperm.xlu0 %594, %v569
        %v596 = vpop.permute.xlu0 %595
        %599 = vset.pattern.permute.xlu0 0
        %600 = vperm.xlu0 %599, %v570
        %v601 = vpop.permute.xlu0 %600
        %604 = vset.pattern.permute.xlu0 0
        %605 = vperm.xlu0 %604, %v571
        %v606 = vpop.permute.xlu0 %605
        %609 = vset.pattern.permute.xlu0 0
        %610 = vperm.xlu0 %609, %v572
        %v611 = vpop.permute.xlu0 %610
        %v613 = vmul.f32 %v438, %v576
        %v614 = vmul.f32 %v441, %v581
        %v615 = vmul.f32 %v446, %v586
        %v616 = vmul.f32 %v449, %v591
        %v617 = vmul.f32 %v454, %v596
        %v618 = vmul.f32 %v457, %v601
        %v619 = vmul.f32 %v462, %v606
        %v620 = vmul.f32 %v465, %v611
        %v621 = vmul.f32 %v485, %v565
        %v622 = vmul.f32 %v486, %v566
        %v623 = vmul.f32 %v487, %v567
        %v624 = vmul.f32 %v488, %v568
        %v625 = vmul.f32 %v489, %v569
        %v626 = vmul.f32 %v490, %v570
        %v627 = vmul.f32 %v491, %v571
        %v628 = vmul.f32 %v492, %v572
        %v629 = vsub.f32 %v373, %v621
        %v630 = vsub.f32 %v374, %v622
        %v631 = vsub.f32 %v375, %v623
        %v632 = vsub.f32 %v376, %v624
        %v633 = vsub.f32 %v377, %v625
        %v634 = vsub.f32 %v378, %v626
        %v635 = vsub.f32 %v379, %v627
        %v636 = vsub.f32 %v380, %v628
        %638 = vset.pattern.permute.xlu0 0
        %639 = vperm.xlu0 %638, %v629
        %v640 = vpop.permute.xlu0 %639
        %643 = vset.pattern.permute.xlu0 0
        %644 = vperm.xlu0 %643, %v630
        %v645 = vpop.permute.xlu0 %644
        %648 = vset.pattern.permute.xlu0 0
        %649 = vperm.xlu0 %648, %v631
        %v650 = vpop.permute.xlu0 %649
        %653 = vset.pattern.permute.xlu0 0
        %654 = vperm.xlu0 %653, %v632
        %v655 = vpop.permute.xlu0 %654
        %658 = vset.pattern.permute.xlu0 0
        %659 = vperm.xlu0 %658, %v633
        %v660 = vpop.permute.xlu0 %659
        %663 = vset.pattern.permute.xlu0 0
        %664 = vperm.xlu0 %663, %v634
        %v665 = vpop.permute.xlu0 %664
        %668 = vset.pattern.permute.xlu0 0
        %669 = vperm.xlu0 %668, %v635
        %v670 = vpop.permute.xlu0 %669
        %673 = vset.pattern.permute.xlu0 0
        %674 = vperm.xlu0 %673, %v636
        %v675 = vpop.permute.xlu0 %674
        %v677 = vadd.f32 %v613, %v640
        %v678 = vadd.f32 %v614, %v645
        %v679 = vadd.f32 %v615, %v650
        %v680 = vadd.f32 %v616, %v655
        %v681 = vadd.f32 %v617, %v660
        %v682 = vadd.f32 %v618, %v665
        %v683 = vadd.f32 %v619, %v670
        %v684 = vadd.f32 %v620, %v675
        %vm685 = vcmp.ge.f32.partialorder %v677, 0.0
        %vm686 = vcmp.ge.f32.partialorder %v678, 0.0
        %vm687 = vcmp.ge.f32.partialorder %v679, 0.0
        %vm688 = vcmp.ge.f32.partialorder %v680, 0.0
        %vm689 = vcmp.ge.f32.partialorder %v681, 0.0
        %vm690 = vcmp.ge.f32.partialorder %v682, 0.0
        %vm691 = vcmp.ge.f32.partialorder %v683, 0.0
        %vm692 = vcmp.ge.f32.partialorder %v684, 0.0
        %v693 = vmul.f32 %v677, 0.01
        %v694 = vmul.f32 %v678, 0.01
        %v695 = vmul.f32 %v679, 0.01
        %v696 = vmul.f32 %v680, 0.01
        %v697 = vmul.f32 %v681, 0.01
        %v698 = vmul.f32 %v682, 0.01
        %v699 = vmul.f32 %v683, 0.01
        %v700 = vmul.f32 %v684, 0.01
        %v701 = vsel %vm685, %v677, %v693
        %v702 = vsel %vm686, %v678, %v694
        %v703 = vsel %vm687, %v679, %v695
        %v704 = vsel %vm688, %v680, %v696
        %v705 = vsel %vm689, %v681, %v697
        %v706 = vsel %vm690, %v682, %v698
        %v707 = vsel %vm691, %v683, %v699
        %v708 = vsel %vm692, %v684, %v700
        %v709 = vld [vmem:[%s4] sm:$0xff]
        %v710 = vld [vmem:[%s4 + $0x8] sm:$0xff]
        %v711 = vld [vmem:[%s4 + $0x10] sm:$0xff]
        %v712 = vld [vmem:[%s4 + $0x18] sm:$0xff]
        %v713 = vld [vmem:[%s4 + $0x20] sm:$0xff]
        %v714 = vld [vmem:[%s4 + $0x28] sm:$0xff]
        %v715 = vld [vmem:[%s4 + $0x30] sm:$0xff]
        %v716 = vld [vmem:[%s4 + $0x38] sm:$0xff]
        %v717 = vld [vmem:[%s4 + $0x40] sm:$0xff]
        %v718 = vld [vmem:[%s4 + $0x48] sm:$0xff]
        %v719 = vld [vmem:[%s4 + $0x50] sm:$0xff]
        %v720 = vld [vmem:[%s4 + $0x58] sm:$0xff]
        %v721 = vld [vmem:[%s4 + $0x60] sm:$0xff]
        %v722 = vld [vmem:[%s4 + $0x68] sm:$0xff]
        %v723 = vld [vmem:[%s4 + $0x70] sm:$0xff]
        %v724 = vld [vmem:[%s4 + $0x78] sm:$0xff]
        %v725 = vld [vmem:[%s5] sm:$0xff]
        %v726 = vld [vmem:[%s5 + $0x8] sm:$0xff]
        %v727 = vld [vmem:[%s5 + $0x10] sm:$0xff]
        %v728 = vld [vmem:[%s5 + $0x18] sm:$0xff]
        %v729 = vld [vmem:[%s5 + $0x20] sm:$0xff]
        %v730 = vld [vmem:[%s5 + $0x28] sm:$0xff]
        %v731 = vld [vmem:[%s5 + $0x30] sm:$0xff]
        %v732 = vld [vmem:[%s5 + $0x38] sm:$0xff]
        %v733 = vld [vmem:[%s5 + $0x40] sm:$0xff]
        %v734 = vld [vmem:[%s5 + $0x48] sm:$0xff]
        %v735 = vld [vmem:[%s5 + $0x50] sm:$0xff]
        %v736 = vld [vmem:[%s5 + $0x58] sm:$0xff]
        %v737 = vld [vmem:[%s5 + $0x60] sm:$0xff]
        %v738 = vld [vmem:[%s5 + $0x68] sm:$0xff]
        %v739 = vld [vmem:[%s5 + $0x70] sm:$0xff]
        %v740 = vld [vmem:[%s5 + $0x78] sm:$0xff]
        %v741 = vld [vmem:[%s6] sm:$0xff]
        %v742 = vld [vmem:[%s6 + $0x8] sm:$0xff]
        %v743 = vld [vmem:[%s6 + $0x10] sm:$0xff]
        %v744 = vld [vmem:[%s6 + $0x18] sm:$0xff]
        %v745 = vld [vmem:[%s6 + $0x20] sm:$0xff]
        %v746 = vld [vmem:[%s6 + $0x28] sm:$0xff]
        %v747 = vld [vmem:[%s6 + $0x30] sm:$0xff]
        %v748 = vld [vmem:[%s6 + $0x38] sm:$0xff]
        %v749 = vld [vmem:[%s6 + $0x40] sm:$0xff]
        %v750 = vld [vmem:[%s6 + $0x48] sm:$0xff]
        %v751 = vld [vmem:[%s6 + $0x50] sm:$0xff]
        %v752 = vld [vmem:[%s6 + $0x58] sm:$0xff]
        %v753 = vld [vmem:[%s6 + $0x60] sm:$0xff]
        %v754 = vld [vmem:[%s6 + $0x68] sm:$0xff]
        %v755 = vld [vmem:[%s6 + $0x70] sm:$0xff]
        %v756 = vld [vmem:[%s6 + $0x78] sm:$0xff]
        %v757 = vpack.c.bf16 %v710, %v709
        %v758 = vpack.c.bf16 %v712, %v711
        %v759 = vpack.c.bf16 %v714, %v713
        %v760 = vpack.c.bf16 %v716, %v715
        %v761 = vpack.c.bf16 %v718, %v717
        %v762 = vpack.c.bf16 %v720, %v719
        %v763 = vpack.c.bf16 %v722, %v721
        %v764 = vpack.c.bf16 %v724, %v723
        %v765 = vpack.c.bf16 %v702, %v701
        %v766 = vpack.c.bf16 %v704, %v703
        %v767 = vpack.c.bf16 %v706, %v705
        %v768 = vpack.c.bf16 %v708, %v707
        %vm769 = vcmask 523264
        %v771 = vsel %vm769, %v757, 0
        %v774 = vsel %vm769, %v758, 0
        %v777 = vsel %vm769, %v759, 0
        %v780 = vsel %vm769, %v760, 0
        %v783 = vsel %vm769, %v761, 0
        %v786 = vsel %vm769, %v762, 0
        %v789 = vsel %vm769, %v763, 0
        %v792 = vsel %vm769, %v764, 0
        %794 = vmatprep.subr.bf16.mxu0 0
        %795 = vmatpush1.bf16.msra.mxu0 0
        %796 = vmatprep.subr.bf16.mxu0 0
        %797 = vmatpush1.bf16.msra.mxu0 0
        %798 = vmatprep.subr.bf16.mxu0 0
        %799 = vmatpush1.bf16.msra.mxu0 0
        %800 = vmatprep.subr.bf16.mxu0 0
        %801 = vmatpush1.bf16.msra.mxu0 0
        %802 = vmatprep.subr.bf16.mxu0 0
        %803 = vmatpush1.bf16.msra.mxu0 %v768
        %804 = vmatprep.subr.bf16.mxu0 0
        %805 = vmatpush1.bf16.msra.mxu0 %v767
        %806 = vmatprep.subr.bf16.mxu0 0
        %807 = vmatpush1.bf16.msra.mxu0 %v766
        %808 = vmatprep.subr.bf16.mxu0 0
        %809 = vmatpush1.bf16.msra.mxu0 %v765
        %810 = vmatprep.subr.bf16.mxu0 0
        %811 = vmatpush2.bf16.msra.mxu0 0
        %812 = vmatprep.subr.bf16.mxu0 0
        %813 = vmatpush2.bf16.msra.mxu0 0
        %814 = vmatprep.subr.bf16.mxu0 0
        %815 = vmatpush2.bf16.msra.mxu0 0
        %816 = vmatprep.subr.bf16.mxu0 0
        %817 = vmatpush2.bf16.msra.mxu0 0
        %818 = vmatprep.subr.bf16.mxu0 0
        %819 = vmatpush2.bf16.msra.mxu0 0
        %820 = vmatprep.subr.bf16.mxu0 0
        %821 = vmatpush2.bf16.msra.mxu0 0
        %822 = vmatprep.subr.bf16.mxu0 0
        %823 = vmatpush2.bf16.msra.mxu0 0
        %824 = vmatprep.subr.bf16.mxu0 0
        %825 = vmatpush2.bf16.msra.mxu0 0
        %826 = vmatprep.mubr.bf16.mxu0 0
        %827 = vmatmul.mubr.bf16.gmra.mxu0 %v771
        %v828 = vpop.f32.mrf.mxu0
        %v829 = vadd.f32 0.0, %v828
        %v830 = vpop.f32.mrf.mxu0
        %v831 = vpop.f32.mrf.mxu0
        %v832 = vadd.f32 0.0, %v831
        %v833 = vpop.f32.mrf.mxu0
        %834 = vmatprep.mubr.bf16.mxu0 0
        %835 = vmatmul.mubr.bf16.gmra.mxu0 %v774
        %v836 = vpop.f32.mrf.mxu0
        %v837 = vadd.f32 0.0, %v836
        %v838 = vpop.f32.mrf.mxu0
        %v839 = vpop.f32.mrf.mxu0
        %v840 = vadd.f32 0.0, %v839
        %v841 = vpop.f32.mrf.mxu0
        %842 = vmatprep.mubr.bf16.mxu0 0
        %843 = vmatmul.mubr.bf16.gmra.mxu0 %v777
        %v844 = vpop.f32.mrf.mxu0
        %v845 = vadd.f32 0.0, %v844
        %v846 = vpop.f32.mrf.mxu0
        %v847 = vpop.f32.mrf.mxu0
        %v848 = vadd.f32 0.0, %v847
        %v849 = vpop.f32.mrf.mxu0
        %850 = vmatprep.mubr.bf16.mxu0 0
        %851 = vmatmul.mubr.bf16.gmra.mxu0 %v780
        %v852 = vpop.f32.mrf.mxu0
        %v853 = vadd.f32 0.0, %v852
        %v854 = vpop.f32.mrf.mxu0
        %v855 = vpop.f32.mrf.mxu0
        %v856 = vadd.f32 0.0, %v855
        %v857 = vpop.f32.mrf.mxu0
        %858 = vmatprep.mubr.bf16.mxu0 0
        %859 = vmatmul.mubr.bf16.gmra.mxu0 %v783
        %v860 = vpop.f32.mrf.mxu0
        %v861 = vadd.f32 0.0, %v860
        %v862 = vpop.f32.mrf.mxu0
        %v863 = vpop.f32.mrf.mxu0
        %v864 = vadd.f32 0.0, %v863
        %v865 = vpop.f32.mrf.mxu0
        %866 = vmatprep.mubr.bf16.mxu0 0
        %867 = vmatmul.mubr.bf16.gmra.mxu0 %v786
        %v868 = vpop.f32.mrf.mxu0
        %v869 = vadd.f32 0.0, %v868
        %v870 = vpop.f32.mrf.mxu0
        %v871 = vpop.f32.mrf.mxu0
        %v872 = vadd.f32 0.0, %v871
        %v873 = vpop.f32.mrf.mxu0
        %874 = vmatprep.mubr.bf16.mxu0 0
        %875 = vmatmul.mubr.bf16.gmra.mxu0 %v789
        %v876 = vpop.f32.mrf.mxu0
        %v877 = vadd.f32 0.0, %v876
        %v878 = vpop.f32.mrf.mxu0
        %v879 = vpop.f32.mrf.mxu0
        %v880 = vadd.f32 0.0, %v879
        %v881 = vpop.f32.mrf.mxu0
        %882 = vmatprep.mubr.bf16.mxu0 0
        %883 = vmatmul.mubr.bf16.gmra.mxu0 %v792
        %v884 = vpop.f32.mrf.mxu0
        %v885 = vadd.f32 0.0, %v884
        %v886 = vpop.f32.mrf.mxu0
        %v887 = vpop.f32.mrf.mxu0
        %v888 = vadd.f32 0.0, %v887
        %v889 = vpop.f32.mrf.mxu0
        %890 = vdwg.mxu0
        %891 = vadd.xlane.f32.xlu0 %v829
        %v892 = vpop.xlane.xlu0 %891
        %893 = vadd.xlane.f32.xlu0 %v832
        %v894 = vpop.xlane.xlu0 %893
        %895 = vadd.xlane.f32.xlu0 %v837
        %v896 = vpop.xlane.xlu0 %895
        %897 = vadd.xlane.f32.xlu0 %v840
        %v898 = vpop.xlane.xlu0 %897
        %899 = vadd.xlane.f32.xlu0 %v845
        %v900 = vpop.xlane.xlu0 %899
        %901 = vadd.xlane.f32.xlu0 %v848
        %v902 = vpop.xlane.xlu0 %901
        %903 = vadd.xlane.f32.xlu0 %v853
        %v904 = vpop.xlane.xlu0 %903
        %905 = vadd.xlane.f32.xlu0 %v856
        %v906 = vpop.xlane.xlu0 %905
        %907 = vadd.xlane.f32.xlu0 %v861
        %v908 = vpop.xlane.xlu0 %907
        %909 = vadd.xlane.f32.xlu0 %v864
        %v910 = vpop.xlane.xlu0 %909
        %911 = vadd.xlane.f32.xlu0 %v869
        %v912 = vpop.xlane.xlu0 %911
        %913 = vadd.xlane.f32.xlu0 %v872
        %v914 = vpop.xlane.xlu0 %913
        %915 = vadd.xlane.f32.xlu0 %v877
        %v916 = vpop.xlane.xlu0 %915
        %917 = vadd.xlane.f32.xlu0 %v880
        %v918 = vpop.xlane.xlu0 %917
        %919 = vadd.xlane.f32.xlu0 %v885
        %v920 = vpop.xlane.xlu0 %919
        %921 = vadd.xlane.f32.xlu0 %v888
        %v922 = vpop.xlane.xlu0 %921
        %v923 = vmul.f32 %v892, %v484
        %v924 = vmul.f32 %v894, %v484
        %v925 = vmul.f32 %v896, %v484
        %v926 = vmul.f32 %v898, %v484
        %v927 = vmul.f32 %v900, %v484
        %v928 = vmul.f32 %v902, %v484
        %v929 = vmul.f32 %v904, %v484
        %v930 = vmul.f32 %v906, %v484
        %v931 = vmul.f32 %v908, %v484
        %v932 = vmul.f32 %v910, %v484
        %v933 = vmul.f32 %v912, %v484
        %v934 = vmul.f32 %v914, %v484
        %v935 = vmul.f32 %v916, %v484
        %v936 = vmul.f32 %v918, %v484
        %v937 = vmul.f32 %v920, %v484
        %v938 = vmul.f32 %v922, %v484
        %v939 = vmul.f32 %v829, %v829
        %v940 = vmul.f32 %v832, %v832
        %v941 = vmul.f32 %v837, %v837
        %v942 = vmul.f32 %v840, %v840
        %v943 = vmul.f32 %v845, %v845
        %v944 = vmul.f32 %v848, %v848
        %v945 = vmul.f32 %v853, %v853
        %v946 = vmul.f32 %v856, %v856
        %v947 = vmul.f32 %v861, %v861
        %v948 = vmul.f32 %v864, %v864
        %v949 = vmul.f32 %v869, %v869
        %v950 = vmul.f32 %v872, %v872
        %v951 = vmul.f32 %v877, %v877
        %v952 = vmul.f32 %v880, %v880
        %v953 = vmul.f32 %v885, %v885
        %v954 = vmul.f32 %v888, %v888
        %955 = vadd.xlane.f32.xlu0 %v939
        %v956 = vpop.xlane.xlu0 %955
        %957 = vadd.xlane.f32.xlu0 %v940
        %v958 = vpop.xlane.xlu0 %957
        %959 = vadd.xlane.f32.xlu0 %v941
        %v960 = vpop.xlane.xlu0 %959
        %961 = vadd.xlane.f32.xlu0 %v942
        %v962 = vpop.xlane.xlu0 %961
        %963 = vadd.xlane.f32.xlu0 %v943
        %v964 = vpop.xlane.xlu0 %963
        %965 = vadd.xlane.f32.xlu0 %v944
        %v966 = vpop.xlane.xlu0 %965
        %967 = vadd.xlane.f32.xlu0 %v945
        %v968 = vpop.xlane.xlu0 %967
        %969 = vadd.xlane.f32.xlu0 %v946
        %v970 = vpop.xlane.xlu0 %969
        %971 = vadd.xlane.f32.xlu0 %v947
        %v972 = vpop.xlane.xlu0 %971
        %973 = vadd.xlane.f32.xlu0 %v948
        %v974 = vpop.xlane.xlu0 %973
        %975 = vadd.xlane.f32.xlu0 %v949
        %v976 = vpop.xlane.xlu0 %975
        %977 = vadd.xlane.f32.xlu0 %v950
        %v978 = vpop.xlane.xlu0 %977
        %979 = vadd.xlane.f32.xlu0 %v951
        %v980 = vpop.xlane.xlu0 %979
        %981 = vadd.xlane.f32.xlu0 %v952
        %v982 = vpop.xlane.xlu0 %981
        %983 = vadd.xlane.f32.xlu0 %v953
        %v984 = vpop.xlane.xlu0 %983
        %985 = vadd.xlane.f32.xlu0 %v954
        %v986 = vpop.xlane.xlu0 %985
        %v987 = vmul.f32 %v956, %v484
        %v988 = vmul.f32 %v958, %v484
        %v989 = vmul.f32 %v960, %v484
        %v990 = vmul.f32 %v962, %v484
        %v991 = vmul.f32 %v964, %v484
        %v992 = vmul.f32 %v966, %v484
        %v993 = vmul.f32 %v968, %v484
        %v994 = vmul.f32 %v970, %v484
        %v995 = vmul.f32 %v972, %v484
        %v996 = vmul.f32 %v974, %v484
        %v997 = vmul.f32 %v976, %v484
        %v998 = vmul.f32 %v978, %v484
        %v999 = vmul.f32 %v980, %v484
        %v1000 = vmul.f32 %v982, %v484
        %v1001 = vmul.f32 %v984, %v484
        %v1002 = vmul.f32 %v986, %v484
        %v1003 = vmul.f32 %v923, %v923
        %v1004 = vmul.f32 %v924, %v924
        %v1005 = vmul.f32 %v925, %v925
        %v1006 = vmul.f32 %v926, %v926
        %v1007 = vmul.f32 %v927, %v927
        %v1008 = vmul.f32 %v928, %v928
        %v1009 = vmul.f32 %v929, %v929
        %v1010 = vmul.f32 %v930, %v930
        %v1011 = vmul.f32 %v931, %v931
        %v1012 = vmul.f32 %v932, %v932
        %v1013 = vmul.f32 %v933, %v933
        %v1014 = vmul.f32 %v934, %v934
        %v1015 = vmul.f32 %v935, %v935
        %v1016 = vmul.f32 %v936, %v936
        %v1017 = vmul.f32 %v937, %v937
        %v1018 = vmul.f32 %v938, %v938
        %v1019 = vsub.f32 %v987, %v1003
        %v1020 = vsub.f32 %v988, %v1004
        %v1021 = vsub.f32 %v989, %v1005
        %v1022 = vsub.f32 %v990, %v1006
        %v1023 = vsub.f32 %v991, %v1007
        %v1024 = vsub.f32 %v992, %v1008
        %v1025 = vsub.f32 %v993, %v1009
        %v1026 = vsub.f32 %v994, %v1010
        %v1027 = vsub.f32 %v995, %v1011
        %v1028 = vsub.f32 %v996, %v1012
        %v1029 = vsub.f32 %v997, %v1013
        %v1030 = vsub.f32 %v998, %v1014
        %v1031 = vsub.f32 %v999, %v1015
        %v1032 = vsub.f32 %v1000, %v1016
        %v1033 = vsub.f32 %v1001, %v1017
        %v1034 = vsub.f32 %v1002, %v1018
        %v1035 = vmax.f32 %v1019, 0.0
        %v1036 = vmax.f32 %v1020, 0.0
        %v1037 = vmax.f32 %v1021, 0.0
        %v1038 = vmax.f32 %v1022, 0.0
        %v1039 = vmax.f32 %v1023, 0.0
        %v1040 = vmax.f32 %v1024, 0.0
        %v1041 = vmax.f32 %v1025, 0.0
        %v1042 = vmax.f32 %v1026, 0.0
        %v1043 = vmax.f32 %v1027, 0.0
        %v1044 = vmax.f32 %v1028, 0.0
        %v1045 = vmax.f32 %v1029, 0.0
        %v1046 = vmax.f32 %v1030, 0.0
        %v1047 = vmax.f32 %v1031, 0.0
        %v1048 = vmax.f32 %v1032, 0.0
        %v1049 = vmax.f32 %v1033, 0.0
        %v1050 = vmax.f32 %v1034, 0.0
        %v1051 = vadd.f32 %v1035, 1e-05
        %v1052 = vadd.f32 %v1036, 1e-05
        %v1053 = vadd.f32 %v1037, 1e-05
        %v1054 = vadd.f32 %v1038, 1e-05
        %v1055 = vadd.f32 %v1039, 1e-05
        %v1056 = vadd.f32 %v1040, 1e-05
        %v1057 = vadd.f32 %v1041, 1e-05
        %v1058 = vadd.f32 %v1042, 1e-05
        %v1059 = vadd.f32 %v1043, 1e-05
        %v1060 = vadd.f32 %v1044, 1e-05
        %v1061 = vadd.f32 %v1045, 1e-05
        %v1062 = vadd.f32 %v1046, 1e-05
        %v1063 = vadd.f32 %v1047, 1e-05
        %v1064 = vadd.f32 %v1048, 1e-05
        %v1065 = vadd.f32 %v1049, 1e-05
        %v1066 = vadd.f32 %v1050, 1e-05
        %v1067 = vrsqrt.pop %v1051
        %v1068 = vrsqrt.pop %v1052
        %v1069 = vrsqrt.pop %v1053
        %v1070 = vrsqrt.pop %v1054
        %v1071 = vrsqrt.pop %v1055
        %v1072 = vrsqrt.pop %v1056
        %v1073 = vrsqrt.pop %v1057
        %v1074 = vrsqrt.pop %v1058
        %v1075 = vrsqrt.pop %v1059
        %v1076 = vrsqrt.pop %v1060
        %v1077 = vrsqrt.pop %v1061
        %v1078 = vrsqrt.pop %v1062
        %v1079 = vrsqrt.pop %v1063
        %v1080 = vrsqrt.pop %v1064
        %v1081 = vrsqrt.pop %v1065
        %v1082 = vrsqrt.pop %v1066
        %v1083 = vmul.f32 %v725, %v1067
        %v1084 = vmul.f32 %v726, %v1068
        %v1085 = vmul.f32 %v727, %v1069
        %v1086 = vmul.f32 %v728, %v1070
        %v1087 = vmul.f32 %v729, %v1071
        %v1088 = vmul.f32 %v730, %v1072
        %v1089 = vmul.f32 %v731, %v1073
        %v1090 = vmul.f32 %v732, %v1074
        %v1091 = vmul.f32 %v733, %v1075
        %v1092 = vmul.f32 %v734, %v1076
        %v1093 = vmul.f32 %v735, %v1077
        %v1094 = vmul.f32 %v736, %v1078
        %v1095 = vmul.f32 %v737, %v1079
        %v1096 = vmul.f32 %v738, %v1080
        %v1097 = vmul.f32 %v739, %v1081
        %v1098 = vmul.f32 %v740, %v1082
        %1100 = vset.pattern.permute.xlu0 0
        %1101 = vperm.xlu0 %1100, %v1083
        %v1102 = vpop.permute.xlu0 %1101
        %1105 = vset.pattern.permute.xlu0 0
        %1106 = vperm.xlu0 %1105, %v1084
        %v1107 = vpop.permute.xlu0 %1106
        %1110 = vset.pattern.permute.xlu0 0
        %1111 = vperm.xlu0 %1110, %v1085
        %v1112 = vpop.permute.xlu0 %1111
        %1115 = vset.pattern.permute.xlu0 0
        %1116 = vperm.xlu0 %1115, %v1086
        %v1117 = vpop.permute.xlu0 %1116
        %1120 = vset.pattern.permute.xlu0 0
        %1121 = vperm.xlu0 %1120, %v1087
        %v1122 = vpop.permute.xlu0 %1121
        %1125 = vset.pattern.permute.xlu0 0
        %1126 = vperm.xlu0 %1125, %v1088
        %v1127 = vpop.permute.xlu0 %1126
        %1130 = vset.pattern.permute.xlu0 0
        %1131 = vperm.xlu0 %1130, %v1089
        %v1132 = vpop.permute.xlu0 %1131
        %1135 = vset.pattern.permute.xlu0 0
        %1136 = vperm.xlu0 %1135, %v1090
        %v1137 = vpop.permute.xlu0 %1136
        %1140 = vset.pattern.permute.xlu0 0
        %1141 = vperm.xlu0 %1140, %v1091
        %v1142 = vpop.permute.xlu0 %1141
        %1145 = vset.pattern.permute.xlu0 0
        %1146 = vperm.xlu0 %1145, %v1092
        %v1147 = vpop.permute.xlu0 %1146
        %1150 = vset.pattern.permute.xlu0 0
        %1151 = vperm.xlu0 %1150, %v1093
        %v1152 = vpop.permute.xlu0 %1151
        %1155 = vset.pattern.permute.xlu0 0
        %1156 = vperm.xlu0 %1155, %v1094
        %v1157 = vpop.permute.xlu0 %1156
        %1160 = vset.pattern.permute.xlu0 0
        %1161 = vperm.xlu0 %1160, %v1095
        %v1162 = vpop.permute.xlu0 %1161
        %1165 = vset.pattern.permute.xlu0 0
        %1166 = vperm.xlu0 %1165, %v1096
        %v1167 = vpop.permute.xlu0 %1166
        %1170 = vset.pattern.permute.xlu0 0
        %1171 = vperm.xlu0 %1170, %v1097
        %v1172 = vpop.permute.xlu0 %1171
        %1175 = vset.pattern.permute.xlu0 0
        %1176 = vperm.xlu0 %1175, %v1098
        %v1177 = vpop.permute.xlu0 %1176
        %v1179 = vmul.f32 %v829, %v1102
        %v1180 = vmul.f32 %v832, %v1107
        %v1181 = vmul.f32 %v837, %v1112
        %v1182 = vmul.f32 %v840, %v1117
        %v1183 = vmul.f32 %v845, %v1122
        %v1184 = vmul.f32 %v848, %v1127
        %v1185 = vmul.f32 %v853, %v1132
        %v1186 = vmul.f32 %v856, %v1137
        %v1187 = vmul.f32 %v861, %v1142
        %v1188 = vmul.f32 %v864, %v1147
        %v1189 = vmul.f32 %v869, %v1152
        %v1190 = vmul.f32 %v872, %v1157
        %v1191 = vmul.f32 %v877, %v1162
        %v1192 = vmul.f32 %v880, %v1167
        %v1193 = vmul.f32 %v885, %v1172
        %v1194 = vmul.f32 %v888, %v1177
        %v1195 = vmul.f32 %v923, %v1083
        %v1196 = vmul.f32 %v924, %v1084
        %v1197 = vmul.f32 %v925, %v1085
        %v1198 = vmul.f32 %v926, %v1086
        %v1199 = vmul.f32 %v927, %v1087
        %v1200 = vmul.f32 %v928, %v1088
        %v1201 = vmul.f32 %v929, %v1089
        %v1202 = vmul.f32 %v930, %v1090
        %v1203 = vmul.f32 %v931, %v1091
        %v1204 = vmul.f32 %v932, %v1092
        %v1205 = vmul.f32 %v933, %v1093
        %v1206 = vmul.f32 %v934, %v1094
        %v1207 = vmul.f32 %v935, %v1095
        %v1208 = vmul.f32 %v936, %v1096
        %v1209 = vmul.f32 %v937, %v1097
        %v1210 = vmul.f32 %v938, %v1098
        %v1211 = vsub.f32 %v741, %v1195
        %v1212 = vsub.f32 %v742, %v1196
        %v1213 = vsub.f32 %v743, %v1197
        %v1214 = vsub.f32 %v744, %v1198
        %v1215 = vsub.f32 %v745, %v1199
        %v1216 = vsub.f32 %v746, %v1200
        %v1217 = vsub.f32 %v747, %v1201
        %v1218 = vsub.f32 %v748, %v1202
        %v1219 = vsub.f32 %v749, %v1203
        %v1220 = vsub.f32 %v750, %v1204
        %v1221 = vsub.f32 %v751, %v1205
        %v1222 = vsub.f32 %v752, %v1206
        %v1223 = vsub.f32 %v753, %v1207
        %v1224 = vsub.f32 %v754, %v1208
        %v1225 = vsub.f32 %v755, %v1209
        %v1226 = vsub.f32 %v756, %v1210
        %1228 = vset.pattern.permute.xlu0 0
        %1229 = vperm.xlu0 %1228, %v1211
        %v1230 = vpop.permute.xlu0 %1229
        %1233 = vset.pattern.permute.xlu0 0
        %1234 = vperm.xlu0 %1233, %v1212
        %v1235 = vpop.permute.xlu0 %1234
        %1238 = vset.pattern.permute.xlu0 0
        %1239 = vperm.xlu0 %1238, %v1213
        %v1240 = vpop.permute.xlu0 %1239
        %1243 = vset.pattern.permute.xlu0 0
        %1244 = vperm.xlu0 %1243, %v1214
        %v1245 = vpop.permute.xlu0 %1244
        %1248 = vset.pattern.permute.xlu0 0
        %1249 = vperm.xlu0 %1248, %v1215
        %v1250 = vpop.permute.xlu0 %1249
        %1253 = vset.pattern.permute.xlu0 0
        %1254 = vperm.xlu0 %1253, %v1216
        %v1255 = vpop.permute.xlu0 %1254
        %1258 = vset.pattern.permute.xlu0 0
        %1259 = vperm.xlu0 %1258, %v1217
        %v1260 = vpop.permute.xlu0 %1259
        %1263 = vset.pattern.permute.xlu0 0
        %1264 = vperm.xlu0 %1263, %v1218
        %v1265 = vpop.permute.xlu0 %1264
        %1268 = vset.pattern.permute.xlu0 0
        %1269 = vperm.xlu0 %1268, %v1219
        %v1270 = vpop.permute.xlu0 %1269
        %1273 = vset.pattern.permute.xlu0 0
        %1274 = vperm.xlu0 %1273, %v1220
        %v1275 = vpop.permute.xlu0 %1274
        %1278 = vset.pattern.permute.xlu0 0
        %1279 = vperm.xlu0 %1278, %v1221
        %v1280 = vpop.permute.xlu0 %1279
        %1283 = vset.pattern.permute.xlu0 0
        %1284 = vperm.xlu0 %1283, %v1222
        %v1285 = vpop.permute.xlu0 %1284
        %1288 = vset.pattern.permute.xlu0 0
        %1289 = vperm.xlu0 %1288, %v1223
        %v1290 = vpop.permute.xlu0 %1289
        %1293 = vset.pattern.permute.xlu0 0
        %1294 = vperm.xlu0 %1293, %v1224
        %v1295 = vpop.permute.xlu0 %1294
        %1298 = vset.pattern.permute.xlu0 0
        %1299 = vperm.xlu0 %1298, %v1225
        %v1300 = vpop.permute.xlu0 %1299
        %1303 = vset.pattern.permute.xlu0 0
        %1304 = vperm.xlu0 %1303, %v1226
        %v1305 = vpop.permute.xlu0 %1304
        %v1307 = vadd.f32 %v1179, %v1230
        %v1308 = vadd.f32 %v1180, %v1235
        %v1309 = vadd.f32 %v1181, %v1240
        %v1310 = vadd.f32 %v1182, %v1245
        %v1311 = vadd.f32 %v1183, %v1250
        %v1312 = vadd.f32 %v1184, %v1255
        %v1313 = vadd.f32 %v1185, %v1260
        %v1314 = vadd.f32 %v1186, %v1265
        %v1315 = vadd.f32 %v1187, %v1270
        %v1316 = vadd.f32 %v1188, %v1275
        %v1317 = vadd.f32 %v1189, %v1280
        %v1318 = vadd.f32 %v1190, %v1285
        %v1319 = vadd.f32 %v1191, %v1290
        %v1320 = vadd.f32 %v1192, %v1295
        %v1321 = vadd.f32 %v1193, %v1300
        %v1322 = vadd.f32 %v1194, %v1305
        %vm1323 = vcmp.ge.f32.partialorder %v1307, 0.0
        %vm1324 = vcmp.ge.f32.partialorder %v1308, 0.0
        %vm1325 = vcmp.ge.f32.partialorder %v1309, 0.0
        %vm1326 = vcmp.ge.f32.partialorder %v1310, 0.0
        %vm1327 = vcmp.ge.f32.partialorder %v1311, 0.0
        %vm1328 = vcmp.ge.f32.partialorder %v1312, 0.0
        %vm1329 = vcmp.ge.f32.partialorder %v1313, 0.0
        %vm1330 = vcmp.ge.f32.partialorder %v1314, 0.0
        %vm1331 = vcmp.ge.f32.partialorder %v1315, 0.0
        %vm1332 = vcmp.ge.f32.partialorder %v1316, 0.0
        %vm1333 = vcmp.ge.f32.partialorder %v1317, 0.0
        %vm1334 = vcmp.ge.f32.partialorder %v1318, 0.0
        %vm1335 = vcmp.ge.f32.partialorder %v1319, 0.0
        %vm1336 = vcmp.ge.f32.partialorder %v1320, 0.0
        %vm1337 = vcmp.ge.f32.partialorder %v1321, 0.0
        %vm1338 = vcmp.ge.f32.partialorder %v1322, 0.0
        %v1339 = vmul.f32 %v1307, 0.01
        %v1340 = vmul.f32 %v1308, 0.01
        %v1341 = vmul.f32 %v1309, 0.01
        %v1342 = vmul.f32 %v1310, 0.01
        %v1343 = vmul.f32 %v1311, 0.01
        %v1344 = vmul.f32 %v1312, 0.01
        %v1345 = vmul.f32 %v1313, 0.01
        %v1346 = vmul.f32 %v1314, 0.01
        %v1347 = vmul.f32 %v1315, 0.01
        %v1348 = vmul.f32 %v1316, 0.01
        %v1349 = vmul.f32 %v1317, 0.01
        %v1350 = vmul.f32 %v1318, 0.01
        %v1351 = vmul.f32 %v1319, 0.01
        %v1352 = vmul.f32 %v1320, 0.01
        %v1353 = vmul.f32 %v1321, 0.01
        %v1354 = vmul.f32 %v1322, 0.01
        %v1355 = vsel %vm1323, %v1307, %v1339
        %v1356 = vsel %vm1324, %v1308, %v1340
        %v1357 = vsel %vm1325, %v1309, %v1341
        %v1358 = vsel %vm1326, %v1310, %v1342
        %v1359 = vsel %vm1327, %v1311, %v1343
        %v1360 = vsel %vm1328, %v1312, %v1344
        %v1361 = vsel %vm1329, %v1313, %v1345
        %v1362 = vsel %vm1330, %v1314, %v1346
        %v1363 = vsel %vm1331, %v1315, %v1347
        %v1364 = vsel %vm1332, %v1316, %v1348
        %v1365 = vsel %vm1333, %v1317, %v1349
        %v1366 = vsel %vm1334, %v1318, %v1350
        %v1367 = vsel %vm1335, %v1319, %v1351
        %v1368 = vsel %vm1336, %v1320, %v1352
        %v1369 = vsel %vm1337, %v1321, %v1353
        %v1370 = vsel %vm1338, %v1322, %v1354
        %v1371 = vld [vmem:[%s7] sm:$0xff]
        %v1372 = vld [vmem:[%s7 + $0x8] sm:$0xff]
        %v1373 = vld [vmem:[%s7 + $0x10] sm:$0xff]
        %v1374 = vld [vmem:[%s7 + $0x18] sm:$0xff]
        %v1375 = vld [vmem:[%s7 + $0x20] sm:$0xff]
        %v1376 = vld [vmem:[%s7 + $0x28] sm:$0xff]
        %v1377 = vld [vmem:[%s7 + $0x30] sm:$0xff]
        %v1378 = vld [vmem:[%s7 + $0x38] sm:$0xff]
        %v1379 = vld [vmem:[%s7 + $0x40] sm:$0xff]
        %v1380 = vld [vmem:[%s7 + $0x48] sm:$0xff]
        %v1381 = vld [vmem:[%s7 + $0x50] sm:$0xff]
        %v1382 = vld [vmem:[%s7 + $0x58] sm:$0xff]
        %v1383 = vld [vmem:[%s7 + $0x60] sm:$0xff]
        %v1384 = vld [vmem:[%s7 + $0x68] sm:$0xff]
        %v1385 = vld [vmem:[%s7 + $0x70] sm:$0xff]
        %v1386 = vld [vmem:[%s7 + $0x78] sm:$0xff]
        %v1387 = vld [vmem:[%s7 + $0x80] sm:$0xff]
        %v1388 = vld [vmem:[%s7 + $0x88] sm:$0xff]
        %v1389 = vld [vmem:[%s7 + $0x90] sm:$0xff]
        %v1390 = vld [vmem:[%s7 + $0x98] sm:$0xff]
        %v1391 = vld [vmem:[%s7 + $0xa0] sm:$0xff]
        %v1392 = vld [vmem:[%s7 + $0xa8] sm:$0xff]
        %v1393 = vld [vmem:[%s7 + $0xb0] sm:$0xff]
        %v1394 = vld [vmem:[%s7 + $0xb8] sm:$0xff]
        %v1395 = vld [vmem:[%s7 + $0xc0] sm:$0xff]
        %v1396 = vld [vmem:[%s7 + $0xc8] sm:$0xff]
        %v1397 = vld [vmem:[%s7 + $0xd0] sm:$0xff]
        %v1398 = vld [vmem:[%s7 + $0xd8] sm:$0xff]
        %v1399 = vld [vmem:[%s7 + $0xe0] sm:$0xff]
        %v1400 = vld [vmem:[%s7 + $0xe8] sm:$0xff]
        %v1401 = vld [vmem:[%s7 + $0xf0] sm:$0xff]
        %v1402 = vld [vmem:[%s7 + $0xf8] sm:$0xff]
        %v1403 = vld [vmem:[%s7 + $0x100] sm:$0xff]
        %v1404 = vld [vmem:[%s7 + $0x108] sm:$0xff]
        %v1405 = vld [vmem:[%s7 + $0x110] sm:$0xff]
        %v1406 = vld [vmem:[%s7 + $0x118] sm:$0xff]
        %v1407 = vld [vmem:[%s7 + $0x120] sm:$0xff]
        %v1408 = vld [vmem:[%s7 + $0x128] sm:$0xff]
        %v1409 = vld [vmem:[%s7 + $0x130] sm:$0xff]
        %v1410 = vld [vmem:[%s7 + $0x138] sm:$0xff]
        %v1411 = vld [vmem:[%s7 + $0x140] sm:$0xff]
        %v1412 = vld [vmem:[%s7 + $0x148] sm:$0xff]
        %v1413 = vld [vmem:[%s7 + $0x150] sm:$0xff]
        %v1414 = vld [vmem:[%s7 + $0x158] sm:$0xff]
        %v1415 = vld [vmem:[%s7 + $0x160] sm:$0xff]
        %v1416 = vld [vmem:[%s7 + $0x168] sm:$0xff]
        %v1417 = vld [vmem:[%s7 + $0x170] sm:$0xff]
        %v1418 = vld [vmem:[%s7 + $0x178] sm:$0xff]
        %v1419 = vld [vmem:[%s7 + $0x180] sm:$0xff]
        %v1420 = vld [vmem:[%s7 + $0x188] sm:$0xff]
        %v1421 = vld [vmem:[%s7 + $0x190] sm:$0xff]
        %v1422 = vld [vmem:[%s7 + $0x198] sm:$0xff]
        %v1423 = vld [vmem:[%s7 + $0x1a0] sm:$0xff]
        %v1424 = vld [vmem:[%s7 + $0x1a8] sm:$0xff]
        %v1425 = vld [vmem:[%s7 + $0x1b0] sm:$0xff]
        %v1426 = vld [vmem:[%s7 + $0x1b8] sm:$0xff]
        %v1427 = vld [vmem:[%s7 + $0x1c0] sm:$0xff]
        %v1428 = vld [vmem:[%s7 + $0x1c8] sm:$0xff]
        %v1429 = vld [vmem:[%s7 + $0x1d0] sm:$0xff]
        %v1430 = vld [vmem:[%s7 + $0x1d8] sm:$0xff]
        %v1431 = vld [vmem:[%s7 + $0x1e0] sm:$0xff]
        %v1432 = vld [vmem:[%s7 + $0x1e8] sm:$0xff]
        %v1433 = vld [vmem:[%s7 + $0x1f0] sm:$0xff]
        %v1434 = vld [vmem:[%s7 + $0x1f8] sm:$0xff]
        %v1435 = vld [vmem:[%s7 + $0x200] sm:$0xff]
        %v1436 = vld [vmem:[%s7 + $0x208] sm:$0xff]
        %v1437 = vld [vmem:[%s7 + $0x210] sm:$0xff]
        %v1438 = vld [vmem:[%s7 + $0x218] sm:$0xff]
        %v1439 = vld [vmem:[%s7 + $0x220] sm:$0xff]
        %v1440 = vld [vmem:[%s7 + $0x228] sm:$0xff]
        %v1441 = vld [vmem:[%s7 + $0x230] sm:$0xff]
        %v1442 = vld [vmem:[%s7 + $0x238] sm:$0xff]
        %v1443 = vld [vmem:[%s7 + $0x240] sm:$0xff]
        %v1444 = vld [vmem:[%s7 + $0x248] sm:$0xff]
        %v1445 = vld [vmem:[%s7 + $0x250] sm:$0xff]
        %v1446 = vld [vmem:[%s7 + $0x258] sm:$0xff]
        %v1447 = vld [vmem:[%s7 + $0x260] sm:$0xff]
        %v1448 = vld [vmem:[%s7 + $0x268] sm:$0xff]
        %v1449 = vld [vmem:[%s7 + $0x270] sm:$0xff]
        %v1450 = vld [vmem:[%s7 + $0x278] sm:$0xff]
        %v1451 = vld [vmem:[%s7 + $0x280] sm:$0xff]
        %v1452 = vld [vmem:[%s7 + $0x288] sm:$0xff]
        %v1453 = vld [vmem:[%s7 + $0x290] sm:$0xff]
        %v1454 = vld [vmem:[%s7 + $0x298] sm:$0xff]
        %v1455 = vld [vmem:[%s7 + $0x2a0] sm:$0xff]
        %v1456 = vld [vmem:[%s7 + $0x2a8] sm:$0xff]
        %v1457 = vld [vmem:[%s7 + $0x2b0] sm:$0xff]
        %v1458 = vld [vmem:[%s7 + $0x2b8] sm:$0xff]
        %v1459 = vld [vmem:[%s7 + $0x2c0] sm:$0xff]
        %v1460 = vld [vmem:[%s7 + $0x2c8] sm:$0xff]
        %v1461 = vld [vmem:[%s7 + $0x2d0] sm:$0xff]
        %v1462 = vld [vmem:[%s7 + $0x2d8] sm:$0xff]
        %v1463 = vld [vmem:[%s7 + $0x2e0] sm:$0xff]
        %v1464 = vld [vmem:[%s7 + $0x2e8] sm:$0xff]
        %v1465 = vld [vmem:[%s7 + $0x2f0] sm:$0xff]
        %v1466 = vld [vmem:[%s7 + $0x2f8] sm:$0xff]
        %v1467 = vld [vmem:[%s7 + $0x300] sm:$0xff]
        %v1468 = vld [vmem:[%s7 + $0x308] sm:$0xff]
        %v1469 = vld [vmem:[%s7 + $0x310] sm:$0xff]
        %v1470 = vld [vmem:[%s7 + $0x318] sm:$0xff]
        %v1471 = vld [vmem:[%s7 + $0x320] sm:$0xff]
        %v1472 = vld [vmem:[%s7 + $0x328] sm:$0xff]
        %v1473 = vld [vmem:[%s7 + $0x330] sm:$0xff]
        %v1474 = vld [vmem:[%s7 + $0x338] sm:$0xff]
        %v1475 = vld [vmem:[%s7 + $0x340] sm:$0xff]
        %v1476 = vld [vmem:[%s7 + $0x348] sm:$0xff]
        %v1477 = vld [vmem:[%s7 + $0x350] sm:$0xff]
        %v1478 = vld [vmem:[%s7 + $0x358] sm:$0xff]
        %v1479 = vld [vmem:[%s7 + $0x360] sm:$0xff]
        %v1480 = vld [vmem:[%s7 + $0x368] sm:$0xff]
        %v1481 = vld [vmem:[%s7 + $0x370] sm:$0xff]
        %v1482 = vld [vmem:[%s7 + $0x378] sm:$0xff]
        %v1483 = vld [vmem:[%s7 + $0x380] sm:$0xff]
        %v1484 = vld [vmem:[%s7 + $0x388] sm:$0xff]
        %v1485 = vld [vmem:[%s7 + $0x390] sm:$0xff]
        %v1486 = vld [vmem:[%s7 + $0x398] sm:$0xff]
        %v1487 = vld [vmem:[%s7 + $0x3a0] sm:$0xff]
        %v1488 = vld [vmem:[%s7 + $0x3a8] sm:$0xff]
        %v1489 = vld [vmem:[%s7 + $0x3b0] sm:$0xff]
        %v1490 = vld [vmem:[%s7 + $0x3b8] sm:$0xff]
        %v1491 = vld [vmem:[%s7 + $0x3c0] sm:$0xff]
        %v1492 = vld [vmem:[%s7 + $0x3c8] sm:$0xff]
        %v1493 = vld [vmem:[%s7 + $0x3d0] sm:$0xff]
        %v1494 = vld [vmem:[%s7 + $0x3d8] sm:$0xff]
        %v1495 = vld [vmem:[%s7 + $0x3e0] sm:$0xff]
        %v1496 = vld [vmem:[%s7 + $0x3e8] sm:$0xff]
        %v1497 = vld [vmem:[%s7 + $0x3f0] sm:$0xff]
        %v1498 = vld [vmem:[%s7 + $0x3f8] sm:$0xff]
        %v1499 = vld [vmem:[%s8] sm:$0xff]
        %v1500 = vld [vmem:[%s8 + $0x8] sm:$0xff]
        %v1501 = vld [vmem:[%s8 + $0x10] sm:$0xff]
        %v1502 = vld [vmem:[%s8 + $0x18] sm:$0xff]
        %v1503 = vld [vmem:[%s8 + $0x20] sm:$0xff]
        %v1504 = vld [vmem:[%s8 + $0x28] sm:$0xff]
        %v1505 = vld [vmem:[%s8 + $0x30] sm:$0xff]
        %v1506 = vld [vmem:[%s8 + $0x38] sm:$0xff]
        %v1507 = vld [vmem:[%s8 + $0x40] sm:$0xff]
        %v1508 = vld [vmem:[%s8 + $0x48] sm:$0xff]
        %v1509 = vld [vmem:[%s8 + $0x50] sm:$0xff]
        %v1510 = vld [vmem:[%s8 + $0x58] sm:$0xff]
        %v1511 = vld [vmem:[%s8 + $0x60] sm:$0xff]
        %v1512 = vld [vmem:[%s8 + $0x68] sm:$0xff]
        %v1513 = vld [vmem:[%s8 + $0x70] sm:$0xff]
        %v1514 = vld [vmem:[%s8 + $0x78] sm:$0xff]
        %v1515 = vld [vmem:[%s8 + $0x80] sm:$0xff]
        %v1516 = vld [vmem:[%s8 + $0x88] sm:$0xff]
        %v1517 = vld [vmem:[%s8 + $0x90] sm:$0xff]
        %v1518 = vld [vmem:[%s8 + $0x98] sm:$0xff]
        %v1519 = vld [vmem:[%s8 + $0xa0] sm:$0xff]
        %v1520 = vld [vmem:[%s8 + $0xa8] sm:$0xff]
        %v1521 = vld [vmem:[%s8 + $0xb0] sm:$0xff]
        %v1522 = vld [vmem:[%s8 + $0xb8] sm:$0xff]
        %v1523 = vld [vmem:[%s8 + $0xc0] sm:$0xff]
        %v1524 = vld [vmem:[%s8 + $0xc8] sm:$0xff]
        %v1525 = vld [vmem:[%s8 + $0xd0] sm:$0xff]
        %v1526 = vld [vmem:[%s8 + $0xd8] sm:$0xff]
        %v1527 = vld [vmem:[%s8 + $0xe0] sm:$0xff]
        %v1528 = vld [vmem:[%s8 + $0xe8] sm:$0xff]
        %v1529 = vld [vmem:[%s8 + $0xf0] sm:$0xff]
        %v1530 = vld [vmem:[%s8 + $0xf8] sm:$0xff]
        %v1531 = vld [vmem:[%s8 + $0x100] sm:$0xff]
        %v1532 = vld [vmem:[%s8 + $0x108] sm:$0xff]
        %v1533 = vld [vmem:[%s8 + $0x110] sm:$0xff]
        %v1534 = vld [vmem:[%s8 + $0x118] sm:$0xff]
        %v1535 = vld [vmem:[%s8 + $0x120] sm:$0xff]
        %v1536 = vld [vmem:[%s8 + $0x128] sm:$0xff]
        %v1537 = vld [vmem:[%s8 + $0x130] sm:$0xff]
        %v1538 = vld [vmem:[%s8 + $0x138] sm:$0xff]
        %v1539 = vld [vmem:[%s8 + $0x140] sm:$0xff]
        %v1540 = vld [vmem:[%s8 + $0x148] sm:$0xff]
        %v1541 = vld [vmem:[%s8 + $0x150] sm:$0xff]
        %v1542 = vld [vmem:[%s8 + $0x158] sm:$0xff]
        %v1543 = vld [vmem:[%s8 + $0x160] sm:$0xff]
        %v1544 = vld [vmem:[%s8 + $0x168] sm:$0xff]
        %v1545 = vld [vmem:[%s8 + $0x170] sm:$0xff]
        %v1546 = vld [vmem:[%s8 + $0x178] sm:$0xff]
        %v1547 = vld [vmem:[%s8 + $0x180] sm:$0xff]
        %v1548 = vld [vmem:[%s8 + $0x188] sm:$0xff]
        %v1549 = vld [vmem:[%s8 + $0x190] sm:$0xff]
        %v1550 = vld [vmem:[%s8 + $0x198] sm:$0xff]
        %v1551 = vld [vmem:[%s8 + $0x1a0] sm:$0xff]
        %v1552 = vld [vmem:[%s8 + $0x1a8] sm:$0xff]
        %v1553 = vld [vmem:[%s8 + $0x1b0] sm:$0xff]
        %v1554 = vld [vmem:[%s8 + $0x1b8] sm:$0xff]
        %v1555 = vld [vmem:[%s8 + $0x1c0] sm:$0xff]
        %v1556 = vld [vmem:[%s8 + $0x1c8] sm:$0xff]
        %v1557 = vld [vmem:[%s8 + $0x1d0] sm:$0xff]
        %v1558 = vld [vmem:[%s8 + $0x1d8] sm:$0xff]
        %v1559 = vld [vmem:[%s8 + $0x1e0] sm:$0xff]
        %v1560 = vld [vmem:[%s8 + $0x1e8] sm:$0xff]
        %v1561 = vld [vmem:[%s8 + $0x1f0] sm:$0xff]
        %v1562 = vld [vmem:[%s8 + $0x1f8] sm:$0xff]
        %v1563 = vld [vmem:[%s8 + $0x200] sm:$0xff]
        %v1564 = vld [vmem:[%s8 + $0x208] sm:$0xff]
        %v1565 = vld [vmem:[%s8 + $0x210] sm:$0xff]
        %v1566 = vld [vmem:[%s8 + $0x218] sm:$0xff]
        %v1567 = vld [vmem:[%s8 + $0x220] sm:$0xff]
        %v1568 = vld [vmem:[%s8 + $0x228] sm:$0xff]
        %v1569 = vld [vmem:[%s8 + $0x230] sm:$0xff]
        %v1570 = vld [vmem:[%s8 + $0x238] sm:$0xff]
        %v1571 = vld [vmem:[%s8 + $0x240] sm:$0xff]
        %v1572 = vld [vmem:[%s8 + $0x248] sm:$0xff]
        %v1573 = vld [vmem:[%s8 + $0x250] sm:$0xff]
        %v1574 = vld [vmem:[%s8 + $0x258] sm:$0xff]
        %v1575 = vld [vmem:[%s8 + $0x260] sm:$0xff]
        %v1576 = vld [vmem:[%s8 + $0x268] sm:$0xff]
        %v1577 = vld [vmem:[%s8 + $0x270] sm:$0xff]
        %v1578 = vld [vmem:[%s8 + $0x278] sm:$0xff]
        %v1579 = vld [vmem:[%s8 + $0x280] sm:$0xff]
        %v1580 = vld [vmem:[%s8 + $0x288] sm:$0xff]
        %v1581 = vld [vmem:[%s8 + $0x290] sm:$0xff]
        %v1582 = vld [vmem:[%s8 + $0x298] sm:$0xff]
        %v1583 = vld [vmem:[%s8 + $0x2a0] sm:$0xff]
        %v1584 = vld [vmem:[%s8 + $0x2a8] sm:$0xff]
        %v1585 = vld [vmem:[%s8 + $0x2b0] sm:$0xff]
        %v1586 = vld [vmem:[%s8 + $0x2b8] sm:$0xff]
        %v1587 = vld [vmem:[%s8 + $0x2c0] sm:$0xff]
        %v1588 = vld [vmem:[%s8 + $0x2c8] sm:$0xff]
        %v1589 = vld [vmem:[%s8 + $0x2d0] sm:$0xff]
        %v1590 = vld [vmem:[%s8 + $0x2d8] sm:$0xff]
        %v1591 = vld [vmem:[%s8 + $0x2e0] sm:$0xff]
        %v1592 = vld [vmem:[%s8 + $0x2e8] sm:$0xff]
        %v1593 = vld [vmem:[%s8 + $0x2f0] sm:$0xff]
        %v1594 = vld [vmem:[%s8 + $0x2f8] sm:$0xff]
        %v1595 = vld [vmem:[%s8 + $0x300] sm:$0xff]
        %v1596 = vld [vmem:[%s8 + $0x308] sm:$0xff]
        %v1597 = vld [vmem:[%s8 + $0x310] sm:$0xff]
        %v1598 = vld [vmem:[%s8 + $0x318] sm:$0xff]
        %v1599 = vld [vmem:[%s8 + $0x320] sm:$0xff]
        %v1600 = vld [vmem:[%s8 + $0x328] sm:$0xff]
        %v1601 = vld [vmem:[%s8 + $0x330] sm:$0xff]
        %v1602 = vld [vmem:[%s8 + $0x338] sm:$0xff]
        %v1603 = vld [vmem:[%s8 + $0x340] sm:$0xff]
        %v1604 = vld [vmem:[%s8 + $0x348] sm:$0xff]
        %v1605 = vld [vmem:[%s8 + $0x350] sm:$0xff]
        %v1606 = vld [vmem:[%s8 + $0x358] sm:$0xff]
        %v1607 = vld [vmem:[%s8 + $0x360] sm:$0xff]
        %v1608 = vld [vmem:[%s8 + $0x368] sm:$0xff]
        %v1609 = vld [vmem:[%s8 + $0x370] sm:$0xff]
        %v1610 = vld [vmem:[%s8 + $0x378] sm:$0xff]
        %v1611 = vld [vmem:[%s8 + $0x380] sm:$0xff]
        %v1612 = vld [vmem:[%s8 + $0x388] sm:$0xff]
        %v1613 = vld [vmem:[%s8 + $0x390] sm:$0xff]
        %v1614 = vld [vmem:[%s8 + $0x398] sm:$0xff]
        %v1615 = vld [vmem:[%s8 + $0x3a0] sm:$0xff]
        %v1616 = vld [vmem:[%s8 + $0x3a8] sm:$0xff]
        %v1617 = vld [vmem:[%s8 + $0x3b0] sm:$0xff]
        %v1618 = vld [vmem:[%s8 + $0x3b8] sm:$0xff]
        %v1619 = vld [vmem:[%s8 + $0x3c0] sm:$0xff]
        %v1620 = vld [vmem:[%s8 + $0x3c8] sm:$0xff]
        %v1621 = vld [vmem:[%s8 + $0x3d0] sm:$0xff]
        %v1622 = vld [vmem:[%s8 + $0x3d8] sm:$0xff]
        %v1623 = vld [vmem:[%s8 + $0x3e0] sm:$0xff]
        %v1624 = vld [vmem:[%s8 + $0x3e8] sm:$0xff]
        %v1625 = vld [vmem:[%s8 + $0x3f0] sm:$0xff]
        %v1626 = vld [vmem:[%s8 + $0x3f8] sm:$0xff]
        %v1627 = vld [vmem:[%s9] sm:$0xff]
        %v1628 = vld [vmem:[%s9 + $0x8] sm:$0xff]
        %v1629 = vld [vmem:[%s9 + $0x10] sm:$0xff]
        %v1630 = vld [vmem:[%s9 + $0x18] sm:$0xff]
        %v1631 = vld [vmem:[%s9 + $0x20] sm:$0xff]
        %v1632 = vld [vmem:[%s9 + $0x28] sm:$0xff]
        %v1633 = vld [vmem:[%s9 + $0x30] sm:$0xff]
        %v1634 = vld [vmem:[%s9 + $0x38] sm:$0xff]
        %v1635 = vld [vmem:[%s9 + $0x40] sm:$0xff]
        %v1636 = vld [vmem:[%s9 + $0x48] sm:$0xff]
        %v1637 = vld [vmem:[%s9 + $0x50] sm:$0xff]
        %v1638 = vld [vmem:[%s9 + $0x58] sm:$0xff]
        %v1639 = vld [vmem:[%s9 + $0x60] sm:$0xff]
        %v1640 = vld [vmem:[%s9 + $0x68] sm:$0xff]
        %v1641 = vld [vmem:[%s9 + $0x70] sm:$0xff]
        %v1642 = vld [vmem:[%s9 + $0x78] sm:$0xff]
        %v1643 = vld [vmem:[%s9 + $0x80] sm:$0xff]
        %v1644 = vld [vmem:[%s9 + $0x88] sm:$0xff]
        %v1645 = vld [vmem:[%s9 + $0x90] sm:$0xff]
        %v1646 = vld [vmem:[%s9 + $0x98] sm:$0xff]
        %v1647 = vld [vmem:[%s9 + $0xa0] sm:$0xff]
        %v1648 = vld [vmem:[%s9 + $0xa8] sm:$0xff]
        %v1649 = vld [vmem:[%s9 + $0xb0] sm:$0xff]
        %v1650 = vld [vmem:[%s9 + $0xb8] sm:$0xff]
        %v1651 = vld [vmem:[%s9 + $0xc0] sm:$0xff]
        %v1652 = vld [vmem:[%s9 + $0xc8] sm:$0xff]
        %v1653 = vld [vmem:[%s9 + $0xd0] sm:$0xff]
        %v1654 = vld [vmem:[%s9 + $0xd8] sm:$0xff]
        %v1655 = vld [vmem:[%s9 + $0xe0] sm:$0xff]
        %v1656 = vld [vmem:[%s9 + $0xe8] sm:$0xff]
        %v1657 = vld [vmem:[%s9 + $0xf0] sm:$0xff]
        %v1658 = vld [vmem:[%s9 + $0xf8] sm:$0xff]
        %v1659 = vld [vmem:[%s9 + $0x100] sm:$0xff]
        %v1660 = vld [vmem:[%s9 + $0x108] sm:$0xff]
        %v1661 = vld [vmem:[%s9 + $0x110] sm:$0xff]
        %v1662 = vld [vmem:[%s9 + $0x118] sm:$0xff]
        %v1663 = vld [vmem:[%s9 + $0x120] sm:$0xff]
        %v1664 = vld [vmem:[%s9 + $0x128] sm:$0xff]
        %v1665 = vld [vmem:[%s9 + $0x130] sm:$0xff]
        %v1666 = vld [vmem:[%s9 + $0x138] sm:$0xff]
        %v1667 = vld [vmem:[%s9 + $0x140] sm:$0xff]
        %v1668 = vld [vmem:[%s9 + $0x148] sm:$0xff]
        %v1669 = vld [vmem:[%s9 + $0x150] sm:$0xff]
        %v1670 = vld [vmem:[%s9 + $0x158] sm:$0xff]
        %v1671 = vld [vmem:[%s9 + $0x160] sm:$0xff]
        %v1672 = vld [vmem:[%s9 + $0x168] sm:$0xff]
        %v1673 = vld [vmem:[%s9 + $0x170] sm:$0xff]
        %v1674 = vld [vmem:[%s9 + $0x178] sm:$0xff]
        %v1675 = vld [vmem:[%s9 + $0x180] sm:$0xff]
        %v1676 = vld [vmem:[%s9 + $0x188] sm:$0xff]
        %v1677 = vld [vmem:[%s9 + $0x190] sm:$0xff]
        %v1678 = vld [vmem:[%s9 + $0x198] sm:$0xff]
        %v1679 = vld [vmem:[%s9 + $0x1a0] sm:$0xff]
        %v1680 = vld [vmem:[%s9 + $0x1a8] sm:$0xff]
        %v1681 = vld [vmem:[%s9 + $0x1b0] sm:$0xff]
        %v1682 = vld [vmem:[%s9 + $0x1b8] sm:$0xff]
        %v1683 = vld [vmem:[%s9 + $0x1c0] sm:$0xff]
        %v1684 = vld [vmem:[%s9 + $0x1c8] sm:$0xff]
        %v1685 = vld [vmem:[%s9 + $0x1d0] sm:$0xff]
        %v1686 = vld [vmem:[%s9 + $0x1d8] sm:$0xff]
        %v1687 = vld [vmem:[%s9 + $0x1e0] sm:$0xff]
        %v1688 = vld [vmem:[%s9 + $0x1e8] sm:$0xff]
        %v1689 = vld [vmem:[%s9 + $0x1f0] sm:$0xff]
        %v1690 = vld [vmem:[%s9 + $0x1f8] sm:$0xff]
        %v1691 = vld [vmem:[%s9 + $0x200] sm:$0xff]
        %v1692 = vld [vmem:[%s9 + $0x208] sm:$0xff]
        %v1693 = vld [vmem:[%s9 + $0x210] sm:$0xff]
        %v1694 = vld [vmem:[%s9 + $0x218] sm:$0xff]
        %v1695 = vld [vmem:[%s9 + $0x220] sm:$0xff]
        %v1696 = vld [vmem:[%s9 + $0x228] sm:$0xff]
        %v1697 = vld [vmem:[%s9 + $0x230] sm:$0xff]
        %v1698 = vld [vmem:[%s9 + $0x238] sm:$0xff]
        %v1699 = vld [vmem:[%s9 + $0x240] sm:$0xff]
        %v1700 = vld [vmem:[%s9 + $0x248] sm:$0xff]
        %v1701 = vld [vmem:[%s9 + $0x250] sm:$0xff]
        %v1702 = vld [vmem:[%s9 + $0x258] sm:$0xff]
        %v1703 = vld [vmem:[%s9 + $0x260] sm:$0xff]
        %v1704 = vld [vmem:[%s9 + $0x268] sm:$0xff]
        %v1705 = vld [vmem:[%s9 + $0x270] sm:$0xff]
        %v1706 = vld [vmem:[%s9 + $0x278] sm:$0xff]
        %v1707 = vld [vmem:[%s9 + $0x280] sm:$0xff]
        %v1708 = vld [vmem:[%s9 + $0x288] sm:$0xff]
        %v1709 = vld [vmem:[%s9 + $0x290] sm:$0xff]
        %v1710 = vld [vmem:[%s9 + $0x298] sm:$0xff]
        %v1711 = vld [vmem:[%s9 + $0x2a0] sm:$0xff]
        %v1712 = vld [vmem:[%s9 + $0x2a8] sm:$0xff]
        %v1713 = vld [vmem:[%s9 + $0x2b0] sm:$0xff]
        %v1714 = vld [vmem:[%s9 + $0x2b8] sm:$0xff]
        %v1715 = vld [vmem:[%s9 + $0x2c0] sm:$0xff]
        %v1716 = vld [vmem:[%s9 + $0x2c8] sm:$0xff]
        %v1717 = vld [vmem:[%s9 + $0x2d0] sm:$0xff]
        %v1718 = vld [vmem:[%s9 + $0x2d8] sm:$0xff]
        %v1719 = vld [vmem:[%s9 + $0x2e0] sm:$0xff]
        %v1720 = vld [vmem:[%s9 + $0x2e8] sm:$0xff]
        %v1721 = vld [vmem:[%s9 + $0x2f0] sm:$0xff]
        %v1722 = vld [vmem:[%s9 + $0x2f8] sm:$0xff]
        %v1723 = vld [vmem:[%s9 + $0x300] sm:$0xff]
        %v1724 = vld [vmem:[%s9 + $0x308] sm:$0xff]
        %v1725 = vld [vmem:[%s9 + $0x310] sm:$0xff]
        %v1726 = vld [vmem:[%s9 + $0x318] sm:$0xff]
        %v1727 = vld [vmem:[%s9 + $0x320] sm:$0xff]
        %v1728 = vld [vmem:[%s9 + $0x328] sm:$0xff]
        %v1729 = vld [vmem:[%s9 + $0x330] sm:$0xff]
        %v1730 = vld [vmem:[%s9 + $0x338] sm:$0xff]
        %v1731 = vld [vmem:[%s9 + $0x340] sm:$0xff]
        %v1732 = vld [vmem:[%s9 + $0x348] sm:$0xff]
        %v1733 = vld [vmem:[%s9 + $0x350] sm:$0xff]
        %v1734 = vld [vmem:[%s9 + $0x358] sm:$0xff]
        %v1735 = vld [vmem:[%s9 + $0x360] sm:$0xff]
        %v1736 = vld [vmem:[%s9 + $0x368] sm:$0xff]
        %v1737 = vld [vmem:[%s9 + $0x370] sm:$0xff]
        %v1738 = vld [vmem:[%s9 + $0x378] sm:$0xff]
        %v1739 = vld [vmem:[%s9 + $0x380] sm:$0xff]
        %v1740 = vld [vmem:[%s9 + $0x388] sm:$0xff]
        %v1741 = vld [vmem:[%s9 + $0x390] sm:$0xff]
        %v1742 = vld [vmem:[%s9 + $0x398] sm:$0xff]
        %v1743 = vld [vmem:[%s9 + $0x3a0] sm:$0xff]
        %v1744 = vld [vmem:[%s9 + $0x3a8] sm:$0xff]
        %v1745 = vld [vmem:[%s9 + $0x3b0] sm:$0xff]
        %v1746 = vld [vmem:[%s9 + $0x3b8] sm:$0xff]
        %v1747 = vld [vmem:[%s9 + $0x3c0] sm:$0xff]
        %v1748 = vld [vmem:[%s9 + $0x3c8] sm:$0xff]
        %v1749 = vld [vmem:[%s9 + $0x3d0] sm:$0xff]
        %v1750 = vld [vmem:[%s9 + $0x3d8] sm:$0xff]
        %v1751 = vld [vmem:[%s9 + $0x3e0] sm:$0xff]
        %v1752 = vld [vmem:[%s9 + $0x3e8] sm:$0xff]
        %v1753 = vld [vmem:[%s9 + $0x3f0] sm:$0xff]
        %v1754 = vld [vmem:[%s9 + $0x3f8] sm:$0xff]
        %v1755 = vpack.c.bf16 %v1372, %v1371
        %v1756 = vpack.c.bf16 %v1374, %v1373
        %v1757 = vpack.c.bf16 %v1376, %v1375
        %v1758 = vpack.c.bf16 %v1378, %v1377
        %v1759 = vpack.c.bf16 %v1380, %v1379
        %v1760 = vpack.c.bf16 %v1382, %v1381
        %v1761 = vpack.c.bf16 %v1384, %v1383
        %v1762 = vpack.c.bf16 %v1386, %v1385
        %v1763 = vpack.c.bf16 %v1388, %v1387
        %v1764 = vpack.c.bf16 %v1390, %v1389
        %v1765 = vpack.c.bf16 %v1392, %v1391
        %v1766 = vpack.c.bf16 %v1394, %v1393
        %v1767 = vpack.c.bf16 %v1396, %v1395
        %v1768 = vpack.c.bf16 %v1398, %v1397
        %v1769 = vpack.c.bf16 %v1400, %v1399
        %v1770 = vpack.c.bf16 %v1402, %v1401
        %v1771 = vpack.c.bf16 %v1404, %v1403
        %v1772 = vpack.c.bf16 %v1406, %v1405
        %v1773 = vpack.c.bf16 %v1408, %v1407
        %v1774 = vpack.c.bf16 %v1410, %v1409
        %v1775 = vpack.c.bf16 %v1412, %v1411
        %v1776 = vpack.c.bf16 %v1414, %v1413
        %v1777 = vpack.c.bf16 %v1416, %v1415
        %v1778 = vpack.c.bf16 %v1418, %v1417
        %v1779 = vpack.c.bf16 %v1420, %v1419
        %v1780 = vpack.c.bf16 %v1422, %v1421
        %v1781 = vpack.c.bf16 %v1424, %v1423
        %v1782 = vpack.c.bf16 %v1426, %v1425
        %v1783 = vpack.c.bf16 %v1428, %v1427
        %v1784 = vpack.c.bf16 %v1430, %v1429
        %v1785 = vpack.c.bf16 %v1432, %v1431
        %v1786 = vpack.c.bf16 %v1434, %v1433
        %v1787 = vpack.c.bf16 %v1436, %v1435
        %v1788 = vpack.c.bf16 %v1438, %v1437
        %v1789 = vpack.c.bf16 %v1440, %v1439
        %v1790 = vpack.c.bf16 %v1442, %v1441
        %v1791 = vpack.c.bf16 %v1444, %v1443
        %v1792 = vpack.c.bf16 %v1446, %v1445
        %v1793 = vpack.c.bf16 %v1448, %v1447
        %v1794 = vpack.c.bf16 %v1450, %v1449
        %v1795 = vpack.c.bf16 %v1452, %v1451
        %v1796 = vpack.c.bf16 %v1454, %v1453
        %v1797 = vpack.c.bf16 %v1456, %v1455
        %v1798 = vpack.c.bf16 %v1458, %v1457
        %v1799 = vpack.c.bf16 %v1460, %v1459
        %v1800 = vpack.c.bf16 %v1462, %v1461
        %v1801 = vpack.c.bf16 %v1464, %v1463
        %v1802 = vpack.c.bf16 %v1466, %v1465
        %v1803 = vpack.c.bf16 %v1468, %v1467
        %v1804 = vpack.c.bf16 %v1470, %v1469
        %v1805 = vpack.c.bf16 %v1472, %v1471
        %v1806 = vpack.c.bf16 %v1474, %v1473
        %v1807 = vpack.c.bf16 %v1476, %v1475
        %v1808 = vpack.c.bf16 %v1478, %v1477
        %v1809 = vpack.c.bf16 %v1480, %v1479
        %v1810 = vpack.c.bf16 %v1482, %v1481
        %v1811 = vpack.c.bf16 %v1484, %v1483
        %v1812 = vpack.c.bf16 %v1486, %v1485
        %v1813 = vpack.c.bf16 %v1488, %v1487
        %v1814 = vpack.c.bf16 %v1490, %v1489
        %v1815 = vpack.c.bf16 %v1492, %v1491
        %v1816 = vpack.c.bf16 %v1494, %v1493
        %v1817 = vpack.c.bf16 %v1496, %v1495
        %v1818 = vpack.c.bf16 %v1498, %v1497
        %v1819 = vpack.c.bf16 %v1356, %v1355
        %v1820 = vpack.c.bf16 %v1358, %v1357
        %v1821 = vpack.c.bf16 %v1360, %v1359
        %v1822 = vpack.c.bf16 %v1362, %v1361
        %v1823 = vpack.c.bf16 %v1364, %v1363
        %v1824 = vpack.c.bf16 %v1366, %v1365
        %v1825 = vpack.c.bf16 %v1368, %v1367
        %v1826 = vpack.c.bf16 %v1370, %v1369
        %1827 = vmatprep.subr.bf16.mxu0 0
        %1828 = vmatpush1.bf16.msra.mxu0 %v1826
        %1829 = vmatprep.subr.bf16.mxu0 0
        %1830 = vmatpush1.bf16.msra.mxu0 %v1825
        %1831 = vmatprep.subr.bf16.mxu0 0
        %1832 = vmatpush1.bf16.msra.mxu0 %v1824
        %1833 = vmatprep.subr.bf16.mxu0 0
        %1834 = vmatpush1.bf16.msra.mxu0 %v1823
        %1835 = vmatprep.subr.bf16.mxu0 0
        %1836 = vmatpush1.bf16.msra.mxu0 %v1822
        %1837 = vmatprep.subr.bf16.mxu0 0
        %1838 = vmatpush1.bf16.msra.mxu0 %v1821
        %1839 = vmatprep.subr.bf16.mxu0 0
        %1840 = vmatpush1.bf16.msra.mxu0 %v1820
        %1841 = vmatprep.subr.bf16.mxu0 0
        %1842 = vmatpush1.bf16.msra.mxu0 %v1819
        %1843 = vmatprep.subr.bf16.mxu0 0
        %1844 = vmatpush2.bf16.msra.mxu0 0
        %1845 = vmatprep.subr.bf16.mxu0 0
        %1846 = vmatpush2.bf16.msra.mxu0 0
        %1847 = vmatprep.subr.bf16.mxu0 0
        %1848 = vmatpush2.bf16.msra.mxu0 0
        %1849 = vmatprep.subr.bf16.mxu0 0
        %1850 = vmatpush2.bf16.msra.mxu0 0
        %1851 = vmatprep.subr.bf16.mxu0 0
        %1852 = vmatpush2.bf16.msra.mxu0 0
        %1853 = vmatprep.subr.bf16.mxu0 0
        %1854 = vmatpush2.bf16.msra.mxu0 0
        %1855 = vmatprep.subr.bf16.mxu0 0
        %1856 = vmatpush2.bf16.msra.mxu0 0
        %1857 = vmatprep.subr.bf16.mxu0 0
        %1858 = vmatpush2.bf16.msra.mxu0 0
        %1859 = vmatprep.mubr.bf16.mxu0 0
        %1860 = vmatmul.mubr.bf16.gmra.mxu0 %v1755
        %v1861 = vpop.f32.mrf.mxu0
        %v1862 = vadd.f32 0.0, %v1861
        %v1863 = vpop.f32.mrf.mxu0
        %v1864 = vpop.f32.mrf.mxu0
        %v1865 = vadd.f32 0.0, %v1864
        %v1866 = vpop.f32.mrf.mxu0
        %1867 = vmatprep.mubr.bf16.mxu0 0
        %1868 = vmatmul.mubr.bf16.gmra.mxu0 %v1756
        %v1869 = vpop.f32.mrf.mxu0
        %v1870 = vadd.f32 0.0, %v1869
        %v1871 = vpop.f32.mrf.mxu0
        %v1872 = vpop.f32.mrf.mxu0
        %v1873 = vadd.f32 0.0, %v1872
        %v1874 = vpop.f32.mrf.mxu0
        %1875 = vmatprep.mubr.bf16.mxu0 0
        %1876 = vmatmul.mubr.bf16.gmra.mxu0 %v1757
        %v1877 = vpop.f32.mrf.mxu0
        %v1878 = vadd.f32 0.0, %v1877
        %v1879 = vpop.f32.mrf.mxu0
        %v1880 = vpop.f32.mrf.mxu0
        %v1881 = vadd.f32 0.0, %v1880
        %v1882 = vpop.f32.mrf.mxu0
        %1883 = vmatprep.mubr.bf16.mxu0 0
        %1884 = vmatmul.mubr.bf16.gmra.mxu0 %v1758
        %v1885 = vpop.f32.mrf.mxu0
        %v1886 = vadd.f32 0.0, %v1885
        %v1887 = vpop.f32.mrf.mxu0
        %v1888 = vpop.f32.mrf.mxu0
        %v1889 = vadd.f32 0.0, %v1888
        %v1890 = vpop.f32.mrf.mxu0
        %1891 = vmatprep.mubr.bf16.mxu0 0
        %1892 = vmatmul.mubr.bf16.gmra.mxu0 %v1759
        %v1893 = vpop.f32.mrf.mxu0
        %v1894 = vadd.f32 0.0, %v1893
        %v1895 = vpop.f32.mrf.mxu0
        %v1896 = vpop.f32.mrf.mxu0
        %v1897 = vadd.f32 0.0, %v1896
        %v1898 = vpop.f32.mrf.mxu0
        %1899 = vmatprep.mubr.bf16.mxu0 0
        %1900 = vmatmul.mubr.bf16.gmra.mxu0 %v1760
        %v1901 = vpop.f32.mrf.mxu0
        %v1902 = vadd.f32 0.0, %v1901
        %v1903 = vpop.f32.mrf.mxu0
        %v1904 = vpop.f32.mrf.mxu0
        %v1905 = vadd.f32 0.0, %v1904
        %v1906 = vpop.f32.mrf.mxu0
        %1907 = vmatprep.mubr.bf16.mxu0 0
        %1908 = vmatmul.mubr.bf16.gmra.mxu0 %v1761
        %v1909 = vpop.f32.mrf.mxu0
        %v1910 = vadd.f32 0.0, %v1909
        %v1911 = vpop.f32.mrf.mxu0
        %v1912 = vpop.f32.mrf.mxu0
        %v1913 = vadd.f32 0.0, %v1912
        %v1914 = vpop.f32.mrf.mxu0
        %1915 = vmatprep.mubr.bf16.mxu0 0
        %1916 = vmatmul.mubr.bf16.gmra.mxu0 %v1762
        %v1917 = vpop.f32.mrf.mxu0
        %v1918 = vadd.f32 0.0, %v1917
        %v1919 = vpop.f32.mrf.mxu0
        %v1920 = vpop.f32.mrf.mxu0
        %v1921 = vadd.f32 0.0, %v1920
        %v1922 = vpop.f32.mrf.mxu0
        %1923 = vmatprep.mubr.bf16.mxu0 0
        %1924 = vmatmul.mubr.bf16.gmra.mxu0 %v1763
        %v1925 = vpop.f32.mrf.mxu0
        %v1926 = vadd.f32 0.0, %v1925
        %v1927 = vpop.f32.mrf.mxu0
        %v1928 = vpop.f32.mrf.mxu0
        %v1929 = vadd.f32 0.0, %v1928
        %v1930 = vpop.f32.mrf.mxu0
        %1931 = vmatprep.mubr.bf16.mxu0 0
        %1932 = vmatmul.mubr.bf16.gmra.mxu0 %v1764
        %v1933 = vpop.f32.mrf.mxu0
        %v1934 = vadd.f32 0.0, %v1933
        %v1935 = vpop.f32.mrf.mxu0
        %v1936 = vpop.f32.mrf.mxu0
        %v1937 = vadd.f32 0.0, %v1936
        %v1938 = vpop.f32.mrf.mxu0
        %1939 = vmatprep.mubr.bf16.mxu0 0
        %1940 = vmatmul.mubr.bf16.gmra.mxu0 %v1765
        %v1941 = vpop.f32.mrf.mxu0
        %v1942 = vadd.f32 0.0, %v1941
        %v1943 = vpop.f32.mrf.mxu0
        %v1944 = vpop.f32.mrf.mxu0
        %v1945 = vadd.f32 0.0, %v1944
        %v1946 = vpop.f32.mrf.mxu0
        %1947 = vmatprep.mubr.bf16.mxu0 0
        %1948 = vmatmul.mubr.bf16.gmra.mxu0 %v1766
        %v1949 = vpop.f32.mrf.mxu0
        %v1950 = vadd.f32 0.0, %v1949
        %v1951 = vpop.f32.mrf.mxu0
        %v1952 = vpop.f32.mrf.mxu0
        %v1953 = vadd.f32 0.0, %v1952
        %v1954 = vpop.f32.mrf.mxu0
        %1955 = vmatprep.mubr.bf16.mxu0 0
        %1956 = vmatmul.mubr.bf16.gmra.mxu0 %v1767
        %v1957 = vpop.f32.mrf.mxu0
        %v1958 = vadd.f32 0.0, %v1957
        %v1959 = vpop.f32.mrf.mxu0
        %v1960 = vpop.f32.mrf.mxu0
        %v1961 = vadd.f32 0.0, %v1960
        %v1962 = vpop.f32.mrf.mxu0
        %1963 = vmatprep.mubr.bf16.mxu0 0
        %1964 = vmatmul.mubr.bf16.gmra.mxu0 %v1768
        %v1965 = vpop.f32.mrf.mxu0
        %v1966 = vadd.f32 0.0, %v1965
        %v1967 = vpop.f32.mrf.mxu0
        %v1968 = vpop.f32.mrf.mxu0
        %v1969 = vadd.f32 0.0, %v1968
        %v1970 = vpop.f32.mrf.mxu0
        %1971 = vmatprep.mubr.bf16.mxu0 0
        %1972 = vmatmul.mubr.bf16.gmra.mxu0 %v1769
        %v1973 = vpop.f32.mrf.mxu0
        %v1974 = vadd.f32 0.0, %v1973
        %v1975 = vpop.f32.mrf.mxu0
        %v1976 = vpop.f32.mrf.mxu0
        %v1977 = vadd.f32 0.0, %v1976
        %v1978 = vpop.f32.mrf.mxu0
        %1979 = vmatprep.mubr.bf16.mxu0 0
        %1980 = vmatmul.mubr.bf16.gmra.mxu0 %v1770
        %v1981 = vpop.f32.mrf.mxu0
        %v1982 = vadd.f32 0.0, %v1981
        %v1983 = vpop.f32.mrf.mxu0
        %v1984 = vpop.f32.mrf.mxu0
        %v1985 = vadd.f32 0.0, %v1984
        %v1986 = vpop.f32.mrf.mxu0
        %1987 = vmatprep.mubr.bf16.mxu0 0
        %1988 = vmatmul.mubr.bf16.gmra.mxu0 %v1771
        %v1989 = vpop.f32.mrf.mxu0
        %v1990 = vadd.f32 0.0, %v1989
        %v1991 = vpop.f32.mrf.mxu0
        %v1992 = vpop.f32.mrf.mxu0
        %v1993 = vadd.f32 0.0, %v1992
        %v1994 = vpop.f32.mrf.mxu0
        %1995 = vmatprep.mubr.bf16.mxu0 0
        %1996 = vmatmul.mubr.bf16.gmra.mxu0 %v1772
        %v1997 = vpop.f32.mrf.mxu0
        %v1998 = vadd.f32 0.0, %v1997
        %v1999 = vpop.f32.mrf.mxu0
        %v2000 = vpop.f32.mrf.mxu0
        %v2001 = vadd.f32 0.0, %v2000
        %v2002 = vpop.f32.mrf.mxu0
        %2003 = vmatprep.mubr.bf16.mxu0 0
        %2004 = vmatmul.mubr.bf16.gmra.mxu0 %v1773
        %v2005 = vpop.f32.mrf.mxu0
        %v2006 = vadd.f32 0.0, %v2005
        %v2007 = vpop.f32.mrf.mxu0
        %v2008 = vpop.f32.mrf.mxu0
        %v2009 = vadd.f32 0.0, %v2008
        %v2010 = vpop.f32.mrf.mxu0
        %2011 = vmatprep.mubr.bf16.mxu0 0
        %2012 = vmatmul.mubr.bf16.gmra.mxu0 %v1774
        %v2013 = vpop.f32.mrf.mxu0
        %v2014 = vadd.f32 0.0, %v2013
        %v2015 = vpop.f32.mrf.mxu0
        %v2016 = vpop.f32.mrf.mxu0
        %v2017 = vadd.f32 0.0, %v2016
        %v2018 = vpop.f32.mrf.mxu0
        %2019 = vmatprep.mubr.bf16.mxu0 0
        %2020 = vmatmul.mubr.bf16.gmra.mxu0 %v1775
        %v2021 = vpop.f32.mrf.mxu0
        %v2022 = vadd.f32 0.0, %v2021
        %v2023 = vpop.f32.mrf.mxu0
        %v2024 = vpop.f32.mrf.mxu0
        %v2025 = vadd.f32 0.0, %v2024
        %v2026 = vpop.f32.mrf.mxu0
        %2027 = vmatprep.mubr.bf16.mxu0 0
        %2028 = vmatmul.mubr.bf16.gmra.mxu0 %v1776
        %v2029 = vpop.f32.mrf.mxu0
        %v2030 = vadd.f32 0.0, %v2029
        %v2031 = vpop.f32.mrf.mxu0
        %v2032 = vpop.f32.mrf.mxu0
        %v2033 = vadd.f32 0.0, %v2032
        %v2034 = vpop.f32.mrf.mxu0
        %2035 = vmatprep.mubr.bf16.mxu0 0
        %2036 = vmatmul.mubr.bf16.gmra.mxu0 %v1777
        %v2037 = vpop.f32.mrf.mxu0
        %v2038 = vadd.f32 0.0, %v2037
        %v2039 = vpop.f32.mrf.mxu0
        %v2040 = vpop.f32.mrf.mxu0
        %v2041 = vadd.f32 0.0, %v2040
        %v2042 = vpop.f32.mrf.mxu0
        %2043 = vmatprep.mubr.bf16.mxu0 0
        %2044 = vmatmul.mubr.bf16.gmra.mxu0 %v1778
        %v2045 = vpop.f32.mrf.mxu0
        %v2046 = vadd.f32 0.0, %v2045
        %v2047 = vpop.f32.mrf.mxu0
        %v2048 = vpop.f32.mrf.mxu0
        %v2049 = vadd.f32 0.0, %v2048
        %v2050 = vpop.f32.mrf.mxu0
        %2051 = vmatprep.mubr.bf16.mxu0 0
        %2052 = vmatmul.mubr.bf16.gmra.mxu0 %v1779
        %v2053 = vpop.f32.mrf.mxu0
        %v2054 = vadd.f32 0.0, %v2053
        %v2055 = vpop.f32.mrf.mxu0
        %v2056 = vpop.f32.mrf.mxu0
        %v2057 = vadd.f32 0.0, %v2056
        %v2058 = vpop.f32.mrf.mxu0
        %2059 = vmatprep.mubr.bf16.mxu0 0
        %2060 = vmatmul.mubr.bf16.gmra.mxu0 %v1780
        %v2061 = vpop.f32.mrf.mxu0
        %v2062 = vadd.f32 0.0, %v2061
        %v2063 = vpop.f32.mrf.mxu0
        %v2064 = vpop.f32.mrf.mxu0
        %v2065 = vadd.f32 0.0, %v2064
        %v2066 = vpop.f32.mrf.mxu0
        %2067 = vmatprep.mubr.bf16.mxu0 0
        %2068 = vmatmul.mubr.bf16.gmra.mxu0 %v1781
        %v2069 = vpop.f32.mrf.mxu0
        %v2070 = vadd.f32 0.0, %v2069
        %v2071 = vpop.f32.mrf.mxu0
        %v2072 = vpop.f32.mrf.mxu0
        %v2073 = vadd.f32 0.0, %v2072
        %v2074 = vpop.f32.mrf.mxu0
        %2075 = vmatprep.mubr.bf16.mxu0 0
        %2076 = vmatmul.mubr.bf16.gmra.mxu0 %v1782
        %v2077 = vpop.f32.mrf.mxu0
        %v2078 = vadd.f32 0.0, %v2077
        %v2079 = vpop.f32.mrf.mxu0
        %v2080 = vpop.f32.mrf.mxu0
        %v2081 = vadd.f32 0.0, %v2080
        %v2082 = vpop.f32.mrf.mxu0
        %2083 = vmatprep.mubr.bf16.mxu0 0
        %2084 = vmatmul.mubr.bf16.gmra.mxu0 %v1783
        %v2085 = vpop.f32.mrf.mxu0
        %v2086 = vadd.f32 0.0, %v2085
        %v2087 = vpop.f32.mrf.mxu0
        %v2088 = vpop.f32.mrf.mxu0
        %v2089 = vadd.f32 0.0, %v2088
        %v2090 = vpop.f32.mrf.mxu0
        %2091 = vmatprep.mubr.bf16.mxu0 0
        %2092 = vmatmul.mubr.bf16.gmra.mxu0 %v1784
        %v2093 = vpop.f32.mrf.mxu0
        %v2094 = vadd.f32 0.0, %v2093
        %v2095 = vpop.f32.mrf.mxu0
        %v2096 = vpop.f32.mrf.mxu0
        %v2097 = vadd.f32 0.0, %v2096
        %v2098 = vpop.f32.mrf.mxu0
        %2099 = vmatprep.mubr.bf16.mxu0 0
        %2100 = vmatmul.mubr.bf16.gmra.mxu0 %v1785
        %v2101 = vpop.f32.mrf.mxu0
        %v2102 = vadd.f32 0.0, %v2101
        %v2103 = vpop.f32.mrf.mxu0
        %v2104 = vpop.f32.mrf.mxu0
        %v2105 = vadd.f32 0.0, %v2104
        %v2106 = vpop.f32.mrf.mxu0
        %2107 = vmatprep.mubr.bf16.mxu0 0
        %2108 = vmatmul.mubr.bf16.gmra.mxu0 %v1786
        %v2109 = vpop.f32.mrf.mxu0
        %v2110 = vadd.f32 0.0, %v2109
        %v2111 = vpop.f32.mrf.mxu0
        %v2112 = vpop.f32.mrf.mxu0
        %v2113 = vadd.f32 0.0, %v2112
        %v2114 = vpop.f32.mrf.mxu0
        %2115 = vmatprep.mubr.bf16.mxu0 0
        %2116 = vmatmul.mubr.bf16.gmra.mxu0 %v1787
        %v2117 = vpop.f32.mrf.mxu0
        %v2118 = vadd.f32 0.0, %v2117
        %v2119 = vpop.f32.mrf.mxu0
        %v2120 = vpop.f32.mrf.mxu0
        %v2121 = vadd.f32 0.0, %v2120
        %v2122 = vpop.f32.mrf.mxu0
        %2123 = vmatprep.mubr.bf16.mxu0 0
        %2124 = vmatmul.mubr.bf16.gmra.mxu0 %v1788
        %v2125 = vpop.f32.mrf.mxu0
        %v2126 = vadd.f32 0.0, %v2125
        %v2127 = vpop.f32.mrf.mxu0
        %v2128 = vpop.f32.mrf.mxu0
        %v2129 = vadd.f32 0.0, %v2128
        %v2130 = vpop.f32.mrf.mxu0
        %2131 = vmatprep.mubr.bf16.mxu0 0
        %2132 = vmatmul.mubr.bf16.gmra.mxu0 %v1789
        %v2133 = vpop.f32.mrf.mxu0
        %v2134 = vadd.f32 0.0, %v2133
        %v2135 = vpop.f32.mrf.mxu0
        %v2136 = vpop.f32.mrf.mxu0
        %v2137 = vadd.f32 0.0, %v2136
        %v2138 = vpop.f32.mrf.mxu0
        %2139 = vmatprep.mubr.bf16.mxu0 0
        %2140 = vmatmul.mubr.bf16.gmra.mxu0 %v1790
        %v2141 = vpop.f32.mrf.mxu0
        %v2142 = vadd.f32 0.0, %v2141
        %v2143 = vpop.f32.mrf.mxu0
        %v2144 = vpop.f32.mrf.mxu0
        %v2145 = vadd.f32 0.0, %v2144
        %v2146 = vpop.f32.mrf.mxu0
        %2147 = vmatprep.mubr.bf16.mxu0 0
        %2148 = vmatmul.mubr.bf16.gmra.mxu0 %v1791
        %v2149 = vpop.f32.mrf.mxu0
        %v2150 = vadd.f32 0.0, %v2149
        %v2151 = vpop.f32.mrf.mxu0
        %v2152 = vpop.f32.mrf.mxu0
        %v2153 = vadd.f32 0.0, %v2152
        %v2154 = vpop.f32.mrf.mxu0
        %2155 = vmatprep.mubr.bf16.mxu0 0
        %2156 = vmatmul.mubr.bf16.gmra.mxu0 %v1792
        %v2157 = vpop.f32.mrf.mxu0
        %v2158 = vadd.f32 0.0, %v2157
        %v2159 = vpop.f32.mrf.mxu0
        %v2160 = vpop.f32.mrf.mxu0
        %v2161 = vadd.f32 0.0, %v2160
        %v2162 = vpop.f32.mrf.mxu0
        %2163 = vmatprep.mubr.bf16.mxu0 0
        %2164 = vmatmul.mubr.bf16.gmra.mxu0 %v1793
        %v2165 = vpop.f32.mrf.mxu0
        %v2166 = vadd.f32 0.0, %v2165
        %v2167 = vpop.f32.mrf.mxu0
        %v2168 = vpop.f32.mrf.mxu0
        %v2169 = vadd.f32 0.0, %v2168
        %v2170 = vpop.f32.mrf.mxu0
        %2171 = vmatprep.mubr.bf16.mxu0 0
        %2172 = vmatmul.mubr.bf16.gmra.mxu0 %v1794
        %v2173 = vpop.f32.mrf.mxu0
        %v2174 = vadd.f32 0.0, %v2173
        %v2175 = vpop.f32.mrf.mxu0
        %v2176 = vpop.f32.mrf.mxu0
        %v2177 = vadd.f32 0.0, %v2176
        %v2178 = vpop.f32.mrf.mxu0
        %2179 = vmatprep.mubr.bf16.mxu0 0
        %2180 = vmatmul.mubr.bf16.gmra.mxu0 %v1795
        %v2181 = vpop.f32.mrf.mxu0
        %v2182 = vadd.f32 0.0, %v2181
        %v2183 = vpop.f32.mrf.mxu0
        %v2184 = vpop.f32.mrf.mxu0
        %v2185 = vadd.f32 0.0, %v2184
        %v2186 = vpop.f32.mrf.mxu0
        %2187 = vmatprep.mubr.bf16.mxu0 0
        %2188 = vmatmul.mubr.bf16.gmra.mxu0 %v1796
        %v2189 = vpop.f32.mrf.mxu0
        %v2190 = vadd.f32 0.0, %v2189
        %v2191 = vpop.f32.mrf.mxu0
        %v2192 = vpop.f32.mrf.mxu0
        %v2193 = vadd.f32 0.0, %v2192
        %v2194 = vpop.f32.mrf.mxu0
        %2195 = vmatprep.mubr.bf16.mxu0 0
        %2196 = vmatmul.mubr.bf16.gmra.mxu0 %v1797
        %v2197 = vpop.f32.mrf.mxu0
        %v2198 = vadd.f32 0.0, %v2197
        %v2199 = vpop.f32.mrf.mxu0
        %v2200 = vpop.f32.mrf.mxu0
        %v2201 = vadd.f32 0.0, %v2200
        %v2202 = vpop.f32.mrf.mxu0
        %2203 = vmatprep.mubr.bf16.mxu0 0
        %2204 = vmatmul.mubr.bf16.gmra.mxu0 %v1798
        %v2205 = vpop.f32.mrf.mxu0
        %v2206 = vadd.f32 0.0, %v2205
        %v2207 = vpop.f32.mrf.mxu0
        %v2208 = vpop.f32.mrf.mxu0
        %v2209 = vadd.f32 0.0, %v2208
        %v2210 = vpop.f32.mrf.mxu0
        %2211 = vmatprep.mubr.bf16.mxu0 0
        %2212 = vmatmul.mubr.bf16.gmra.mxu0 %v1799
        %v2213 = vpop.f32.mrf.mxu0
        %v2214 = vadd.f32 0.0, %v2213
        %v2215 = vpop.f32.mrf.mxu0
        %v2216 = vpop.f32.mrf.mxu0
        %v2217 = vadd.f32 0.0, %v2216
        %v2218 = vpop.f32.mrf.mxu0
        %2219 = vmatprep.mubr.bf16.mxu0 0
        %2220 = vmatmul.mubr.bf16.gmra.mxu0 %v1800
        %v2221 = vpop.f32.mrf.mxu0
        %v2222 = vadd.f32 0.0, %v2221
        %v2223 = vpop.f32.mrf.mxu0
        %v2224 = vpop.f32.mrf.mxu0
        %v2225 = vadd.f32 0.0, %v2224
        %v2226 = vpop.f32.mrf.mxu0
        %2227 = vmatprep.mubr.bf16.mxu0 0
        %2228 = vmatmul.mubr.bf16.gmra.mxu0 %v1801
        %v2229 = vpop.f32.mrf.mxu0
        %v2230 = vadd.f32 0.0, %v2229
        %v2231 = vpop.f32.mrf.mxu0
        %v2232 = vpop.f32.mrf.mxu0
        %v2233 = vadd.f32 0.0, %v2232
        %v2234 = vpop.f32.mrf.mxu0
        %2235 = vmatprep.mubr.bf16.mxu0 0
        %2236 = vmatmul.mubr.bf16.gmra.mxu0 %v1802
        %v2237 = vpop.f32.mrf.mxu0
        %v2238 = vadd.f32 0.0, %v2237
        %v2239 = vpop.f32.mrf.mxu0
        %v2240 = vpop.f32.mrf.mxu0
        %v2241 = vadd.f32 0.0, %v2240
        %v2242 = vpop.f32.mrf.mxu0
        %2243 = vmatprep.mubr.bf16.mxu0 0
        %2244 = vmatmul.mubr.bf16.gmra.mxu0 %v1803
        %v2245 = vpop.f32.mrf.mxu0
        %v2246 = vadd.f32 0.0, %v2245
        %v2247 = vpop.f32.mrf.mxu0
        %v2248 = vpop.f32.mrf.mxu0
        %v2249 = vadd.f32 0.0, %v2248
        %v2250 = vpop.f32.mrf.mxu0
        %2251 = vmatprep.mubr.bf16.mxu0 0
        %2252 = vmatmul.mubr.bf16.gmra.mxu0 %v1804
        %v2253 = vpop.f32.mrf.mxu0
        %v2254 = vadd.f32 0.0, %v2253
        %v2255 = vpop.f32.mrf.mxu0
        %v2256 = vpop.f32.mrf.mxu0
        %v2257 = vadd.f32 0.0, %v2256
        %v2258 = vpop.f32.mrf.mxu0
        %2259 = vmatprep.mubr.bf16.mxu0 0
        %2260 = vmatmul.mubr.bf16.gmra.mxu0 %v1805
        %v2261 = vpop.f32.mrf.mxu0
        %v2262 = vadd.f32 0.0, %v2261
        %v2263 = vpop.f32.mrf.mxu0
        %v2264 = vpop.f32.mrf.mxu0
        %v2265 = vadd.f32 0.0, %v2264
        %v2266 = vpop.f32.mrf.mxu0
        %2267 = vmatprep.mubr.bf16.mxu0 0
        %2268 = vmatmul.mubr.bf16.gmra.mxu0 %v1806
        %v2269 = vpop.f32.mrf.mxu0
        %v2270 = vadd.f32 0.0, %v2269
        %v2271 = vpop.f32.mrf.mxu0
        %v2272 = vpop.f32.mrf.mxu0
        %v2273 = vadd.f32 0.0, %v2272
        %v2274 = vpop.f32.mrf.mxu0
        %2275 = vmatprep.mubr.bf16.mxu0 0
        %2276 = vmatmul.mubr.bf16.gmra.mxu0 %v1807
        %v2277 = vpop.f32.mrf.mxu0
        %v2278 = vadd.f32 0.0, %v2277
        %v2279 = vpop.f32.mrf.mxu0
        %v2280 = vpop.f32.mrf.mxu0
        %v2281 = vadd.f32 0.0, %v2280
        %v2282 = vpop.f32.mrf.mxu0
        %2283 = vmatprep.mubr.bf16.mxu0 0
        %2284 = vmatmul.mubr.bf16.gmra.mxu0 %v1808
        %v2285 = vpop.f32.mrf.mxu0
        %v2286 = vadd.f32 0.0, %v2285
        %v2287 = vpop.f32.mrf.mxu0
        %v2288 = vpop.f32.mrf.mxu0
        %v2289 = vadd.f32 0.0, %v2288
        %v2290 = vpop.f32.mrf.mxu0
        %2291 = vmatprep.mubr.bf16.mxu0 0
        %2292 = vmatmul.mubr.bf16.gmra.mxu0 %v1809
        %v2293 = vpop.f32.mrf.mxu0
        %v2294 = vadd.f32 0.0, %v2293
        %v2295 = vpop.f32.mrf.mxu0
        %v2296 = vpop.f32.mrf.mxu0
        %v2297 = vadd.f32 0.0, %v2296
        %v2298 = vpop.f32.mrf.mxu0
        %2299 = vmatprep.mubr.bf16.mxu0 0
        %2300 = vmatmul.mubr.bf16.gmra.mxu0 %v1810
        %v2301 = vpop.f32.mrf.mxu0
        %v2302 = vadd.f32 0.0, %v2301
        %v2303 = vpop.f32.mrf.mxu0
        %v2304 = vpop.f32.mrf.mxu0
        %v2305 = vadd.f32 0.0, %v2304
        %v2306 = vpop.f32.mrf.mxu0
        %2307 = vmatprep.mubr.bf16.mxu0 0
        %2308 = vmatmul.mubr.bf16.gmra.mxu0 %v1811
        %v2309 = vpop.f32.mrf.mxu0
        %v2310 = vadd.f32 0.0, %v2309
        %v2311 = vpop.f32.mrf.mxu0
        %v2312 = vpop.f32.mrf.mxu0
        %v2313 = vadd.f32 0.0, %v2312
        %v2314 = vpop.f32.mrf.mxu0
        %2315 = vmatprep.mubr.bf16.mxu0 0
        %2316 = vmatmul.mubr.bf16.gmra.mxu0 %v1812
        %v2317 = vpop.f32.mrf.mxu0
        %v2318 = vadd.f32 0.0, %v2317
        %v2319 = vpop.f32.mrf.mxu0
        %v2320 = vpop.f32.mrf.mxu0
        %v2321 = vadd.f32 0.0, %v2320
        %v2322 = vpop.f32.mrf.mxu0
        %2323 = vmatprep.mubr.bf16.mxu0 0
        %2324 = vmatmul.mubr.bf16.gmra.mxu0 %v1813
        %v2325 = vpop.f32.mrf.mxu0
        %v2326 = vadd.f32 0.0, %v2325
        %v2327 = vpop.f32.mrf.mxu0
        %v2328 = vpop.f32.mrf.mxu0
        %v2329 = vadd.f32 0.0, %v2328
        %v2330 = vpop.f32.mrf.mxu0
        %2331 = vmatprep.mubr.bf16.mxu0 0
        %2332 = vmatmul.mubr.bf16.gmra.mxu0 %v1814
        %v2333 = vpop.f32.mrf.mxu0
        %v2334 = vadd.f32 0.0, %v2333
        %v2335 = vpop.f32.mrf.mxu0
        %v2336 = vpop.f32.mrf.mxu0
        %v2337 = vadd.f32 0.0, %v2336
        %v2338 = vpop.f32.mrf.mxu0
        %2339 = vmatprep.mubr.bf16.mxu0 0
        %2340 = vmatmul.mubr.bf16.gmra.mxu0 %v1815
        %v2341 = vpop.f32.mrf.mxu0
        %v2342 = vadd.f32 0.0, %v2341
        %v2343 = vpop.f32.mrf.mxu0
        %v2344 = vpop.f32.mrf.mxu0
        %v2345 = vadd.f32 0.0, %v2344
        %v2346 = vpop.f32.mrf.mxu0
        %2347 = vmatprep.mubr.bf16.mxu0 0
        %2348 = vmatmul.mubr.bf16.gmra.mxu0 %v1816
        %v2349 = vpop.f32.mrf.mxu0
        %v2350 = vadd.f32 0.0, %v2349
        %v2351 = vpop.f32.mrf.mxu0
        %v2352 = vpop.f32.mrf.mxu0
        %v2353 = vadd.f32 0.0, %v2352
        %v2354 = vpop.f32.mrf.mxu0
        %2355 = vmatprep.mubr.bf16.mxu0 0
        %2356 = vmatmul.mubr.bf16.gmra.mxu0 %v1817
        %v2357 = vpop.f32.mrf.mxu0
        %v2358 = vadd.f32 0.0, %v2357
        %v2359 = vpop.f32.mrf.mxu0
        %v2360 = vpop.f32.mrf.mxu0
        %v2361 = vadd.f32 0.0, %v2360
        %v2362 = vpop.f32.mrf.mxu0
        %2363 = vmatprep.mubr.bf16.mxu0 0
        %2364 = vmatmul.mubr.bf16.gmra.mxu0 %v1818
        %v2365 = vpop.f32.mrf.mxu0
        %v2366 = vadd.f32 0.0, %v2365
        %v2367 = vpop.f32.mrf.mxu0
        %v2368 = vpop.f32.mrf.mxu0
        %v2369 = vadd.f32 0.0, %v2368
        %v2370 = vpop.f32.mrf.mxu0
        %2371 = vdwg.mxu0
        %2372 = vadd.xlane.f32.xlu0 %v1862
        %v2373 = vpop.xlane.xlu0 %2372
        %2374 = vadd.xlane.f32.xlu0 %v1865
        %v2375 = vpop.xlane.xlu0 %2374
        %2376 = vadd.xlane.f32.xlu0 %v1870
        %v2377 = vpop.xlane.xlu0 %2376
        %2378 = vadd.xlane.f32.xlu0 %v1873
        %v2379 = vpop.xlane.xlu0 %2378
        %2380 = vadd.xlane.f32.xlu0 %v1878
        %v2381 = vpop.xlane.xlu0 %2380
        %2382 = vadd.xlane.f32.xlu0 %v1881
        %v2383 = vpop.xlane.xlu0 %2382
        %2384 = vadd.xlane.f32.xlu0 %v1886
        %v2385 = vpop.xlane.xlu0 %2384
        %2386 = vadd.xlane.f32.xlu0 %v1889
        %v2387 = vpop.xlane.xlu0 %2386
        %2388 = vadd.xlane.f32.xlu0 %v1894
        %v2389 = vpop.xlane.xlu0 %2388
        %2390 = vadd.xlane.f32.xlu0 %v1897
        %v2391 = vpop.xlane.xlu0 %2390
        %2392 = vadd.xlane.f32.xlu0 %v1902
        %v2393 = vpop.xlane.xlu0 %2392
        %2394 = vadd.xlane.f32.xlu0 %v1905
        %v2395 = vpop.xlane.xlu0 %2394
        %2396 = vadd.xlane.f32.xlu0 %v1910
        %v2397 = vpop.xlane.xlu0 %2396
        %2398 = vadd.xlane.f32.xlu0 %v1913
        %v2399 = vpop.xlane.xlu0 %2398
        %2400 = vadd.xlane.f32.xlu0 %v1918
        %v2401 = vpop.xlane.xlu0 %2400
        %2402 = vadd.xlane.f32.xlu0 %v1921
        %v2403 = vpop.xlane.xlu0 %2402
        %2404 = vadd.xlane.f32.xlu0 %v1926
        %v2405 = vpop.xlane.xlu0 %2404
        %2406 = vadd.xlane.f32.xlu0 %v1929
        %v2407 = vpop.xlane.xlu0 %2406
        %2408 = vadd.xlane.f32.xlu0 %v1934
        %v2409 = vpop.xlane.xlu0 %2408
        %2410 = vadd.xlane.f32.xlu0 %v1937
        %v2411 = vpop.xlane.xlu0 %2410
        %2412 = vadd.xlane.f32.xlu0 %v1942
        %v2413 = vpop.xlane.xlu0 %2412
        %2414 = vadd.xlane.f32.xlu0 %v1945
        %v2415 = vpop.xlane.xlu0 %2414
        %2416 = vadd.xlane.f32.xlu0 %v1950
        %v2417 = vpop.xlane.xlu0 %2416
        %2418 = vadd.xlane.f32.xlu0 %v1953
        %v2419 = vpop.xlane.xlu0 %2418
        %2420 = vadd.xlane.f32.xlu0 %v1958
        %v2421 = vpop.xlane.xlu0 %2420
        %2422 = vadd.xlane.f32.xlu0 %v1961
        %v2423 = vpop.xlane.xlu0 %2422
        %2424 = vadd.xlane.f32.xlu0 %v1966
        %v2425 = vpop.xlane.xlu0 %2424
        %2426 = vadd.xlane.f32.xlu0 %v1969
        %v2427 = vpop.xlane.xlu0 %2426
        %2428 = vadd.xlane.f32.xlu0 %v1974
        %v2429 = vpop.xlane.xlu0 %2428
        %2430 = vadd.xlane.f32.xlu0 %v1977
        %v2431 = vpop.xlane.xlu0 %2430
        %2432 = vadd.xlane.f32.xlu0 %v1982
        %v2433 = vpop.xlane.xlu0 %2432
        %2434 = vadd.xlane.f32.xlu0 %v1985
        %v2435 = vpop.xlane.xlu0 %2434
        %2436 = vadd.xlane.f32.xlu0 %v1990
        %v2437 = vpop.xlane.xlu0 %2436
        %2438 = vadd.xlane.f32.xlu0 %v1993
        %v2439 = vpop.xlane.xlu0 %2438
        %2440 = vadd.xlane.f32.xlu0 %v1998
        %v2441 = vpop.xlane.xlu0 %2440
        %2442 = vadd.xlane.f32.xlu0 %v2001
        %v2443 = vpop.xlane.xlu0 %2442
        %2444 = vadd.xlane.f32.xlu0 %v2006
        %v2445 = vpop.xlane.xlu0 %2444
        %2446 = vadd.xlane.f32.xlu0 %v2009
        %v2447 = vpop.xlane.xlu0 %2446
        %2448 = vadd.xlane.f32.xlu0 %v2014
        %v2449 = vpop.xlane.xlu0 %2448
        %2450 = vadd.xlane.f32.xlu0 %v2017
        %v2451 = vpop.xlane.xlu0 %2450
        %2452 = vadd.xlane.f32.xlu0 %v2022
        %v2453 = vpop.xlane.xlu0 %2452
        %2454 = vadd.xlane.f32.xlu0 %v2025
        %v2455 = vpop.xlane.xlu0 %2454
        %2456 = vadd.xlane.f32.xlu0 %v2030
        %v2457 = vpop.xlane.xlu0 %2456
        %2458 = vadd.xlane.f32.xlu0 %v2033
        %v2459 = vpop.xlane.xlu0 %2458
        %2460 = vadd.xlane.f32.xlu0 %v2038
        %v2461 = vpop.xlane.xlu0 %2460
        %2462 = vadd.xlane.f32.xlu0 %v2041
        %v2463 = vpop.xlane.xlu0 %2462
        %2464 = vadd.xlane.f32.xlu0 %v2046
        %v2465 = vpop.xlane.xlu0 %2464
        %2466 = vadd.xlane.f32.xlu0 %v2049
        %v2467 = vpop.xlane.xlu0 %2466
        %2468 = vadd.xlane.f32.xlu0 %v2054
        %v2469 = vpop.xlane.xlu0 %2468
        %2470 = vadd.xlane.f32.xlu0 %v2057
        %v2471 = vpop.xlane.xlu0 %2470
        %2472 = vadd.xlane.f32.xlu0 %v2062
        %v2473 = vpop.xlane.xlu0 %2472
        %2474 = vadd.xlane.f32.xlu0 %v2065
        %v2475 = vpop.xlane.xlu0 %2474
        %2476 = vadd.xlane.f32.xlu0 %v2070
        %v2477 = vpop.xlane.xlu0 %2476
        %2478 = vadd.xlane.f32.xlu0 %v2073
        %v2479 = vpop.xlane.xlu0 %2478
        %2480 = vadd.xlane.f32.xlu0 %v2078
        %v2481 = vpop.xlane.xlu0 %2480
        %2482 = vadd.xlane.f32.xlu0 %v2081
        %v2483 = vpop.xlane.xlu0 %2482
        %2484 = vadd.xlane.f32.xlu0 %v2086
        %v2485 = vpop.xlane.xlu0 %2484
        %2486 = vadd.xlane.f32.xlu0 %v2089
        %v2487 = vpop.xlane.xlu0 %2486
        %2488 = vadd.xlane.f32.xlu0 %v2094
        %v2489 = vpop.xlane.xlu0 %2488
        %2490 = vadd.xlane.f32.xlu0 %v2097
        %v2491 = vpop.xlane.xlu0 %2490
        %2492 = vadd.xlane.f32.xlu0 %v2102
        %v2493 = vpop.xlane.xlu0 %2492
        %2494 = vadd.xlane.f32.xlu0 %v2105
        %v2495 = vpop.xlane.xlu0 %2494
        %2496 = vadd.xlane.f32.xlu0 %v2110
        %v2497 = vpop.xlane.xlu0 %2496
        %2498 = vadd.xlane.f32.xlu0 %v2113
        %v2499 = vpop.xlane.xlu0 %2498
        %2500 = vadd.xlane.f32.xlu0 %v2118
        %v2501 = vpop.xlane.xlu0 %2500
        %2502 = vadd.xlane.f32.xlu0 %v2121
        %v2503 = vpop.xlane.xlu0 %2502
        %2504 = vadd.xlane.f32.xlu0 %v2126
        %v2505 = vpop.xlane.xlu0 %2504
        %2506 = vadd.xlane.f32.xlu0 %v2129
        %v2507 = vpop.xlane.xlu0 %2506
        %2508 = vadd.xlane.f32.xlu0 %v2134
        %v2509 = vpop.xlane.xlu0 %2508
        %2510 = vadd.xlane.f32.xlu0 %v2137
        %v2511 = vpop.xlane.xlu0 %2510
        %2512 = vadd.xlane.f32.xlu0 %v2142
        %v2513 = vpop.xlane.xlu0 %2512
        %2514 = vadd.xlane.f32.xlu0 %v2145
        %v2515 = vpop.xlane.xlu0 %2514
        %2516 = vadd.xlane.f32.xlu0 %v2150
        %v2517 = vpop.xlane.xlu0 %2516
        %2518 = vadd.xlane.f32.xlu0 %v2153
        %v2519 = vpop.xlane.xlu0 %2518
        %2520 = vadd.xlane.f32.xlu0 %v2158
        %v2521 = vpop.xlane.xlu0 %2520
        %2522 = vadd.xlane.f32.xlu0 %v2161
        %v2523 = vpop.xlane.xlu0 %2522
        %2524 = vadd.xlane.f32.xlu0 %v2166
        %v2525 = vpop.xlane.xlu0 %2524
        %2526 = vadd.xlane.f32.xlu0 %v2169
        %v2527 = vpop.xlane.xlu0 %2526
        %2528 = vadd.xlane.f32.xlu0 %v2174
        %v2529 = vpop.xlane.xlu0 %2528
        %2530 = vadd.xlane.f32.xlu0 %v2177
        %v2531 = vpop.xlane.xlu0 %2530
        %2532 = vadd.xlane.f32.xlu0 %v2182
        %v2533 = vpop.xlane.xlu0 %2532
        %2534 = vadd.xlane.f32.xlu0 %v2185
        %v2535 = vpop.xlane.xlu0 %2534
        %2536 = vadd.xlane.f32.xlu0 %v2190
        %v2537 = vpop.xlane.xlu0 %2536
        %2538 = vadd.xlane.f32.xlu0 %v2193
        %v2539 = vpop.xlane.xlu0 %2538
        %2540 = vadd.xlane.f32.xlu0 %v2198
        %v2541 = vpop.xlane.xlu0 %2540
        %2542 = vadd.xlane.f32.xlu0 %v2201
        %v2543 = vpop.xlane.xlu0 %2542
        %2544 = vadd.xlane.f32.xlu0 %v2206
        %v2545 = vpop.xlane.xlu0 %2544
        %2546 = vadd.xlane.f32.xlu0 %v2209
        %v2547 = vpop.xlane.xlu0 %2546
        %2548 = vadd.xlane.f32.xlu0 %v2214
        %v2549 = vpop.xlane.xlu0 %2548
        %2550 = vadd.xlane.f32.xlu0 %v2217
        %v2551 = vpop.xlane.xlu0 %2550
        %2552 = vadd.xlane.f32.xlu0 %v2222
        %v2553 = vpop.xlane.xlu0 %2552
        %2554 = vadd.xlane.f32.xlu0 %v2225
        %v2555 = vpop.xlane.xlu0 %2554
        %2556 = vadd.xlane.f32.xlu0 %v2230
        %v2557 = vpop.xlane.xlu0 %2556
        %2558 = vadd.xlane.f32.xlu0 %v2233
        %v2559 = vpop.xlane.xlu0 %2558
        %2560 = vadd.xlane.f32.xlu0 %v2238
        %v2561 = vpop.xlane.xlu0 %2560
        %2562 = vadd.xlane.f32.xlu0 %v2241
        %v2563 = vpop.xlane.xlu0 %2562
        %2564 = vadd.xlane.f32.xlu0 %v2246
        %v2565 = vpop.xlane.xlu0 %2564
        %2566 = vadd.xlane.f32.xlu0 %v2249
        %v2567 = vpop.xlane.xlu0 %2566
        %2568 = vadd.xlane.f32.xlu0 %v2254
        %v2569 = vpop.xlane.xlu0 %2568
        %2570 = vadd.xlane.f32.xlu0 %v2257
        %v2571 = vpop.xlane.xlu0 %2570
        %2572 = vadd.xlane.f32.xlu0 %v2262
        %v2573 = vpop.xlane.xlu0 %2572
        %2574 = vadd.xlane.f32.xlu0 %v2265
        %v2575 = vpop.xlane.xlu0 %2574
        %2576 = vadd.xlane.f32.xlu0 %v2270
        %v2577 = vpop.xlane.xlu0 %2576
        %2578 = vadd.xlane.f32.xlu0 %v2273
        %v2579 = vpop.xlane.xlu0 %2578
        %2580 = vadd.xlane.f32.xlu0 %v2278
        %v2581 = vpop.xlane.xlu0 %2580
        %2582 = vadd.xlane.f32.xlu0 %v2281
        %v2583 = vpop.xlane.xlu0 %2582
        %2584 = vadd.xlane.f32.xlu0 %v2286
        %v2585 = vpop.xlane.xlu0 %2584
        %2586 = vadd.xlane.f32.xlu0 %v2289
        %v2587 = vpop.xlane.xlu0 %2586
        %2588 = vadd.xlane.f32.xlu0 %v2294
        %v2589 = vpop.xlane.xlu0 %2588
        %2590 = vadd.xlane.f32.xlu0 %v2297
        %v2591 = vpop.xlane.xlu0 %2590
        %2592 = vadd.xlane.f32.xlu0 %v2302
        %v2593 = vpop.xlane.xlu0 %2592
        %2594 = vadd.xlane.f32.xlu0 %v2305
        %v2595 = vpop.xlane.xlu0 %2594
        %2596 = vadd.xlane.f32.xlu0 %v2310
        %v2597 = vpop.xlane.xlu0 %2596
        %2598 = vadd.xlane.f32.xlu0 %v2313
        %v2599 = vpop.xlane.xlu0 %2598
        %2600 = vadd.xlane.f32.xlu0 %v2318
        %v2601 = vpop.xlane.xlu0 %2600
        %2602 = vadd.xlane.f32.xlu0 %v2321
        %v2603 = vpop.xlane.xlu0 %2602
        %2604 = vadd.xlane.f32.xlu0 %v2326
        %v2605 = vpop.xlane.xlu0 %2604
        %2606 = vadd.xlane.f32.xlu0 %v2329
        %v2607 = vpop.xlane.xlu0 %2606
        %2608 = vadd.xlane.f32.xlu0 %v2334
        %v2609 = vpop.xlane.xlu0 %2608
        %2610 = vadd.xlane.f32.xlu0 %v2337
        %v2611 = vpop.xlane.xlu0 %2610
        %2612 = vadd.xlane.f32.xlu0 %v2342
        %v2613 = vpop.xlane.xlu0 %2612
        %2614 = vadd.xlane.f32.xlu0 %v2345
        %v2615 = vpop.xlane.xlu0 %2614
        %2616 = vadd.xlane.f32.xlu0 %v2350
        %v2617 = vpop.xlane.xlu0 %2616
        %2618 = vadd.xlane.f32.xlu0 %v2353
        %v2619 = vpop.xlane.xlu0 %2618
        %2620 = vadd.xlane.f32.xlu0 %v2358
        %v2621 = vpop.xlane.xlu0 %2620
        %2622 = vadd.xlane.f32.xlu0 %v2361
        %v2623 = vpop.xlane.xlu0 %2622
        %2624 = vadd.xlane.f32.xlu0 %v2366
        %v2625 = vpop.xlane.xlu0 %2624
        %2626 = vadd.xlane.f32.xlu0 %v2369
        %v2627 = vpop.xlane.xlu0 %2626
        %v2628 = vmul.f32 %v2373, %v484
        %v2629 = vmul.f32 %v2375, %v484
        %v2630 = vmul.f32 %v2377, %v484
        %v2631 = vmul.f32 %v2379, %v484
        %v2632 = vmul.f32 %v2381, %v484
        %v2633 = vmul.f32 %v2383, %v484
        %v2634 = vmul.f32 %v2385, %v484
        %v2635 = vmul.f32 %v2387, %v484
        %v2636 = vmul.f32 %v2389, %v484
        %v2637 = vmul.f32 %v2391, %v484
        %v2638 = vmul.f32 %v2393, %v484
        %v2639 = vmul.f32 %v2395, %v484
        %v2640 = vmul.f32 %v2397, %v484
        %v2641 = vmul.f32 %v2399, %v484
        %v2642 = vmul.f32 %v2401, %v484
        %v2643 = vmul.f32 %v2403, %v484
        %v2644 = vmul.f32 %v2405, %v484
        %v2645 = vmul.f32 %v2407, %v484
        %v2646 = vmul.f32 %v2409, %v484
        %v2647 = vmul.f32 %v2411, %v484
        %v2648 = vmul.f32 %v2413, %v484
        %v2649 = vmul.f32 %v2415, %v484
        %v2650 = vmul.f32 %v2417, %v484
        %v2651 = vmul.f32 %v2419, %v484
        %v2652 = vmul.f32 %v2421, %v484
        %v2653 = vmul.f32 %v2423, %v484
        %v2654 = vmul.f32 %v2425, %v484
        %v2655 = vmul.f32 %v2427, %v484
        %v2656 = vmul.f32 %v2429, %v484
        %v2657 = vmul.f32 %v2431, %v484
        %v2658 = vmul.f32 %v2433, %v484
        %v2659 = vmul.f32 %v2435, %v484
        %v2660 = vmul.f32 %v2437, %v484
        %v2661 = vmul.f32 %v2439, %v484
        %v2662 = vmul.f32 %v2441, %v484
        %v2663 = vmul.f32 %v2443, %v484
        %v2664 = vmul.f32 %v2445, %v484
        %v2665 = vmul.f32 %v2447, %v484
        %v2666 = vmul.f32 %v2449, %v484
        %v2667 = vmul.f32 %v2451, %v484
        %v2668 = vmul.f32 %v2453, %v484
        %v2669 = vmul.f32 %v2455, %v484
        %v2670 = vmul.f32 %v2457, %v484
        %v2671 = vmul.f32 %v2459, %v484
        %v2672 = vmul.f32 %v2461, %v484
        %v2673 = vmul.f32 %v2463, %v484
        %v2674 = vmul.f32 %v2465, %v484
        %v2675 = vmul.f32 %v2467, %v484
        %v2676 = vmul.f32 %v2469, %v484
        %v2677 = vmul.f32 %v2471, %v484
        %v2678 = vmul.f32 %v2473, %v484
        %v2679 = vmul.f32 %v2475, %v484
        %v2680 = vmul.f32 %v2477, %v484
        %v2681 = vmul.f32 %v2479, %v484
        %v2682 = vmul.f32 %v2481, %v484
        %v2683 = vmul.f32 %v2483, %v484
        %v2684 = vmul.f32 %v2485, %v484
        %v2685 = vmul.f32 %v2487, %v484
        %v2686 = vmul.f32 %v2489, %v484
        %v2687 = vmul.f32 %v2491, %v484
        %v2688 = vmul.f32 %v2493, %v484
        %v2689 = vmul.f32 %v2495, %v484
        %v2690 = vmul.f32 %v2497, %v484
        %v2691 = vmul.f32 %v2499, %v484
        %v2692 = vmul.f32 %v2501, %v484
        %v2693 = vmul.f32 %v2503, %v484
        %v2694 = vmul.f32 %v2505, %v484
        %v2695 = vmul.f32 %v2507, %v484
        %v2696 = vmul.f32 %v2509, %v484
        %v2697 = vmul.f32 %v2511, %v484
        %v2698 = vmul.f32 %v2513, %v484
        %v2699 = vmul.f32 %v2515, %v484
        %v2700 = vmul.f32 %v2517, %v484
        %v2701 = vmul.f32 %v2519, %v484
        %v2702 = vmul.f32 %v2521, %v484
        %v2703 = vmul.f32 %v2523, %v484
        %v2704 = vmul.f32 %v2525, %v484
        %v2705 = vmul.f32 %v2527, %v484
        %v2706 = vmul.f32 %v2529, %v484
        %v2707 = vmul.f32 %v2531, %v484
        %v2708 = vmul.f32 %v2533, %v484
        %v2709 = vmul.f32 %v2535, %v484
        %v2710 = vmul.f32 %v2537, %v484
        %v2711 = vmul.f32 %v2539, %v484
        %v2712 = vmul.f32 %v2541, %v484
        %v2713 = vmul.f32 %v2543, %v484
        %v2714 = vmul.f32 %v2545, %v484
        %v2715 = vmul.f32 %v2547, %v484
        %v2716 = vmul.f32 %v2549, %v484
        %v2717 = vmul.f32 %v2551, %v484
        %v2718 = vmul.f32 %v2553, %v484
        %v2719 = vmul.f32 %v2555, %v484
        %v2720 = vmul.f32 %v2557, %v484
        %v2721 = vmul.f32 %v2559, %v484
        %v2722 = vmul.f32 %v2561, %v484
        %v2723 = vmul.f32 %v2563, %v484
        %v2724 = vmul.f32 %v2565, %v484
        %v2725 = vmul.f32 %v2567, %v484
        %v2726 = vmul.f32 %v2569, %v484
        %v2727 = vmul.f32 %v2571, %v484
        %v2728 = vmul.f32 %v2573, %v484
        %v2729 = vmul.f32 %v2575, %v484
        %v2730 = vmul.f32 %v2577, %v484
        %v2731 = vmul.f32 %v2579, %v484
        %v2732 = vmul.f32 %v2581, %v484
        %v2733 = vmul.f32 %v2583, %v484
        %v2734 = vmul.f32 %v2585, %v484
        %v2735 = vmul.f32 %v2587, %v484
        %v2736 = vmul.f32 %v2589, %v484
        %v2737 = vmul.f32 %v2591, %v484
        %v2738 = vmul.f32 %v2593, %v484
        %v2739 = vmul.f32 %v2595, %v484
        %v2740 = vmul.f32 %v2597, %v484
        %v2741 = vmul.f32 %v2599, %v484
        %v2742 = vmul.f32 %v2601, %v484
        %v2743 = vmul.f32 %v2603, %v484
        %v2744 = vmul.f32 %v2605, %v484
        %v2745 = vmul.f32 %v2607, %v484
        %v2746 = vmul.f32 %v2609, %v484
        %v2747 = vmul.f32 %v2611, %v484
        %v2748 = vmul.f32 %v2613, %v484
        %v2749 = vmul.f32 %v2615, %v484
        %v2750 = vmul.f32 %v2617, %v484
        %v2751 = vmul.f32 %v2619, %v484
        %v2752 = vmul.f32 %v2621, %v484
        %v2753 = vmul.f32 %v2623, %v484
        %v2754 = vmul.f32 %v2625, %v484
        %v2755 = vmul.f32 %v2627, %v484
        %v2756 = vmul.f32 %v1862, %v1862
        %v2757 = vmul.f32 %v1865, %v1865
        %v2758 = vmul.f32 %v1870, %v1870
        %v2759 = vmul.f32 %v1873, %v1873
        %v2760 = vmul.f32 %v1878, %v1878
        %v2761 = vmul.f32 %v1881, %v1881
        %v2762 = vmul.f32 %v1886, %v1886
        %v2763 = vmul.f32 %v1889, %v1889
        %v2764 = vmul.f32 %v1894, %v1894
        %v2765 = vmul.f32 %v1897, %v1897
        %v2766 = vmul.f32 %v1902, %v1902
        %v2767 = vmul.f32 %v1905, %v1905
        %v2768 = vmul.f32 %v1910, %v1910
        %v2769 = vmul.f32 %v1913, %v1913
        %v2770 = vmul.f32 %v1918, %v1918
        %v2771 = vmul.f32 %v1921, %v1921
        %v2772 = vmul.f32 %v1926, %v1926
        %v2773 = vmul.f32 %v1929, %v1929
        %v2774 = vmul.f32 %v1934, %v1934
        %v2775 = vmul.f32 %v1937, %v1937
        %v2776 = vmul.f32 %v1942, %v1942
        %v2777 = vmul.f32 %v1945, %v1945
        %v2778 = vmul.f32 %v1950, %v1950
        %v2779 = vmul.f32 %v1953, %v1953
        %v2780 = vmul.f32 %v1958, %v1958
        %v2781 = vmul.f32 %v1961, %v1961
        %v2782 = vmul.f32 %v1966, %v1966
        %v2783 = vmul.f32 %v1969, %v1969
        %v2784 = vmul.f32 %v1974, %v1974
        %v2785 = vmul.f32 %v1977, %v1977
        %v2786 = vmul.f32 %v1982, %v1982
        %v2787 = vmul.f32 %v1985, %v1985
        %v2788 = vmul.f32 %v1990, %v1990
        %v2789 = vmul.f32 %v1993, %v1993
        %v2790 = vmul.f32 %v1998, %v1998
        %v2791 = vmul.f32 %v2001, %v2001
        %v2792 = vmul.f32 %v2006, %v2006
        %v2793 = vmul.f32 %v2009, %v2009
        %v2794 = vmul.f32 %v2014, %v2014
        %v2795 = vmul.f32 %v2017, %v2017
        %v2796 = vmul.f32 %v2022, %v2022
        %v2797 = vmul.f32 %v2025, %v2025
        %v2798 = vmul.f32 %v2030, %v2030
        %v2799 = vmul.f32 %v2033, %v2033
        %v2800 = vmul.f32 %v2038, %v2038
        %v2801 = vmul.f32 %v2041, %v2041
        %v2802 = vmul.f32 %v2046, %v2046
        %v2803 = vmul.f32 %v2049, %v2049
        %v2804 = vmul.f32 %v2054, %v2054
        %v2805 = vmul.f32 %v2057, %v2057
        %v2806 = vmul.f32 %v2062, %v2062
        %v2807 = vmul.f32 %v2065, %v2065
        %v2808 = vmul.f32 %v2070, %v2070
        %v2809 = vmul.f32 %v2073, %v2073
        %v2810 = vmul.f32 %v2078, %v2078
        %v2811 = vmul.f32 %v2081, %v2081
        %v2812 = vmul.f32 %v2086, %v2086
        %v2813 = vmul.f32 %v2089, %v2089
        %v2814 = vmul.f32 %v2094, %v2094
        %v2815 = vmul.f32 %v2097, %v2097
        %v2816 = vmul.f32 %v2102, %v2102
        %v2817 = vmul.f32 %v2105, %v2105
        %v2818 = vmul.f32 %v2110, %v2110
        %v2819 = vmul.f32 %v2113, %v2113
        %v2820 = vmul.f32 %v2118, %v2118
        %v2821 = vmul.f32 %v2121, %v2121
        %v2822 = vmul.f32 %v2126, %v2126
        %v2823 = vmul.f32 %v2129, %v2129
        %v2824 = vmul.f32 %v2134, %v2134
        %v2825 = vmul.f32 %v2137, %v2137
        %v2826 = vmul.f32 %v2142, %v2142
        %v2827 = vmul.f32 %v2145, %v2145
        %v2828 = vmul.f32 %v2150, %v2150
        %v2829 = vmul.f32 %v2153, %v2153
        %v2830 = vmul.f32 %v2158, %v2158
        %v2831 = vmul.f32 %v2161, %v2161
        %v2832 = vmul.f32 %v2166, %v2166
        %v2833 = vmul.f32 %v2169, %v2169
        %v2834 = vmul.f32 %v2174, %v2174
        %v2835 = vmul.f32 %v2177, %v2177
        %v2836 = vmul.f32 %v2182, %v2182
        %v2837 = vmul.f32 %v2185, %v2185
        %v2838 = vmul.f32 %v2190, %v2190
        %v2839 = vmul.f32 %v2193, %v2193
        %v2840 = vmul.f32 %v2198, %v2198
        %v2841 = vmul.f32 %v2201, %v2201
        %v2842 = vmul.f32 %v2206, %v2206
        %v2843 = vmul.f32 %v2209, %v2209
        %v2844 = vmul.f32 %v2214, %v2214
        %v2845 = vmul.f32 %v2217, %v2217
        %v2846 = vmul.f32 %v2222, %v2222
        %v2847 = vmul.f32 %v2225, %v2225
        %v2848 = vmul.f32 %v2230, %v2230
        %v2849 = vmul.f32 %v2233, %v2233
        %v2850 = vmul.f32 %v2238, %v2238
        %v2851 = vmul.f32 %v2241, %v2241
        %v2852 = vmul.f32 %v2246, %v2246
        %v2853 = vmul.f32 %v2249, %v2249
        %v2854 = vmul.f32 %v2254, %v2254
        %v2855 = vmul.f32 %v2257, %v2257
        %v2856 = vmul.f32 %v2262, %v2262
        %v2857 = vmul.f32 %v2265, %v2265
        %v2858 = vmul.f32 %v2270, %v2270
        %v2859 = vmul.f32 %v2273, %v2273
        %v2860 = vmul.f32 %v2278, %v2278
        %v2861 = vmul.f32 %v2281, %v2281
        %v2862 = vmul.f32 %v2286, %v2286
        %v2863 = vmul.f32 %v2289, %v2289
        %v2864 = vmul.f32 %v2294, %v2294
        %v2865 = vmul.f32 %v2297, %v2297
        %v2866 = vmul.f32 %v2302, %v2302
        %v2867 = vmul.f32 %v2305, %v2305
        %v2868 = vmul.f32 %v2310, %v2310
        %v2869 = vmul.f32 %v2313, %v2313
        %v2870 = vmul.f32 %v2318, %v2318
        %v2871 = vmul.f32 %v2321, %v2321
        %v2872 = vmul.f32 %v2326, %v2326
        %v2873 = vmul.f32 %v2329, %v2329
        %v2874 = vmul.f32 %v2334, %v2334
        %v2875 = vmul.f32 %v2337, %v2337
        %v2876 = vmul.f32 %v2342, %v2342
        %v2877 = vmul.f32 %v2345, %v2345
        %v2878 = vmul.f32 %v2350, %v2350
        %v2879 = vmul.f32 %v2353, %v2353
        %v2880 = vmul.f32 %v2358, %v2358
        %v2881 = vmul.f32 %v2361, %v2361
        %v2882 = vmul.f32 %v2366, %v2366
        %v2883 = vmul.f32 %v2369, %v2369
        %2884 = vadd.xlane.f32.xlu0 %v2756
        %v2885 = vpop.xlane.xlu0 %2884
        %2886 = vadd.xlane.f32.xlu0 %v2757
        %v2887 = vpop.xlane.xlu0 %2886
        %2888 = vadd.xlane.f32.xlu0 %v2758
        %v2889 = vpop.xlane.xlu0 %2888
        %2890 = vadd.xlane.f32.xlu0 %v2759
        %v2891 = vpop.xlane.xlu0 %2890
        %2892 = vadd.xlane.f32.xlu0 %v2760
        %v2893 = vpop.xlane.xlu0 %2892
        %2894 = vadd.xlane.f32.xlu0 %v2761
        %v2895 = vpop.xlane.xlu0 %2894
        %2896 = vadd.xlane.f32.xlu0 %v2762
        %v2897 = vpop.xlane.xlu0 %2896
        %2898 = vadd.xlane.f32.xlu0 %v2763
        %v2899 = vpop.xlane.xlu0 %2898
        %2900 = vadd.xlane.f32.xlu0 %v2764
        %v2901 = vpop.xlane.xlu0 %2900
        %2902 = vadd.xlane.f32.xlu0 %v2765
        %v2903 = vpop.xlane.xlu0 %2902
        %2904 = vadd.xlane.f32.xlu0 %v2766
        %v2905 = vpop.xlane.xlu0 %2904
        %2906 = vadd.xlane.f32.xlu0 %v2767
        %v2907 = vpop.xlane.xlu0 %2906
        %2908 = vadd.xlane.f32.xlu0 %v2768
        %v2909 = vpop.xlane.xlu0 %2908
        %2910 = vadd.xlane.f32.xlu0 %v2769
        %v2911 = vpop.xlane.xlu0 %2910
        %2912 = vadd.xlane.f32.xlu0 %v2770
        %v2913 = vpop.xlane.xlu0 %2912
        %2914 = vadd.xlane.f32.xlu0 %v2771
        %v2915 = vpop.xlane.xlu0 %2914
        %2916 = vadd.xlane.f32.xlu0 %v2772
        %v2917 = vpop.xlane.xlu0 %2916
        %2918 = vadd.xlane.f32.xlu0 %v2773
        %v2919 = vpop.xlane.xlu0 %2918
        %2920 = vadd.xlane.f32.xlu0 %v2774
        %v2921 = vpop.xlane.xlu0 %2920
        %2922 = vadd.xlane.f32.xlu0 %v2775
        %v2923 = vpop.xlane.xlu0 %2922
        %2924 = vadd.xlane.f32.xlu0 %v2776
        %v2925 = vpop.xlane.xlu0 %2924
        %2926 = vadd.xlane.f32.xlu0 %v2777
        %v2927 = vpop.xlane.xlu0 %2926
        %2928 = vadd.xlane.f32.xlu0 %v2778
        %v2929 = vpop.xlane.xlu0 %2928
        %2930 = vadd.xlane.f32.xlu0 %v2779
        %v2931 = vpop.xlane.xlu0 %2930
        %2932 = vadd.xlane.f32.xlu0 %v2780
        %v2933 = vpop.xlane.xlu0 %2932
        %2934 = vadd.xlane.f32.xlu0 %v2781
        %v2935 = vpop.xlane.xlu0 %2934
        %2936 = vadd.xlane.f32.xlu0 %v2782
        %v2937 = vpop.xlane.xlu0 %2936
        %2938 = vadd.xlane.f32.xlu0 %v2783
        %v2939 = vpop.xlane.xlu0 %2938
        %2940 = vadd.xlane.f32.xlu0 %v2784
        %v2941 = vpop.xlane.xlu0 %2940
        %2942 = vadd.xlane.f32.xlu0 %v2785
        %v2943 = vpop.xlane.xlu0 %2942
        %2944 = vadd.xlane.f32.xlu0 %v2786
        %v2945 = vpop.xlane.xlu0 %2944
        %2946 = vadd.xlane.f32.xlu0 %v2787
        %v2947 = vpop.xlane.xlu0 %2946
        %2948 = vadd.xlane.f32.xlu0 %v2788
        %v2949 = vpop.xlane.xlu0 %2948
        %2950 = vadd.xlane.f32.xlu0 %v2789
        %v2951 = vpop.xlane.xlu0 %2950
        %2952 = vadd.xlane.f32.xlu0 %v2790
        %v2953 = vpop.xlane.xlu0 %2952
        %2954 = vadd.xlane.f32.xlu0 %v2791
        %v2955 = vpop.xlane.xlu0 %2954
        %2956 = vadd.xlane.f32.xlu0 %v2792
        %v2957 = vpop.xlane.xlu0 %2956
        %2958 = vadd.xlane.f32.xlu0 %v2793
        %v2959 = vpop.xlane.xlu0 %2958
        %2960 = vadd.xlane.f32.xlu0 %v2794
        %v2961 = vpop.xlane.xlu0 %2960
        %2962 = vadd.xlane.f32.xlu0 %v2795
        %v2963 = vpop.xlane.xlu0 %2962
        %2964 = vadd.xlane.f32.xlu0 %v2796
        %v2965 = vpop.xlane.xlu0 %2964
        %2966 = vadd.xlane.f32.xlu0 %v2797
        %v2967 = vpop.xlane.xlu0 %2966
        %2968 = vadd.xlane.f32.xlu0 %v2798
        %v2969 = vpop.xlane.xlu0 %2968
        %2970 = vadd.xlane.f32.xlu0 %v2799
        %v2971 = vpop.xlane.xlu0 %2970
        %2972 = vadd.xlane.f32.xlu0 %v2800
        %v2973 = vpop.xlane.xlu0 %2972
        %2974 = vadd.xlane.f32.xlu0 %v2801
        %v2975 = vpop.xlane.xlu0 %2974
        %2976 = vadd.xlane.f32.xlu0 %v2802
        %v2977 = vpop.xlane.xlu0 %2976
        %2978 = vadd.xlane.f32.xlu0 %v2803
        %v2979 = vpop.xlane.xlu0 %2978
        %2980 = vadd.xlane.f32.xlu0 %v2804
        %v2981 = vpop.xlane.xlu0 %2980
        %2982 = vadd.xlane.f32.xlu0 %v2805
        %v2983 = vpop.xlane.xlu0 %2982
        %2984 = vadd.xlane.f32.xlu0 %v2806
        %v2985 = vpop.xlane.xlu0 %2984
        %2986 = vadd.xlane.f32.xlu0 %v2807
        %v2987 = vpop.xlane.xlu0 %2986
        %2988 = vadd.xlane.f32.xlu0 %v2808
        %v2989 = vpop.xlane.xlu0 %2988
        %2990 = vadd.xlane.f32.xlu0 %v2809
        %v2991 = vpop.xlane.xlu0 %2990
        %2992 = vadd.xlane.f32.xlu0 %v2810
        %v2993 = vpop.xlane.xlu0 %2992
        %2994 = vadd.xlane.f32.xlu0 %v2811
        %v2995 = vpop.xlane.xlu0 %2994
        %2996 = vadd.xlane.f32.xlu0 %v2812
        %v2997 = vpop.xlane.xlu0 %2996
        %2998 = vadd.xlane.f32.xlu0 %v2813
        %v2999 = vpop.xlane.xlu0 %2998
        %3000 = vadd.xlane.f32.xlu0 %v2814
        %v3001 = vpop.xlane.xlu0 %3000
        %3002 = vadd.xlane.f32.xlu0 %v2815
        %v3003 = vpop.xlane.xlu0 %3002
        %3004 = vadd.xlane.f32.xlu0 %v2816
        %v3005 = vpop.xlane.xlu0 %3004
        %3006 = vadd.xlane.f32.xlu0 %v2817
        %v3007 = vpop.xlane.xlu0 %3006
        %3008 = vadd.xlane.f32.xlu0 %v2818
        %v3009 = vpop.xlane.xlu0 %3008
        %3010 = vadd.xlane.f32.xlu0 %v2819
        %v3011 = vpop.xlane.xlu0 %3010
        %3012 = vadd.xlane.f32.xlu0 %v2820
        %v3013 = vpop.xlane.xlu0 %3012
        %3014 = vadd.xlane.f32.xlu0 %v2821
        %v3015 = vpop.xlane.xlu0 %3014
        %3016 = vadd.xlane.f32.xlu0 %v2822
        %v3017 = vpop.xlane.xlu0 %3016
        %3018 = vadd.xlane.f32.xlu0 %v2823
        %v3019 = vpop.xlane.xlu0 %3018
        %3020 = vadd.xlane.f32.xlu0 %v2824
        %v3021 = vpop.xlane.xlu0 %3020
        %3022 = vadd.xlane.f32.xlu0 %v2825
        %v3023 = vpop.xlane.xlu0 %3022
        %3024 = vadd.xlane.f32.xlu0 %v2826
        %v3025 = vpop.xlane.xlu0 %3024
        %3026 = vadd.xlane.f32.xlu0 %v2827
        %v3027 = vpop.xlane.xlu0 %3026
        %3028 = vadd.xlane.f32.xlu0 %v2828
        %v3029 = vpop.xlane.xlu0 %3028
        %3030 = vadd.xlane.f32.xlu0 %v2829
        %v3031 = vpop.xlane.xlu0 %3030
        %3032 = vadd.xlane.f32.xlu0 %v2830
        %v3033 = vpop.xlane.xlu0 %3032
        %3034 = vadd.xlane.f32.xlu0 %v2831
        %v3035 = vpop.xlane.xlu0 %3034
        %3036 = vadd.xlane.f32.xlu0 %v2832
        %v3037 = vpop.xlane.xlu0 %3036
        %3038 = vadd.xlane.f32.xlu0 %v2833
        %v3039 = vpop.xlane.xlu0 %3038
        %3040 = vadd.xlane.f32.xlu0 %v2834
        %v3041 = vpop.xlane.xlu0 %3040
        %3042 = vadd.xlane.f32.xlu0 %v2835
        %v3043 = vpop.xlane.xlu0 %3042
        %3044 = vadd.xlane.f32.xlu0 %v2836
        %v3045 = vpop.xlane.xlu0 %3044
        %3046 = vadd.xlane.f32.xlu0 %v2837
        %v3047 = vpop.xlane.xlu0 %3046
        %3048 = vadd.xlane.f32.xlu0 %v2838
        %v3049 = vpop.xlane.xlu0 %3048
        %3050 = vadd.xlane.f32.xlu0 %v2839
        %v3051 = vpop.xlane.xlu0 %3050
        %3052 = vadd.xlane.f32.xlu0 %v2840
        %v3053 = vpop.xlane.xlu0 %3052
        %3054 = vadd.xlane.f32.xlu0 %v2841
        %v3055 = vpop.xlane.xlu0 %3054
        %3056 = vadd.xlane.f32.xlu0 %v2842
        %v3057 = vpop.xlane.xlu0 %3056
        %3058 = vadd.xlane.f32.xlu0 %v2843
        %v3059 = vpop.xlane.xlu0 %3058
        %3060 = vadd.xlane.f32.xlu0 %v2844
        %v3061 = vpop.xlane.xlu0 %3060
        %3062 = vadd.xlane.f32.xlu0 %v2845
        %v3063 = vpop.xlane.xlu0 %3062
        %3064 = vadd.xlane.f32.xlu0 %v2846
        %v3065 = vpop.xlane.xlu0 %3064
        %3066 = vadd.xlane.f32.xlu0 %v2847
        %v3067 = vpop.xlane.xlu0 %3066
        %3068 = vadd.xlane.f32.xlu0 %v2848
        %v3069 = vpop.xlane.xlu0 %3068
        %3070 = vadd.xlane.f32.xlu0 %v2849
        %v3071 = vpop.xlane.xlu0 %3070
        %3072 = vadd.xlane.f32.xlu0 %v2850
        %v3073 = vpop.xlane.xlu0 %3072
        %3074 = vadd.xlane.f32.xlu0 %v2851
        %v3075 = vpop.xlane.xlu0 %3074
        %3076 = vadd.xlane.f32.xlu0 %v2852
        %v3077 = vpop.xlane.xlu0 %3076
        %3078 = vadd.xlane.f32.xlu0 %v2853
        %v3079 = vpop.xlane.xlu0 %3078
        %3080 = vadd.xlane.f32.xlu0 %v2854
        %v3081 = vpop.xlane.xlu0 %3080
        %3082 = vadd.xlane.f32.xlu0 %v2855
        %v3083 = vpop.xlane.xlu0 %3082
        %3084 = vadd.xlane.f32.xlu0 %v2856
        %v3085 = vpop.xlane.xlu0 %3084
        %3086 = vadd.xlane.f32.xlu0 %v2857
        %v3087 = vpop.xlane.xlu0 %3086
        %3088 = vadd.xlane.f32.xlu0 %v2858
        %v3089 = vpop.xlane.xlu0 %3088
        %3090 = vadd.xlane.f32.xlu0 %v2859
        %v3091 = vpop.xlane.xlu0 %3090
        %3092 = vadd.xlane.f32.xlu0 %v2860
        %v3093 = vpop.xlane.xlu0 %3092
        %3094 = vadd.xlane.f32.xlu0 %v2861
        %v3095 = vpop.xlane.xlu0 %3094
        %3096 = vadd.xlane.f32.xlu0 %v2862
        %v3097 = vpop.xlane.xlu0 %3096
        %3098 = vadd.xlane.f32.xlu0 %v2863
        %v3099 = vpop.xlane.xlu0 %3098
        %3100 = vadd.xlane.f32.xlu0 %v2864
        %v3101 = vpop.xlane.xlu0 %3100
        %3102 = vadd.xlane.f32.xlu0 %v2865
        %v3103 = vpop.xlane.xlu0 %3102
        %3104 = vadd.xlane.f32.xlu0 %v2866
        %v3105 = vpop.xlane.xlu0 %3104
        %3106 = vadd.xlane.f32.xlu0 %v2867
        %v3107 = vpop.xlane.xlu0 %3106
        %3108 = vadd.xlane.f32.xlu0 %v2868
        %v3109 = vpop.xlane.xlu0 %3108
        %3110 = vadd.xlane.f32.xlu0 %v2869
        %v3111 = vpop.xlane.xlu0 %3110
        %3112 = vadd.xlane.f32.xlu0 %v2870
        %v3113 = vpop.xlane.xlu0 %3112
        %3114 = vadd.xlane.f32.xlu0 %v2871
        %v3115 = vpop.xlane.xlu0 %3114
        %3116 = vadd.xlane.f32.xlu0 %v2872
        %v3117 = vpop.xlane.xlu0 %3116
        %3118 = vadd.xlane.f32.xlu0 %v2873
        %v3119 = vpop.xlane.xlu0 %3118
        %3120 = vadd.xlane.f32.xlu0 %v2874
        %v3121 = vpop.xlane.xlu0 %3120
        %3122 = vadd.xlane.f32.xlu0 %v2875
        %v3123 = vpop.xlane.xlu0 %3122
        %3124 = vadd.xlane.f32.xlu0 %v2876
        %v3125 = vpop.xlane.xlu0 %3124
        %3126 = vadd.xlane.f32.xlu0 %v2877
        %v3127 = vpop.xlane.xlu0 %3126
        %3128 = vadd.xlane.f32.xlu0 %v2878
        %v3129 = vpop.xlane.xlu0 %3128
        %3130 = vadd.xlane.f32.xlu0 %v2879
        %v3131 = vpop.xlane.xlu0 %3130
        %3132 = vadd.xlane.f32.xlu0 %v2880
        %v3133 = vpop.xlane.xlu0 %3132
        %3134 = vadd.xlane.f32.xlu0 %v2881
        %v3135 = vpop.xlane.xlu0 %3134
        %3136 = vadd.xlane.f32.xlu0 %v2882
        %v3137 = vpop.xlane.xlu0 %3136
        %3138 = vadd.xlane.f32.xlu0 %v2883
        %v3139 = vpop.xlane.xlu0 %3138
        %v3140 = vmul.f32 %v2885, %v484
        %v3141 = vmul.f32 %v2887, %v484
        %v3142 = vmul.f32 %v2889, %v484
        %v3143 = vmul.f32 %v2891, %v484
        %v3144 = vmul.f32 %v2893, %v484
        %v3145 = vmul.f32 %v2895, %v484
        %v3146 = vmul.f32 %v2897, %v484
        %v3147 = vmul.f32 %v2899, %v484
        %v3148 = vmul.f32 %v2901, %v484
        %v3149 = vmul.f32 %v2903, %v484
        %v3150 = vmul.f32 %v2905, %v484
        %v3151 = vmul.f32 %v2907, %v484
        %v3152 = vmul.f32 %v2909, %v484
        %v3153 = vmul.f32 %v2911, %v484
        %v3154 = vmul.f32 %v2913, %v484
        %v3155 = vmul.f32 %v2915, %v484
        %v3156 = vmul.f32 %v2917, %v484
        %v3157 = vmul.f32 %v2919, %v484
        %v3158 = vmul.f32 %v2921, %v484
        %v3159 = vmul.f32 %v2923, %v484
        %v3160 = vmul.f32 %v2925, %v484
        %v3161 = vmul.f32 %v2927, %v484
        %v3162 = vmul.f32 %v2929, %v484
        %v3163 = vmul.f32 %v2931, %v484
        %v3164 = vmul.f32 %v2933, %v484
        %v3165 = vmul.f32 %v2935, %v484
        %v3166 = vmul.f32 %v2937, %v484
        %v3167 = vmul.f32 %v2939, %v484
        %v3168 = vmul.f32 %v2941, %v484
        %v3169 = vmul.f32 %v2943, %v484
        %v3170 = vmul.f32 %v2945, %v484
        %v3171 = vmul.f32 %v2947, %v484
        %v3172 = vmul.f32 %v2949, %v484
        %v3173 = vmul.f32 %v2951, %v484
        %v3174 = vmul.f32 %v2953, %v484
        %v3175 = vmul.f32 %v2955, %v484
        %v3176 = vmul.f32 %v2957, %v484
        %v3177 = vmul.f32 %v2959, %v484
        %v3178 = vmul.f32 %v2961, %v484
        %v3179 = vmul.f32 %v2963, %v484
        %v3180 = vmul.f32 %v2965, %v484
        %v3181 = vmul.f32 %v2967, %v484
        %v3182 = vmul.f32 %v2969, %v484
        %v3183 = vmul.f32 %v2971, %v484
        %v3184 = vmul.f32 %v2973, %v484
        %v3185 = vmul.f32 %v2975, %v484
        %v3186 = vmul.f32 %v2977, %v484
        %v3187 = vmul.f32 %v2979, %v484
        %v3188 = vmul.f32 %v2981, %v484
        %v3189 = vmul.f32 %v2983, %v484
        %v3190 = vmul.f32 %v2985, %v484
        %v3191 = vmul.f32 %v2987, %v484
        %v3192 = vmul.f32 %v2989, %v484
        %v3193 = vmul.f32 %v2991, %v484
        %v3194 = vmul.f32 %v2993, %v484
        %v3195 = vmul.f32 %v2995, %v484
        %v3196 = vmul.f32 %v2997, %v484
        %v3197 = vmul.f32 %v2999, %v484
        %v3198 = vmul.f32 %v3001, %v484
        %v3199 = vmul.f32 %v3003, %v484
        %v3200 = vmul.f32 %v3005, %v484
        %v3201 = vmul.f32 %v3007, %v484
        %v3202 = vmul.f32 %v3009, %v484
        %v3203 = vmul.f32 %v3011, %v484
        %v3204 = vmul.f32 %v3013, %v484
        %v3205 = vmul.f32 %v3015, %v484
        %v3206 = vmul.f32 %v3017, %v484
        %v3207 = vmul.f32 %v3019, %v484
        %v3208 = vmul.f32 %v3021, %v484
        %v3209 = vmul.f32 %v3023, %v484
        %v3210 = vmul.f32 %v3025, %v484
        %v3211 = vmul.f32 %v3027, %v484
        %v3212 = vmul.f32 %v3029, %v484
        %v3213 = vmul.f32 %v3031, %v484
        %v3214 = vmul.f32 %v3033, %v484
        %v3215 = vmul.f32 %v3035, %v484
        %v3216 = vmul.f32 %v3037, %v484
        %v3217 = vmul.f32 %v3039, %v484
        %v3218 = vmul.f32 %v3041, %v484
        %v3219 = vmul.f32 %v3043, %v484
        %v3220 = vmul.f32 %v3045, %v484
        %v3221 = vmul.f32 %v3047, %v484
        %v3222 = vmul.f32 %v3049, %v484
        %v3223 = vmul.f32 %v3051, %v484
        %v3224 = vmul.f32 %v3053, %v484
        %v3225 = vmul.f32 %v3055, %v484
        %v3226 = vmul.f32 %v3057, %v484
        %v3227 = vmul.f32 %v3059, %v484
        %v3228 = vmul.f32 %v3061, %v484
        %v3229 = vmul.f32 %v3063, %v484
        %v3230 = vmul.f32 %v3065, %v484
        %v3231 = vmul.f32 %v3067, %v484
        %v3232 = vmul.f32 %v3069, %v484
        %v3233 = vmul.f32 %v3071, %v484
        %v3234 = vmul.f32 %v3073, %v484
        %v3235 = vmul.f32 %v3075, %v484
        %v3236 = vmul.f32 %v3077, %v484
        %v3237 = vmul.f32 %v3079, %v484
        %v3238 = vmul.f32 %v3081, %v484
        %v3239 = vmul.f32 %v3083, %v484
        %v3240 = vmul.f32 %v3085, %v484
        %v3241 = vmul.f32 %v3087, %v484
        %v3242 = vmul.f32 %v3089, %v484
        %v3243 = vmul.f32 %v3091, %v484
        %v3244 = vmul.f32 %v3093, %v484
        %v3245 = vmul.f32 %v3095, %v484
        %v3246 = vmul.f32 %v3097, %v484
        %v3247 = vmul.f32 %v3099, %v484
        %v3248 = vmul.f32 %v3101, %v484
        %v3249 = vmul.f32 %v3103, %v484
        %v3250 = vmul.f32 %v3105, %v484
        %v3251 = vmul.f32 %v3107, %v484
        %v3252 = vmul.f32 %v3109, %v484
        %v3253 = vmul.f32 %v3111, %v484
        %v3254 = vmul.f32 %v3113, %v484
        %v3255 = vmul.f32 %v3115, %v484
        %v3256 = vmul.f32 %v3117, %v484
        %v3257 = vmul.f32 %v3119, %v484
        %v3258 = vmul.f32 %v3121, %v484
        %v3259 = vmul.f32 %v3123, %v484
        %v3260 = vmul.f32 %v3125, %v484
        %v3261 = vmul.f32 %v3127, %v484
        %v3262 = vmul.f32 %v3129, %v484
        %v3263 = vmul.f32 %v3131, %v484
        %v3264 = vmul.f32 %v3133, %v484
        %v3265 = vmul.f32 %v3135, %v484
        %v3266 = vmul.f32 %v3137, %v484
        %v3267 = vmul.f32 %v3139, %v484
        %v3268 = vmul.f32 %v2628, %v2628
        %v3269 = vmul.f32 %v2629, %v2629
        %v3270 = vmul.f32 %v2630, %v2630
        %v3271 = vmul.f32 %v2631, %v2631
        %v3272 = vmul.f32 %v2632, %v2632
        %v3273 = vmul.f32 %v2633, %v2633
        %v3274 = vmul.f32 %v2634, %v2634
        %v3275 = vmul.f32 %v2635, %v2635
        %v3276 = vmul.f32 %v2636, %v2636
        %v3277 = vmul.f32 %v2637, %v2637
        %v3278 = vmul.f32 %v2638, %v2638
        %v3279 = vmul.f32 %v2639, %v2639
        %v3280 = vmul.f32 %v2640, %v2640
        %v3281 = vmul.f32 %v2641, %v2641
        %v3282 = vmul.f32 %v2642, %v2642
        %v3283 = vmul.f32 %v2643, %v2643
        %v3284 = vmul.f32 %v2644, %v2644
        %v3285 = vmul.f32 %v2645, %v2645
        %v3286 = vmul.f32 %v2646, %v2646
        %v3287 = vmul.f32 %v2647, %v2647
        %v3288 = vmul.f32 %v2648, %v2648
        %v3289 = vmul.f32 %v2649, %v2649
        %v3290 = vmul.f32 %v2650, %v2650
        %v3291 = vmul.f32 %v2651, %v2651
        %v3292 = vmul.f32 %v2652, %v2652
        %v3293 = vmul.f32 %v2653, %v2653
        %v3294 = vmul.f32 %v2654, %v2654
        %v3295 = vmul.f32 %v2655, %v2655
        %v3296 = vmul.f32 %v2656, %v2656
        %v3297 = vmul.f32 %v2657, %v2657
        %v3298 = vmul.f32 %v2658, %v2658
        %v3299 = vmul.f32 %v2659, %v2659
        %v3300 = vmul.f32 %v2660, %v2660
        %v3301 = vmul.f32 %v2661, %v2661
        %v3302 = vmul.f32 %v2662, %v2662
        %v3303 = vmul.f32 %v2663, %v2663
        %v3304 = vmul.f32 %v2664, %v2664
        %v3305 = vmul.f32 %v2665, %v2665
        %v3306 = vmul.f32 %v2666, %v2666
        %v3307 = vmul.f32 %v2667, %v2667
        %v3308 = vmul.f32 %v2668, %v2668
        %v3309 = vmul.f32 %v2669, %v2669
        %v3310 = vmul.f32 %v2670, %v2670
        %v3311 = vmul.f32 %v2671, %v2671
        %v3312 = vmul.f32 %v2672, %v2672
        %v3313 = vmul.f32 %v2673, %v2673
        %v3314 = vmul.f32 %v2674, %v2674
        %v3315 = vmul.f32 %v2675, %v2675
        %v3316 = vmul.f32 %v2676, %v2676
        %v3317 = vmul.f32 %v2677, %v2677
        %v3318 = vmul.f32 %v2678, %v2678
        %v3319 = vmul.f32 %v2679, %v2679
        %v3320 = vmul.f32 %v2680, %v2680
        %v3321 = vmul.f32 %v2681, %v2681
        %v3322 = vmul.f32 %v2682, %v2682
        %v3323 = vmul.f32 %v2683, %v2683
        %v3324 = vmul.f32 %v2684, %v2684
        %v3325 = vmul.f32 %v2685, %v2685
        %v3326 = vmul.f32 %v2686, %v2686
        %v3327 = vmul.f32 %v2687, %v2687
        %v3328 = vmul.f32 %v2688, %v2688
        %v3329 = vmul.f32 %v2689, %v2689
        %v3330 = vmul.f32 %v2690, %v2690
        %v3331 = vmul.f32 %v2691, %v2691
        %v3332 = vmul.f32 %v2692, %v2692
        %v3333 = vmul.f32 %v2693, %v2693
        %v3334 = vmul.f32 %v2694, %v2694
        %v3335 = vmul.f32 %v2695, %v2695
        %v3336 = vmul.f32 %v2696, %v2696
        %v3337 = vmul.f32 %v2697, %v2697
        %v3338 = vmul.f32 %v2698, %v2698
        %v3339 = vmul.f32 %v2699, %v2699
        %v3340 = vmul.f32 %v2700, %v2700
        %v3341 = vmul.f32 %v2701, %v2701
        %v3342 = vmul.f32 %v2702, %v2702
        %v3343 = vmul.f32 %v2703, %v2703
        %v3344 = vmul.f32 %v2704, %v2704
        %v3345 = vmul.f32 %v2705, %v2705
        %v3346 = vmul.f32 %v2706, %v2706
        %v3347 = vmul.f32 %v2707, %v2707
        %v3348 = vmul.f32 %v2708, %v2708
        %v3349 = vmul.f32 %v2709, %v2709
        %v3350 = vmul.f32 %v2710, %v2710
        %v3351 = vmul.f32 %v2711, %v2711
        %v3352 = vmul.f32 %v2712, %v2712
        %v3353 = vmul.f32 %v2713, %v2713
        %v3354 = vmul.f32 %v2714, %v2714
        %v3355 = vmul.f32 %v2715, %v2715
        %v3356 = vmul.f32 %v2716, %v2716
        %v3357 = vmul.f32 %v2717, %v2717
        %v3358 = vmul.f32 %v2718, %v2718
        %v3359 = vmul.f32 %v2719, %v2719
        %v3360 = vmul.f32 %v2720, %v2720
        %v3361 = vmul.f32 %v2721, %v2721
        %v3362 = vmul.f32 %v2722, %v2722
        %v3363 = vmul.f32 %v2723, %v2723
        %v3364 = vmul.f32 %v2724, %v2724
        %v3365 = vmul.f32 %v2725, %v2725
        %v3366 = vmul.f32 %v2726, %v2726
        %v3367 = vmul.f32 %v2727, %v2727
        %v3368 = vmul.f32 %v2728, %v2728
        %v3369 = vmul.f32 %v2729, %v2729
        %v3370 = vmul.f32 %v2730, %v2730
        %v3371 = vmul.f32 %v2731, %v2731
        %v3372 = vmul.f32 %v2732, %v2732
        %v3373 = vmul.f32 %v2733, %v2733
        %v3374 = vmul.f32 %v2734, %v2734
        %v3375 = vmul.f32 %v2735, %v2735
        %v3376 = vmul.f32 %v2736, %v2736
        %v3377 = vmul.f32 %v2737, %v2737
        %v3378 = vmul.f32 %v2738, %v2738
        %v3379 = vmul.f32 %v2739, %v2739
        %v3380 = vmul.f32 %v2740, %v2740
        %v3381 = vmul.f32 %v2741, %v2741
        %v3382 = vmul.f32 %v2742, %v2742
        %v3383 = vmul.f32 %v2743, %v2743
        %v3384 = vmul.f32 %v2744, %v2744
        %v3385 = vmul.f32 %v2745, %v2745
        %v3386 = vmul.f32 %v2746, %v2746
        %v3387 = vmul.f32 %v2747, %v2747
        %v3388 = vmul.f32 %v2748, %v2748
        %v3389 = vmul.f32 %v2749, %v2749
        %v3390 = vmul.f32 %v2750, %v2750
        %v3391 = vmul.f32 %v2751, %v2751
        %v3392 = vmul.f32 %v2752, %v2752
        %v3393 = vmul.f32 %v2753, %v2753
        %v3394 = vmul.f32 %v2754, %v2754
        %v3395 = vmul.f32 %v2755, %v2755
        %v3396 = vsub.f32 %v3140, %v3268
        %v3397 = vsub.f32 %v3141, %v3269
        %v3398 = vsub.f32 %v3142, %v3270
        %v3399 = vsub.f32 %v3143, %v3271
        %v3400 = vsub.f32 %v3144, %v3272
        %v3401 = vsub.f32 %v3145, %v3273
        %v3402 = vsub.f32 %v3146, %v3274
        %v3403 = vsub.f32 %v3147, %v3275
        %v3404 = vsub.f32 %v3148, %v3276
        %v3405 = vsub.f32 %v3149, %v3277
        %v3406 = vsub.f32 %v3150, %v3278
        %v3407 = vsub.f32 %v3151, %v3279
        %v3408 = vsub.f32 %v3152, %v3280
        %v3409 = vsub.f32 %v3153, %v3281
        %v3410 = vsub.f32 %v3154, %v3282
        %v3411 = vsub.f32 %v3155, %v3283
        %v3412 = vsub.f32 %v3156, %v3284
        %v3413 = vsub.f32 %v3157, %v3285
        %v3414 = vsub.f32 %v3158, %v3286
        %v3415 = vsub.f32 %v3159, %v3287
        %v3416 = vsub.f32 %v3160, %v3288
        %v3417 = vsub.f32 %v3161, %v3289
        %v3418 = vsub.f32 %v3162, %v3290
        %v3419 = vsub.f32 %v3163, %v3291
        %v3420 = vsub.f32 %v3164, %v3292
        %v3421 = vsub.f32 %v3165, %v3293
        %v3422 = vsub.f32 %v3166, %v3294
        %v3423 = vsub.f32 %v3167, %v3295
        %v3424 = vsub.f32 %v3168, %v3296
        %v3425 = vsub.f32 %v3169, %v3297
        %v3426 = vsub.f32 %v3170, %v3298
        %v3427 = vsub.f32 %v3171, %v3299
        %v3428 = vsub.f32 %v3172, %v3300
        %v3429 = vsub.f32 %v3173, %v3301
        %v3430 = vsub.f32 %v3174, %v3302
        %v3431 = vsub.f32 %v3175, %v3303
        %v3432 = vsub.f32 %v3176, %v3304
        %v3433 = vsub.f32 %v3177, %v3305
        %v3434 = vsub.f32 %v3178, %v3306
        %v3435 = vsub.f32 %v3179, %v3307
        %v3436 = vsub.f32 %v3180, %v3308
        %v3437 = vsub.f32 %v3181, %v3309
        %v3438 = vsub.f32 %v3182, %v3310
        %v3439 = vsub.f32 %v3183, %v3311
        %v3440 = vsub.f32 %v3184, %v3312
        %v3441 = vsub.f32 %v3185, %v3313
        %v3442 = vsub.f32 %v3186, %v3314
        %v3443 = vsub.f32 %v3187, %v3315
        %v3444 = vsub.f32 %v3188, %v3316
        %v3445 = vsub.f32 %v3189, %v3317
        %v3446 = vsub.f32 %v3190, %v3318
        %v3447 = vsub.f32 %v3191, %v3319
        %v3448 = vsub.f32 %v3192, %v3320
        %v3449 = vsub.f32 %v3193, %v3321
        %v3450 = vsub.f32 %v3194, %v3322
        %v3451 = vsub.f32 %v3195, %v3323
        %v3452 = vsub.f32 %v3196, %v3324
        %v3453 = vsub.f32 %v3197, %v3325
        %v3454 = vsub.f32 %v3198, %v3326
        %v3455 = vsub.f32 %v3199, %v3327
        %v3456 = vsub.f32 %v3200, %v3328
        %v3457 = vsub.f32 %v3201, %v3329
        %v3458 = vsub.f32 %v3202, %v3330
        %v3459 = vsub.f32 %v3203, %v3331
        %v3460 = vsub.f32 %v3204, %v3332
        %v3461 = vsub.f32 %v3205, %v3333
        %v3462 = vsub.f32 %v3206, %v3334
        %v3463 = vsub.f32 %v3207, %v3335
        %v3464 = vsub.f32 %v3208, %v3336
        %v3465 = vsub.f32 %v3209, %v3337
        %v3466 = vsub.f32 %v3210, %v3338
        %v3467 = vsub.f32 %v3211, %v3339
        %v3468 = vsub.f32 %v3212, %v3340
        %v3469 = vsub.f32 %v3213, %v3341
        %v3470 = vsub.f32 %v3214, %v3342
        %v3471 = vsub.f32 %v3215, %v3343
        %v3472 = vsub.f32 %v3216, %v3344
        %v3473 = vsub.f32 %v3217, %v3345
        %v3474 = vsub.f32 %v3218, %v3346
        %v3475 = vsub.f32 %v3219, %v3347
        %v3476 = vsub.f32 %v3220, %v3348
        %v3477 = vsub.f32 %v3221, %v3349
        %v3478 = vsub.f32 %v3222, %v3350
        %v3479 = vsub.f32 %v3223, %v3351
        %v3480 = vsub.f32 %v3224, %v3352
        %v3481 = vsub.f32 %v3225, %v3353
        %v3482 = vsub.f32 %v3226, %v3354
        %v3483 = vsub.f32 %v3227, %v3355
        %v3484 = vsub.f32 %v3228, %v3356
        %v3485 = vsub.f32 %v3229, %v3357
        %v3486 = vsub.f32 %v3230, %v3358
        %v3487 = vsub.f32 %v3231, %v3359
        %v3488 = vsub.f32 %v3232, %v3360
        %v3489 = vsub.f32 %v3233, %v3361
        %v3490 = vsub.f32 %v3234, %v3362
        %v3491 = vsub.f32 %v3235, %v3363
        %v3492 = vsub.f32 %v3236, %v3364
        %v3493 = vsub.f32 %v3237, %v3365
        %v3494 = vsub.f32 %v3238, %v3366
        %v3495 = vsub.f32 %v3239, %v3367
        %v3496 = vsub.f32 %v3240, %v3368
        %v3497 = vsub.f32 %v3241, %v3369
        %v3498 = vsub.f32 %v3242, %v3370
        %v3499 = vsub.f32 %v3243, %v3371
        %v3500 = vsub.f32 %v3244, %v3372
        %v3501 = vsub.f32 %v3245, %v3373
        %v3502 = vsub.f32 %v3246, %v3374
        %v3503 = vsub.f32 %v3247, %v3375
        %v3504 = vsub.f32 %v3248, %v3376
        %v3505 = vsub.f32 %v3249, %v3377
        %v3506 = vsub.f32 %v3250, %v3378
        %v3507 = vsub.f32 %v3251, %v3379
        %v3508 = vsub.f32 %v3252, %v3380
        %v3509 = vsub.f32 %v3253, %v3381
        %v3510 = vsub.f32 %v3254, %v3382
        %v3511 = vsub.f32 %v3255, %v3383
        %v3512 = vsub.f32 %v3256, %v3384
        %v3513 = vsub.f32 %v3257, %v3385
        %v3514 = vsub.f32 %v3258, %v3386
        %v3515 = vsub.f32 %v3259, %v3387
        %v3516 = vsub.f32 %v3260, %v3388
        %v3517 = vsub.f32 %v3261, %v3389
        %v3518 = vsub.f32 %v3262, %v3390
        %v3519 = vsub.f32 %v3263, %v3391
        %v3520 = vsub.f32 %v3264, %v3392
        %v3521 = vsub.f32 %v3265, %v3393
        %v3522 = vsub.f32 %v3266, %v3394
        %v3523 = vsub.f32 %v3267, %v3395
        %v3524 = vmax.f32 %v3396, 0.0
        %v3525 = vmax.f32 %v3397, 0.0
        %v3526 = vmax.f32 %v3398, 0.0
        %v3527 = vmax.f32 %v3399, 0.0
        %v3528 = vmax.f32 %v3400, 0.0
        %v3529 = vmax.f32 %v3401, 0.0
        %v3530 = vmax.f32 %v3402, 0.0
        %v3531 = vmax.f32 %v3403, 0.0
        %v3532 = vmax.f32 %v3404, 0.0
        %v3533 = vmax.f32 %v3405, 0.0
        %v3534 = vmax.f32 %v3406, 0.0
        %v3535 = vmax.f32 %v3407, 0.0
        %v3536 = vmax.f32 %v3408, 0.0
        %v3537 = vmax.f32 %v3409, 0.0
        %v3538 = vmax.f32 %v3410, 0.0
        %v3539 = vmax.f32 %v3411, 0.0
        %v3540 = vmax.f32 %v3412, 0.0
        %v3541 = vmax.f32 %v3413, 0.0
        %v3542 = vmax.f32 %v3414, 0.0
        %v3543 = vmax.f32 %v3415, 0.0
        %v3544 = vmax.f32 %v3416, 0.0
        %v3545 = vmax.f32 %v3417, 0.0
        %v3546 = vmax.f32 %v3418, 0.0
        %v3547 = vmax.f32 %v3419, 0.0
        %v3548 = vmax.f32 %v3420, 0.0
        %v3549 = vmax.f32 %v3421, 0.0
        %v3550 = vmax.f32 %v3422, 0.0
        %v3551 = vmax.f32 %v3423, 0.0
        %v3552 = vmax.f32 %v3424, 0.0
        %v3553 = vmax.f32 %v3425, 0.0
        %v3554 = vmax.f32 %v3426, 0.0
        %v3555 = vmax.f32 %v3427, 0.0
        %v3556 = vmax.f32 %v3428, 0.0
        %v3557 = vmax.f32 %v3429, 0.0
        %v3558 = vmax.f32 %v3430, 0.0
        %v3559 = vmax.f32 %v3431, 0.0
        %v3560 = vmax.f32 %v3432, 0.0
        %v3561 = vmax.f32 %v3433, 0.0
        %v3562 = vmax.f32 %v3434, 0.0
        %v3563 = vmax.f32 %v3435, 0.0
        %v3564 = vmax.f32 %v3436, 0.0
        %v3565 = vmax.f32 %v3437, 0.0
        %v3566 = vmax.f32 %v3438, 0.0
        %v3567 = vmax.f32 %v3439, 0.0
        %v3568 = vmax.f32 %v3440, 0.0
        %v3569 = vmax.f32 %v3441, 0.0
        %v3570 = vmax.f32 %v3442, 0.0
        %v3571 = vmax.f32 %v3443, 0.0
        %v3572 = vmax.f32 %v3444, 0.0
        %v3573 = vmax.f32 %v3445, 0.0
        %v3574 = vmax.f32 %v3446, 0.0
        %v3575 = vmax.f32 %v3447, 0.0
        %v3576 = vmax.f32 %v3448, 0.0
        %v3577 = vmax.f32 %v3449, 0.0
        %v3578 = vmax.f32 %v3450, 0.0
        %v3579 = vmax.f32 %v3451, 0.0
        %v3580 = vmax.f32 %v3452, 0.0
        %v3581 = vmax.f32 %v3453, 0.0
        %v3582 = vmax.f32 %v3454, 0.0
        %v3583 = vmax.f32 %v3455, 0.0
        %v3584 = vmax.f32 %v3456, 0.0
        %v3585 = vmax.f32 %v3457, 0.0
        %v3586 = vmax.f32 %v3458, 0.0
        %v3587 = vmax.f32 %v3459, 0.0
        %v3588 = vmax.f32 %v3460, 0.0
        %v3589 = vmax.f32 %v3461, 0.0
        %v3590 = vmax.f32 %v3462, 0.0
        %v3591 = vmax.f32 %v3463, 0.0
        %v3592 = vmax.f32 %v3464, 0.0
        %v3593 = vmax.f32 %v3465, 0.0
        %v3594 = vmax.f32 %v3466, 0.0
        %v3595 = vmax.f32 %v3467, 0.0
        %v3596 = vmax.f32 %v3468, 0.0
        %v3597 = vmax.f32 %v3469, 0.0
        %v3598 = vmax.f32 %v3470, 0.0
        %v3599 = vmax.f32 %v3471, 0.0
        %v3600 = vmax.f32 %v3472, 0.0
        %v3601 = vmax.f32 %v3473, 0.0
        %v3602 = vmax.f32 %v3474, 0.0
        %v3603 = vmax.f32 %v3475, 0.0
        %v3604 = vmax.f32 %v3476, 0.0
        %v3605 = vmax.f32 %v3477, 0.0
        %v3606 = vmax.f32 %v3478, 0.0
        %v3607 = vmax.f32 %v3479, 0.0
        %v3608 = vmax.f32 %v3480, 0.0
        %v3609 = vmax.f32 %v3481, 0.0
        %v3610 = vmax.f32 %v3482, 0.0
        %v3611 = vmax.f32 %v3483, 0.0
        %v3612 = vmax.f32 %v3484, 0.0
        %v3613 = vmax.f32 %v3485, 0.0
        %v3614 = vmax.f32 %v3486, 0.0
        %v3615 = vmax.f32 %v3487, 0.0
        %v3616 = vmax.f32 %v3488, 0.0
        %v3617 = vmax.f32 %v3489, 0.0
        %v3618 = vmax.f32 %v3490, 0.0
        %v3619 = vmax.f32 %v3491, 0.0
        %v3620 = vmax.f32 %v3492, 0.0
        %v3621 = vmax.f32 %v3493, 0.0
        %v3622 = vmax.f32 %v3494, 0.0
        %v3623 = vmax.f32 %v3495, 0.0
        %v3624 = vmax.f32 %v3496, 0.0
        %v3625 = vmax.f32 %v3497, 0.0
        %v3626 = vmax.f32 %v3498, 0.0
        %v3627 = vmax.f32 %v3499, 0.0
        %v3628 = vmax.f32 %v3500, 0.0
        %v3629 = vmax.f32 %v3501, 0.0
        %v3630 = vmax.f32 %v3502, 0.0
        %v3631 = vmax.f32 %v3503, 0.0
        %v3632 = vmax.f32 %v3504, 0.0
        %v3633 = vmax.f32 %v3505, 0.0
        %v3634 = vmax.f32 %v3506, 0.0
        %v3635 = vmax.f32 %v3507, 0.0
        %v3636 = vmax.f32 %v3508, 0.0
        %v3637 = vmax.f32 %v3509, 0.0
        %v3638 = vmax.f32 %v3510, 0.0
        %v3639 = vmax.f32 %v3511, 0.0
        %v3640 = vmax.f32 %v3512, 0.0
        %v3641 = vmax.f32 %v3513, 0.0
        %v3642 = vmax.f32 %v3514, 0.0
        %v3643 = vmax.f32 %v3515, 0.0
        %v3644 = vmax.f32 %v3516, 0.0
        %v3645 = vmax.f32 %v3517, 0.0
        %v3646 = vmax.f32 %v3518, 0.0
        %v3647 = vmax.f32 %v3519, 0.0
        %v3648 = vmax.f32 %v3520, 0.0
        %v3649 = vmax.f32 %v3521, 0.0
        %v3650 = vmax.f32 %v3522, 0.0
        %v3651 = vmax.f32 %v3523, 0.0
        %v3652 = vadd.f32 %v3524, 1e-05
        %v3653 = vadd.f32 %v3525, 1e-05
        %v3654 = vadd.f32 %v3526, 1e-05
        %v3655 = vadd.f32 %v3527, 1e-05
        %v3656 = vadd.f32 %v3528, 1e-05
        %v3657 = vadd.f32 %v3529, 1e-05
        %v3658 = vadd.f32 %v3530, 1e-05
        %v3659 = vadd.f32 %v3531, 1e-05
        %v3660 = vadd.f32 %v3532, 1e-05
        %v3661 = vadd.f32 %v3533, 1e-05
        %v3662 = vadd.f32 %v3534, 1e-05
        %v3663 = vadd.f32 %v3535, 1e-05
        %v3664 = vadd.f32 %v3536, 1e-05
        %v3665 = vadd.f32 %v3537, 1e-05
        %v3666 = vadd.f32 %v3538, 1e-05
        %v3667 = vadd.f32 %v3539, 1e-05
        %v3668 = vadd.f32 %v3540, 1e-05
        %v3669 = vadd.f32 %v3541, 1e-05
        %v3670 = vadd.f32 %v3542, 1e-05
        %v3671 = vadd.f32 %v3543, 1e-05
        %v3672 = vadd.f32 %v3544, 1e-05
        %v3673 = vadd.f32 %v3545, 1e-05
        %v3674 = vadd.f32 %v3546, 1e-05
        %v3675 = vadd.f32 %v3547, 1e-05
        %v3676 = vadd.f32 %v3548, 1e-05
        %v3677 = vadd.f32 %v3549, 1e-05
        %v3678 = vadd.f32 %v3550, 1e-05
        %v3679 = vadd.f32 %v3551, 1e-05
        %v3680 = vadd.f32 %v3552, 1e-05
        %v3681 = vadd.f32 %v3553, 1e-05
        %v3682 = vadd.f32 %v3554, 1e-05
        %v3683 = vadd.f32 %v3555, 1e-05
        %v3684 = vadd.f32 %v3556, 1e-05
        %v3685 = vadd.f32 %v3557, 1e-05
        %v3686 = vadd.f32 %v3558, 1e-05
        %v3687 = vadd.f32 %v3559, 1e-05
        %v3688 = vadd.f32 %v3560, 1e-05
        %v3689 = vadd.f32 %v3561, 1e-05
        %v3690 = vadd.f32 %v3562, 1e-05
        %v3691 = vadd.f32 %v3563, 1e-05
        %v3692 = vadd.f32 %v3564, 1e-05
        %v3693 = vadd.f32 %v3565, 1e-05
        %v3694 = vadd.f32 %v3566, 1e-05
        %v3695 = vadd.f32 %v3567, 1e-05
        %v3696 = vadd.f32 %v3568, 1e-05
        %v3697 = vadd.f32 %v3569, 1e-05
        %v3698 = vadd.f32 %v3570, 1e-05
        %v3699 = vadd.f32 %v3571, 1e-05
        %v3700 = vadd.f32 %v3572, 1e-05
        %v3701 = vadd.f32 %v3573, 1e-05
        %v3702 = vadd.f32 %v3574, 1e-05
        %v3703 = vadd.f32 %v3575, 1e-05
        %v3704 = vadd.f32 %v3576, 1e-05
        %v3705 = vadd.f32 %v3577, 1e-05
        %v3706 = vadd.f32 %v3578, 1e-05
        %v3707 = vadd.f32 %v3579, 1e-05
        %v3708 = vadd.f32 %v3580, 1e-05
        %v3709 = vadd.f32 %v3581, 1e-05
        %v3710 = vadd.f32 %v3582, 1e-05
        %v3711 = vadd.f32 %v3583, 1e-05
        %v3712 = vadd.f32 %v3584, 1e-05
        %v3713 = vadd.f32 %v3585, 1e-05
        %v3714 = vadd.f32 %v3586, 1e-05
        %v3715 = vadd.f32 %v3587, 1e-05
        %v3716 = vadd.f32 %v3588, 1e-05
        %v3717 = vadd.f32 %v3589, 1e-05
        %v3718 = vadd.f32 %v3590, 1e-05
        %v3719 = vadd.f32 %v3591, 1e-05
        %v3720 = vadd.f32 %v3592, 1e-05
        %v3721 = vadd.f32 %v3593, 1e-05
        %v3722 = vadd.f32 %v3594, 1e-05
        %v3723 = vadd.f32 %v3595, 1e-05
        %v3724 = vadd.f32 %v3596, 1e-05
        %v3725 = vadd.f32 %v3597, 1e-05
        %v3726 = vadd.f32 %v3598, 1e-05
        %v3727 = vadd.f32 %v3599, 1e-05
        %v3728 = vadd.f32 %v3600, 1e-05
        %v3729 = vadd.f32 %v3601, 1e-05
        %v3730 = vadd.f32 %v3602, 1e-05
        %v3731 = vadd.f32 %v3603, 1e-05
        %v3732 = vadd.f32 %v3604, 1e-05
        %v3733 = vadd.f32 %v3605, 1e-05
        %v3734 = vadd.f32 %v3606, 1e-05
        %v3735 = vadd.f32 %v3607, 1e-05
        %v3736 = vadd.f32 %v3608, 1e-05
        %v3737 = vadd.f32 %v3609, 1e-05
        %v3738 = vadd.f32 %v3610, 1e-05
        %v3739 = vadd.f32 %v3611, 1e-05
        %v3740 = vadd.f32 %v3612, 1e-05
        %v3741 = vadd.f32 %v3613, 1e-05
        %v3742 = vadd.f32 %v3614, 1e-05
        %v3743 = vadd.f32 %v3615, 1e-05
        %v3744 = vadd.f32 %v3616, 1e-05
        %v3745 = vadd.f32 %v3617, 1e-05
        %v3746 = vadd.f32 %v3618, 1e-05
        %v3747 = vadd.f32 %v3619, 1e-05
        %v3748 = vadd.f32 %v3620, 1e-05
        %v3749 = vadd.f32 %v3621, 1e-05
        %v3750 = vadd.f32 %v3622, 1e-05
        %v3751 = vadd.f32 %v3623, 1e-05
        %v3752 = vadd.f32 %v3624, 1e-05
        %v3753 = vadd.f32 %v3625, 1e-05
        %v3754 = vadd.f32 %v3626, 1e-05
        %v3755 = vadd.f32 %v3627, 1e-05
        %v3756 = vadd.f32 %v3628, 1e-05
        %v3757 = vadd.f32 %v3629, 1e-05
        %v3758 = vadd.f32 %v3630, 1e-05
        %v3759 = vadd.f32 %v3631, 1e-05
        %v3760 = vadd.f32 %v3632, 1e-05
        %v3761 = vadd.f32 %v3633, 1e-05
        %v3762 = vadd.f32 %v3634, 1e-05
        %v3763 = vadd.f32 %v3635, 1e-05
        %v3764 = vadd.f32 %v3636, 1e-05
        %v3765 = vadd.f32 %v3637, 1e-05
        %v3766 = vadd.f32 %v3638, 1e-05
        %v3767 = vadd.f32 %v3639, 1e-05
        %v3768 = vadd.f32 %v3640, 1e-05
        %v3769 = vadd.f32 %v3641, 1e-05
        %v3770 = vadd.f32 %v3642, 1e-05
        %v3771 = vadd.f32 %v3643, 1e-05
        %v3772 = vadd.f32 %v3644, 1e-05
        %v3773 = vadd.f32 %v3645, 1e-05
        %v3774 = vadd.f32 %v3646, 1e-05
        %v3775 = vadd.f32 %v3647, 1e-05
        %v3776 = vadd.f32 %v3648, 1e-05
        %v3777 = vadd.f32 %v3649, 1e-05
        %v3778 = vadd.f32 %v3650, 1e-05
        %v3779 = vadd.f32 %v3651, 1e-05
        %v3780 = vrsqrt.pop %v3652
        %v3781 = vrsqrt.pop %v3653
        %v3782 = vrsqrt.pop %v3654
        %v3783 = vrsqrt.pop %v3655
        %v3784 = vrsqrt.pop %v3656
        %v3785 = vrsqrt.pop %v3657
        %v3786 = vrsqrt.pop %v3658
        %v3787 = vrsqrt.pop %v3659
        %v3788 = vrsqrt.pop %v3660
        %v3789 = vrsqrt.pop %v3661
        %v3790 = vrsqrt.pop %v3662
        %v3791 = vrsqrt.pop %v3663
        %v3792 = vrsqrt.pop %v3664
        %v3793 = vrsqrt.pop %v3665
        %v3794 = vrsqrt.pop %v3666
        %v3795 = vrsqrt.pop %v3667
        %v3796 = vrsqrt.pop %v3668
        %v3797 = vrsqrt.pop %v3669
        %v3798 = vrsqrt.pop %v3670
        %v3799 = vrsqrt.pop %v3671
        %v3800 = vrsqrt.pop %v3672
        %v3801 = vrsqrt.pop %v3673
        %v3802 = vrsqrt.pop %v3674
        %v3803 = vrsqrt.pop %v3675
        %v3804 = vrsqrt.pop %v3676
        %v3805 = vrsqrt.pop %v3677
        %v3806 = vrsqrt.pop %v3678
        %v3807 = vrsqrt.pop %v3679
        %v3808 = vrsqrt.pop %v3680
        %v3809 = vrsqrt.pop %v3681
        %v3810 = vrsqrt.pop %v3682
        %v3811 = vrsqrt.pop %v3683
        %v3812 = vrsqrt.pop %v3684
        %v3813 = vrsqrt.pop %v3685
        %v3814 = vrsqrt.pop %v3686
        %v3815 = vrsqrt.pop %v3687
        %v3816 = vrsqrt.pop %v3688
        %v3817 = vrsqrt.pop %v3689
        %v3818 = vrsqrt.pop %v3690
        %v3819 = vrsqrt.pop %v3691
        %v3820 = vrsqrt.pop %v3692
        %v3821 = vrsqrt.pop %v3693
        %v3822 = vrsqrt.pop %v3694
        %v3823 = vrsqrt.pop %v3695
        %v3824 = vrsqrt.pop %v3696
        %v3825 = vrsqrt.pop %v3697
        %v3826 = vrsqrt.pop %v3698
        %v3827 = vrsqrt.pop %v3699
        %v3828 = vrsqrt.pop %v3700
        %v3829 = vrsqrt.pop %v3701
        %v3830 = vrsqrt.pop %v3702
        %v3831 = vrsqrt.pop %v3703
        %v3832 = vrsqrt.pop %v3704
        %v3833 = vrsqrt.pop %v3705
        %v3834 = vrsqrt.pop %v3706
        %v3835 = vrsqrt.pop %v3707
        %v3836 = vrsqrt.pop %v3708
        %v3837 = vrsqrt.pop %v3709
        %v3838 = vrsqrt.pop %v3710
        %v3839 = vrsqrt.pop %v3711
        %v3840 = vrsqrt.pop %v3712
        %v3841 = vrsqrt.pop %v3713
        %v3842 = vrsqrt.pop %v3714
        %v3843 = vrsqrt.pop %v3715
        %v3844 = vrsqrt.pop %v3716
        %v3845 = vrsqrt.pop %v3717
        %v3846 = vrsqrt.pop %v3718
        %v3847 = vrsqrt.pop %v3719
        %v3848 = vrsqrt.pop %v3720
        %v3849 = vrsqrt.pop %v3721
        %v3850 = vrsqrt.pop %v3722
        %v3851 = vrsqrt.pop %v3723
        %v3852 = vrsqrt.pop %v3724
        %v3853 = vrsqrt.pop %v3725
        %v3854 = vrsqrt.pop %v3726
        %v3855 = vrsqrt.pop %v3727
        %v3856 = vrsqrt.pop %v3728
        %v3857 = vrsqrt.pop %v3729
        %v3858 = vrsqrt.pop %v3730
        %v3859 = vrsqrt.pop %v3731
        %v3860 = vrsqrt.pop %v3732
        %v3861 = vrsqrt.pop %v3733
        %v3862 = vrsqrt.pop %v3734
        %v3863 = vrsqrt.pop %v3735
        %v3864 = vrsqrt.pop %v3736
        %v3865 = vrsqrt.pop %v3737
        %v3866 = vrsqrt.pop %v3738
        %v3867 = vrsqrt.pop %v3739
        %v3868 = vrsqrt.pop %v3740
        %v3869 = vrsqrt.pop %v3741
        %v3870 = vrsqrt.pop %v3742
        %v3871 = vrsqrt.pop %v3743
        %v3872 = vrsqrt.pop %v3744
        %v3873 = vrsqrt.pop %v3745
        %v3874 = vrsqrt.pop %v3746
        %v3875 = vrsqrt.pop %v3747
        %v3876 = vrsqrt.pop %v3748
        %v3877 = vrsqrt.pop %v3749
        %v3878 = vrsqrt.pop %v3750
        %v3879 = vrsqrt.pop %v3751
        %v3880 = vrsqrt.pop %v3752
        %v3881 = vrsqrt.pop %v3753
        %v3882 = vrsqrt.pop %v3754
        %v3883 = vrsqrt.pop %v3755
        %v3884 = vrsqrt.pop %v3756
        %v3885 = vrsqrt.pop %v3757
        %v3886 = vrsqrt.pop %v3758
        %v3887 = vrsqrt.pop %v3759
        %v3888 = vrsqrt.pop %v3760
        %v3889 = vrsqrt.pop %v3761
        %v3890 = vrsqrt.pop %v3762
        %v3891 = vrsqrt.pop %v3763
        %v3892 = vrsqrt.pop %v3764
        %v3893 = vrsqrt.pop %v3765
        %v3894 = vrsqrt.pop %v3766
        %v3895 = vrsqrt.pop %v3767
        %v3896 = vrsqrt.pop %v3768
        %v3897 = vrsqrt.pop %v3769
        %v3898 = vrsqrt.pop %v3770
        %v3899 = vrsqrt.pop %v3771
        %v3900 = vrsqrt.pop %v3772
        %v3901 = vrsqrt.pop %v3773
        %v3902 = vrsqrt.pop %v3774
        %v3903 = vrsqrt.pop %v3775
        %v3904 = vrsqrt.pop %v3776
        %v3905 = vrsqrt.pop %v3777
        %v3906 = vrsqrt.pop %v3778
        %v3907 = vrsqrt.pop %v3779
        %v3908 = vmul.f32 %v1499, %v3780
        %v3909 = vmul.f32 %v1500, %v3781
        %v3910 = vmul.f32 %v1501, %v3782
        %v3911 = vmul.f32 %v1502, %v3783
        %v3912 = vmul.f32 %v1503, %v3784
        %v3913 = vmul.f32 %v1504, %v3785
        %v3914 = vmul.f32 %v1505, %v3786
        %v3915 = vmul.f32 %v1506, %v3787
        %v3916 = vmul.f32 %v1507, %v3788
        %v3917 = vmul.f32 %v1508, %v3789
        %v3918 = vmul.f32 %v1509, %v3790
        %v3919 = vmul.f32 %v1510, %v3791
        %v3920 = vmul.f32 %v1511, %v3792
        %v3921 = vmul.f32 %v1512, %v3793
        %v3922 = vmul.f32 %v1513, %v3794
        %v3923 = vmul.f32 %v1514, %v3795
        %v3924 = vmul.f32 %v1515, %v3796
        %v3925 = vmul.f32 %v1516, %v3797
        %v3926 = vmul.f32 %v1517, %v3798
        %v3927 = vmul.f32 %v1518, %v3799
        %v3928 = vmul.f32 %v1519, %v3800
        %v3929 = vmul.f32 %v1520, %v3801
        %v3930 = vmul.f32 %v1521, %v3802
        %v3931 = vmul.f32 %v1522, %v3803
        %v3932 = vmul.f32 %v1523, %v3804
        %v3933 = vmul.f32 %v1524, %v3805
        %v3934 = vmul.f32 %v1525, %v3806
        %v3935 = vmul.f32 %v1526, %v3807
        %v3936 = vmul.f32 %v1527, %v3808
        %v3937 = vmul.f32 %v1528, %v3809
        %v3938 = vmul.f32 %v1529, %v3810
        %v3939 = vmul.f32 %v1530, %v3811
        %v3940 = vmul.f32 %v1531, %v3812
        %v3941 = vmul.f32 %v1532, %v3813
        %v3942 = vmul.f32 %v1533, %v3814
        %v3943 = vmul.f32 %v1534, %v3815
        %v3944 = vmul.f32 %v1535, %v3816
        %v3945 = vmul.f32 %v1536, %v3817
        %v3946 = vmul.f32 %v1537, %v3818
        %v3947 = vmul.f32 %v1538, %v3819
        %v3948 = vmul.f32 %v1539, %v3820
        %v3949 = vmul.f32 %v1540, %v3821
        %v3950 = vmul.f32 %v1541, %v3822
        %v3951 = vmul.f32 %v1542, %v3823
        %v3952 = vmul.f32 %v1543, %v3824
        %v3953 = vmul.f32 %v1544, %v3825
        %v3954 = vmul.f32 %v1545, %v3826
        %v3955 = vmul.f32 %v1546, %v3827
        %v3956 = vmul.f32 %v1547, %v3828
        %v3957 = vmul.f32 %v1548, %v3829
        %v3958 = vmul.f32 %v1549, %v3830
        %v3959 = vmul.f32 %v1550, %v3831
        %v3960 = vmul.f32 %v1551, %v3832
        %v3961 = vmul.f32 %v1552, %v3833
        %v3962 = vmul.f32 %v1553, %v3834
        %v3963 = vmul.f32 %v1554, %v3835
        %v3964 = vmul.f32 %v1555, %v3836
        %v3965 = vmul.f32 %v1556, %v3837
        %v3966 = vmul.f32 %v1557, %v3838
        %v3967 = vmul.f32 %v1558, %v3839
        %v3968 = vmul.f32 %v1559, %v3840
        %v3969 = vmul.f32 %v1560, %v3841
        %v3970 = vmul.f32 %v1561, %v3842
        %v3971 = vmul.f32 %v1562, %v3843
        %v3972 = vmul.f32 %v1563, %v3844
        %v3973 = vmul.f32 %v1564, %v3845
        %v3974 = vmul.f32 %v1565, %v3846
        %v3975 = vmul.f32 %v1566, %v3847
        %v3976 = vmul.f32 %v1567, %v3848
        %v3977 = vmul.f32 %v1568, %v3849
        %v3978 = vmul.f32 %v1569, %v3850
        %v3979 = vmul.f32 %v1570, %v3851
        %v3980 = vmul.f32 %v1571, %v3852
        %v3981 = vmul.f32 %v1572, %v3853
        %v3982 = vmul.f32 %v1573, %v3854
        %v3983 = vmul.f32 %v1574, %v3855
        %v3984 = vmul.f32 %v1575, %v3856
        %v3985 = vmul.f32 %v1576, %v3857
        %v3986 = vmul.f32 %v1577, %v3858
        %v3987 = vmul.f32 %v1578, %v3859
        %v3988 = vmul.f32 %v1579, %v3860
        %v3989 = vmul.f32 %v1580, %v3861
        %v3990 = vmul.f32 %v1581, %v3862
        %v3991 = vmul.f32 %v1582, %v3863
        %v3992 = vmul.f32 %v1583, %v3864
        %v3993 = vmul.f32 %v1584, %v3865
        %v3994 = vmul.f32 %v1585, %v3866
        %v3995 = vmul.f32 %v1586, %v3867
        %v3996 = vmul.f32 %v1587, %v3868
        %v3997 = vmul.f32 %v1588, %v3869
        %v3998 = vmul.f32 %v1589, %v3870
        %v3999 = vmul.f32 %v1590, %v3871
        %v4000 = vmul.f32 %v1591, %v3872
        %v4001 = vmul.f32 %v1592, %v3873
        %v4002 = vmul.f32 %v1593, %v3874
        %v4003 = vmul.f32 %v1594, %v3875
        %v4004 = vmul.f32 %v1595, %v3876
        %v4005 = vmul.f32 %v1596, %v3877
        %v4006 = vmul.f32 %v1597, %v3878
        %v4007 = vmul.f32 %v1598, %v3879
        %v4008 = vmul.f32 %v1599, %v3880
        %v4009 = vmul.f32 %v1600, %v3881
        %v4010 = vmul.f32 %v1601, %v3882
        %v4011 = vmul.f32 %v1602, %v3883
        %v4012 = vmul.f32 %v1603, %v3884
        %v4013 = vmul.f32 %v1604, %v3885
        %v4014 = vmul.f32 %v1605, %v3886
        %v4015 = vmul.f32 %v1606, %v3887
        %v4016 = vmul.f32 %v1607, %v3888
        %v4017 = vmul.f32 %v1608, %v3889
        %v4018 = vmul.f32 %v1609, %v3890
        %v4019 = vmul.f32 %v1610, %v3891
        %v4020 = vmul.f32 %v1611, %v3892
        %v4021 = vmul.f32 %v1612, %v3893
        %v4022 = vmul.f32 %v1613, %v3894
        %v4023 = vmul.f32 %v1614, %v3895
        %v4024 = vmul.f32 %v1615, %v3896
        %v4025 = vmul.f32 %v1616, %v3897
        %v4026 = vmul.f32 %v1617, %v3898
        %v4027 = vmul.f32 %v1618, %v3899
        %v4028 = vmul.f32 %v1619, %v3900
        %v4029 = vmul.f32 %v1620, %v3901
        %v4030 = vmul.f32 %v1621, %v3902
        %v4031 = vmul.f32 %v1622, %v3903
        %v4032 = vmul.f32 %v1623, %v3904
        %v4033 = vmul.f32 %v1624, %v3905
        %v4034 = vmul.f32 %v1625, %v3906
        %v4035 = vmul.f32 %v1626, %v3907
        %4037 = vset.pattern.permute.xlu0 0
        %4038 = vperm.xlu0 %4037, %v3908
        %v4039 = vpop.permute.xlu0 %4038
        %4042 = vset.pattern.permute.xlu0 0
        %4043 = vperm.xlu0 %4042, %v3909
        %v4044 = vpop.permute.xlu0 %4043
        %4047 = vset.pattern.permute.xlu0 0
        %4048 = vperm.xlu0 %4047, %v3910
        %v4049 = vpop.permute.xlu0 %4048
        %4052 = vset.pattern.permute.xlu0 0
        %4053 = vperm.xlu0 %4052, %v3911
        %v4054 = vpop.permute.xlu0 %4053
        %4057 = vset.pattern.permute.xlu0 0
        %4058 = vperm.xlu0 %4057, %v3912
        %v4059 = vpop.permute.xlu0 %4058
        %4062 = vset.pattern.permute.xlu0 0
        %4063 = vperm.xlu0 %4062, %v3913
        %v4064 = vpop.permute.xlu0 %4063
        %4067 = vset.pattern.permute.xlu0 0
        %4068 = vperm.xlu0 %4067, %v3914
        %v4069 = vpop.permute.xlu0 %4068
        %4072 = vset.pattern.permute.xlu0 0
        %4073 = vperm.xlu0 %4072, %v3915
        %v4074 = vpop.permute.xlu0 %4073
        %4077 = vset.pattern.permute.xlu0 0
        %4078 = vperm.xlu0 %4077, %v3916
        %v4079 = vpop.permute.xlu0 %4078
        %4082 = vset.pattern.permute.xlu0 0
        %4083 = vperm.xlu0 %4082, %v3917
        %v4084 = vpop.permute.xlu0 %4083
        %4087 = vset.pattern.permute.xlu0 0
        %4088 = vperm.xlu0 %4087, %v3918
        %v4089 = vpop.permute.xlu0 %4088
        %4092 = vset.pattern.permute.xlu0 0
        %4093 = vperm.xlu0 %4092, %v3919
        %v4094 = vpop.permute.xlu0 %4093
        %4097 = vset.pattern.permute.xlu0 0
        %4098 = vperm.xlu0 %4097, %v3920
        %v4099 = vpop.permute.xlu0 %4098
        %4102 = vset.pattern.permute.xlu0 0
        %4103 = vperm.xlu0 %4102, %v3921
        %v4104 = vpop.permute.xlu0 %4103
        %4107 = vset.pattern.permute.xlu0 0
        %4108 = vperm.xlu0 %4107, %v3922
        %v4109 = vpop.permute.xlu0 %4108
        %4112 = vset.pattern.permute.xlu0 0
        %4113 = vperm.xlu0 %4112, %v3923
        %v4114 = vpop.permute.xlu0 %4113
        %4117 = vset.pattern.permute.xlu0 0
        %4118 = vperm.xlu0 %4117, %v3924
        %v4119 = vpop.permute.xlu0 %4118
        %4122 = vset.pattern.permute.xlu0 0
        %4123 = vperm.xlu0 %4122, %v3925
        %v4124 = vpop.permute.xlu0 %4123
        %4127 = vset.pattern.permute.xlu0 0
        %4128 = vperm.xlu0 %4127, %v3926
        %v4129 = vpop.permute.xlu0 %4128
        %4132 = vset.pattern.permute.xlu0 0
        %4133 = vperm.xlu0 %4132, %v3927
        %v4134 = vpop.permute.xlu0 %4133
        %4137 = vset.pattern.permute.xlu0 0
        %4138 = vperm.xlu0 %4137, %v3928
        %v4139 = vpop.permute.xlu0 %4138
        %4142 = vset.pattern.permute.xlu0 0
        %4143 = vperm.xlu0 %4142, %v3929
        %v4144 = vpop.permute.xlu0 %4143
        %4147 = vset.pattern.permute.xlu0 0
        %4148 = vperm.xlu0 %4147, %v3930
        %v4149 = vpop.permute.xlu0 %4148
        %4152 = vset.pattern.permute.xlu0 0
        %4153 = vperm.xlu0 %4152, %v3931
        %v4154 = vpop.permute.xlu0 %4153
        %4157 = vset.pattern.permute.xlu0 0
        %4158 = vperm.xlu0 %4157, %v3932
        %v4159 = vpop.permute.xlu0 %4158
        %4162 = vset.pattern.permute.xlu0 0
        %4163 = vperm.xlu0 %4162, %v3933
        %v4164 = vpop.permute.xlu0 %4163
        %4167 = vset.pattern.permute.xlu0 0
        %4168 = vperm.xlu0 %4167, %v3934
        %v4169 = vpop.permute.xlu0 %4168
        %4172 = vset.pattern.permute.xlu0 0
        %4173 = vperm.xlu0 %4172, %v3935
        %v4174 = vpop.permute.xlu0 %4173
        %4177 = vset.pattern.permute.xlu0 0
        %4178 = vperm.xlu0 %4177, %v3936
        %v4179 = vpop.permute.xlu0 %4178
        %4182 = vset.pattern.permute.xlu0 0
        %4183 = vperm.xlu0 %4182, %v3937
        %v4184 = vpop.permute.xlu0 %4183
        %4187 = vset.pattern.permute.xlu0 0
        %4188 = vperm.xlu0 %4187, %v3938
        %v4189 = vpop.permute.xlu0 %4188
        %4192 = vset.pattern.permute.xlu0 0
        %4193 = vperm.xlu0 %4192, %v3939
        %v4194 = vpop.permute.xlu0 %4193
        %4197 = vset.pattern.permute.xlu0 0
        %4198 = vperm.xlu0 %4197, %v3940
        %v4199 = vpop.permute.xlu0 %4198
        %4202 = vset.pattern.permute.xlu0 0
        %4203 = vperm.xlu0 %4202, %v3941
        %v4204 = vpop.permute.xlu0 %4203
        %4207 = vset.pattern.permute.xlu0 0
        %4208 = vperm.xlu0 %4207, %v3942
        %v4209 = vpop.permute.xlu0 %4208
        %4212 = vset.pattern.permute.xlu0 0
        %4213 = vperm.xlu0 %4212, %v3943
        %v4214 = vpop.permute.xlu0 %4213
        %4217 = vset.pattern.permute.xlu0 0
        %4218 = vperm.xlu0 %4217, %v3944
        %v4219 = vpop.permute.xlu0 %4218
        %4222 = vset.pattern.permute.xlu0 0
        %4223 = vperm.xlu0 %4222, %v3945
        %v4224 = vpop.permute.xlu0 %4223
        %4227 = vset.pattern.permute.xlu0 0
        %4228 = vperm.xlu0 %4227, %v3946
        %v4229 = vpop.permute.xlu0 %4228
        %4232 = vset.pattern.permute.xlu0 0
        %4233 = vperm.xlu0 %4232, %v3947
        %v4234 = vpop.permute.xlu0 %4233
        %4237 = vset.pattern.permute.xlu0 0
        %4238 = vperm.xlu0 %4237, %v3948
        %v4239 = vpop.permute.xlu0 %4238
        %4242 = vset.pattern.permute.xlu0 0
        %4243 = vperm.xlu0 %4242, %v3949
        %v4244 = vpop.permute.xlu0 %4243
        %4247 = vset.pattern.permute.xlu0 0
        %4248 = vperm.xlu0 %4247, %v3950
        %v4249 = vpop.permute.xlu0 %4248
        %4252 = vset.pattern.permute.xlu0 0
        %4253 = vperm.xlu0 %4252, %v3951
        %v4254 = vpop.permute.xlu0 %4253
        %4257 = vset.pattern.permute.xlu0 0
        %4258 = vperm.xlu0 %4257, %v3952
        %v4259 = vpop.permute.xlu0 %4258
        %4262 = vset.pattern.permute.xlu0 0
        %4263 = vperm.xlu0 %4262, %v3953
        %v4264 = vpop.permute.xlu0 %4263
        %4267 = vset.pattern.permute.xlu0 0
        %4268 = vperm.xlu0 %4267, %v3954
        %v4269 = vpop.permute.xlu0 %4268
        %4272 = vset.pattern.permute.xlu0 0
        %4273 = vperm.xlu0 %4272, %v3955
        %v4274 = vpop.permute.xlu0 %4273
        %4277 = vset.pattern.permute.xlu0 0
        %4278 = vperm.xlu0 %4277, %v3956
        %v4279 = vpop.permute.xlu0 %4278
        %4282 = vset.pattern.permute.xlu0 0
        %4283 = vperm.xlu0 %4282, %v3957
        %v4284 = vpop.permute.xlu0 %4283
        %4287 = vset.pattern.permute.xlu0 0
        %4288 = vperm.xlu0 %4287, %v3958
        %v4289 = vpop.permute.xlu0 %4288
        %4292 = vset.pattern.permute.xlu0 0
        %4293 = vperm.xlu0 %4292, %v3959
        %v4294 = vpop.permute.xlu0 %4293
        %4297 = vset.pattern.permute.xlu0 0
        %4298 = vperm.xlu0 %4297, %v3960
        %v4299 = vpop.permute.xlu0 %4298
        %4302 = vset.pattern.permute.xlu0 0
        %4303 = vperm.xlu0 %4302, %v3961
        %v4304 = vpop.permute.xlu0 %4303
        %4307 = vset.pattern.permute.xlu0 0
        %4308 = vperm.xlu0 %4307, %v3962
        %v4309 = vpop.permute.xlu0 %4308
        %4312 = vset.pattern.permute.xlu0 0
        %4313 = vperm.xlu0 %4312, %v3963
        %v4314 = vpop.permute.xlu0 %4313
        %4317 = vset.pattern.permute.xlu0 0
        %4318 = vperm.xlu0 %4317, %v3964
        %v4319 = vpop.permute.xlu0 %4318
        %4322 = vset.pattern.permute.xlu0 0
        %4323 = vperm.xlu0 %4322, %v3965
        %v4324 = vpop.permute.xlu0 %4323
        %4327 = vset.pattern.permute.xlu0 0
        %4328 = vperm.xlu0 %4327, %v3966
        %v4329 = vpop.permute.xlu0 %4328
        %4332 = vset.pattern.permute.xlu0 0
        %4333 = vperm.xlu0 %4332, %v3967
        %v4334 = vpop.permute.xlu0 %4333
        %4337 = vset.pattern.permute.xlu0 0
        %4338 = vperm.xlu0 %4337, %v3968
        %v4339 = vpop.permute.xlu0 %4338
        %4342 = vset.pattern.permute.xlu0 0
        %4343 = vperm.xlu0 %4342, %v3969
        %v4344 = vpop.permute.xlu0 %4343
        %4347 = vset.pattern.permute.xlu0 0
        %4348 = vperm.xlu0 %4347, %v3970
        %v4349 = vpop.permute.xlu0 %4348
        %4352 = vset.pattern.permute.xlu0 0
        %4353 = vperm.xlu0 %4352, %v3971
        %v4354 = vpop.permute.xlu0 %4353
        %4357 = vset.pattern.permute.xlu0 0
        %4358 = vperm.xlu0 %4357, %v3972
        %v4359 = vpop.permute.xlu0 %4358
        %4362 = vset.pattern.permute.xlu0 0
        %4363 = vperm.xlu0 %4362, %v3973
        %v4364 = vpop.permute.xlu0 %4363
        %4367 = vset.pattern.permute.xlu0 0
        %4368 = vperm.xlu0 %4367, %v3974
        %v4369 = vpop.permute.xlu0 %4368
        %4372 = vset.pattern.permute.xlu0 0
        %4373 = vperm.xlu0 %4372, %v3975
        %v4374 = vpop.permute.xlu0 %4373
        %4377 = vset.pattern.permute.xlu0 0
        %4378 = vperm.xlu0 %4377, %v3976
        %v4379 = vpop.permute.xlu0 %4378
        %4382 = vset.pattern.permute.xlu0 0
        %4383 = vperm.xlu0 %4382, %v3977
        %v4384 = vpop.permute.xlu0 %4383
        %4387 = vset.pattern.permute.xlu0 0
        %4388 = vperm.xlu0 %4387, %v3978
        %v4389 = vpop.permute.xlu0 %4388
        %4392 = vset.pattern.permute.xlu0 0
        %4393 = vperm.xlu0 %4392, %v3979
        %v4394 = vpop.permute.xlu0 %4393
        %4397 = vset.pattern.permute.xlu0 0
        %4398 = vperm.xlu0 %4397, %v3980
        %v4399 = vpop.permute.xlu0 %4398
        %4402 = vset.pattern.permute.xlu0 0
        %4403 = vperm.xlu0 %4402, %v3981
        %v4404 = vpop.permute.xlu0 %4403
        %4407 = vset.pattern.permute.xlu0 0
        %4408 = vperm.xlu0 %4407, %v3982
        %v4409 = vpop.permute.xlu0 %4408
        %4412 = vset.pattern.permute.xlu0 0
        %4413 = vperm.xlu0 %4412, %v3983
        %v4414 = vpop.permute.xlu0 %4413
        %4417 = vset.pattern.permute.xlu0 0
        %4418 = vperm.xlu0 %4417, %v3984
        %v4419 = vpop.permute.xlu0 %4418
        %4422 = vset.pattern.permute.xlu0 0
        %4423 = vperm.xlu0 %4422, %v3985
        %v4424 = vpop.permute.xlu0 %4423
        %4427 = vset.pattern.permute.xlu0 0
        %4428 = vperm.xlu0 %4427, %v3986
        %v4429 = vpop.permute.xlu0 %4428
        %4432 = vset.pattern.permute.xlu0 0
        %4433 = vperm.xlu0 %4432, %v3987
        %v4434 = vpop.permute.xlu0 %4433
        %4437 = vset.pattern.permute.xlu0 0
        %4438 = vperm.xlu0 %4437, %v3988
        %v4439 = vpop.permute.xlu0 %4438
        %4442 = vset.pattern.permute.xlu0 0
        %4443 = vperm.xlu0 %4442, %v3989
        %v4444 = vpop.permute.xlu0 %4443
        %4447 = vset.pattern.permute.xlu0 0
        %4448 = vperm.xlu0 %4447, %v3990
        %v4449 = vpop.permute.xlu0 %4448
        %4452 = vset.pattern.permute.xlu0 0
        %4453 = vperm.xlu0 %4452, %v3991
        %v4454 = vpop.permute.xlu0 %4453
        %4457 = vset.pattern.permute.xlu0 0
        %4458 = vperm.xlu0 %4457, %v3992
        %v4459 = vpop.permute.xlu0 %4458
        %4462 = vset.pattern.permute.xlu0 0
        %4463 = vperm.xlu0 %4462, %v3993
        %v4464 = vpop.permute.xlu0 %4463
        %4467 = vset.pattern.permute.xlu0 0
        %4468 = vperm.xlu0 %4467, %v3994
        %v4469 = vpop.permute.xlu0 %4468
        %4472 = vset.pattern.permute.xlu0 0
        %4473 = vperm.xlu0 %4472, %v3995
        %v4474 = vpop.permute.xlu0 %4473
        %4477 = vset.pattern.permute.xlu0 0
        %4478 = vperm.xlu0 %4477, %v3996
        %v4479 = vpop.permute.xlu0 %4478
        %4482 = vset.pattern.permute.xlu0 0
        %4483 = vperm.xlu0 %4482, %v3997
        %v4484 = vpop.permute.xlu0 %4483
        %4487 = vset.pattern.permute.xlu0 0
        %4488 = vperm.xlu0 %4487, %v3998
        %v4489 = vpop.permute.xlu0 %4488
        %4492 = vset.pattern.permute.xlu0 0
        %4493 = vperm.xlu0 %4492, %v3999
        %v4494 = vpop.permute.xlu0 %4493
        %4497 = vset.pattern.permute.xlu0 0
        %4498 = vperm.xlu0 %4497, %v4000
        %v4499 = vpop.permute.xlu0 %4498
        %4502 = vset.pattern.permute.xlu0 0
        %4503 = vperm.xlu0 %4502, %v4001
        %v4504 = vpop.permute.xlu0 %4503
        %4507 = vset.pattern.permute.xlu0 0
        %4508 = vperm.xlu0 %4507, %v4002
        %v4509 = vpop.permute.xlu0 %4508
        %4512 = vset.pattern.permute.xlu0 0
        %4513 = vperm.xlu0 %4512, %v4003
        %v4514 = vpop.permute.xlu0 %4513
        %4517 = vset.pattern.permute.xlu0 0
        %4518 = vperm.xlu0 %4517, %v4004
        %v4519 = vpop.permute.xlu0 %4518
        %4522 = vset.pattern.permute.xlu0 0
        %4523 = vperm.xlu0 %4522, %v4005
        %v4524 = vpop.permute.xlu0 %4523
        %4527 = vset.pattern.permute.xlu0 0
        %4528 = vperm.xlu0 %4527, %v4006
        %v4529 = vpop.permute.xlu0 %4528
        %4532 = vset.pattern.permute.xlu0 0
        %4533 = vperm.xlu0 %4532, %v4007
        %v4534 = vpop.permute.xlu0 %4533
        %4537 = vset.pattern.permute.xlu0 0
        %4538 = vperm.xlu0 %4537, %v4008
        %v4539 = vpop.permute.xlu0 %4538
        %4542 = vset.pattern.permute.xlu0 0
        %4543 = vperm.xlu0 %4542, %v4009
        %v4544 = vpop.permute.xlu0 %4543
        %4547 = vset.pattern.permute.xlu0 0
        %4548 = vperm.xlu0 %4547, %v4010
        %v4549 = vpop.permute.xlu0 %4548
        %4552 = vset.pattern.permute.xlu0 0
        %4553 = vperm.xlu0 %4552, %v4011
        %v4554 = vpop.permute.xlu0 %4553
        %4557 = vset.pattern.permute.xlu0 0
        %4558 = vperm.xlu0 %4557, %v4012
        %v4559 = vpop.permute.xlu0 %4558
        %4562 = vset.pattern.permute.xlu0 0
        %4563 = vperm.xlu0 %4562, %v4013
        %v4564 = vpop.permute.xlu0 %4563
        %4567 = vset.pattern.permute.xlu0 0
        %4568 = vperm.xlu0 %4567, %v4014
        %v4569 = vpop.permute.xlu0 %4568
        %4572 = vset.pattern.permute.xlu0 0
        %4573 = vperm.xlu0 %4572, %v4015
        %v4574 = vpop.permute.xlu0 %4573
        %4577 = vset.pattern.permute.xlu0 0
        %4578 = vperm.xlu0 %4577, %v4016
        %v4579 = vpop.permute.xlu0 %4578
        %4582 = vset.pattern.permute.xlu0 0
        %4583 = vperm.xlu0 %4582, %v4017
        %v4584 = vpop.permute.xlu0 %4583
        %4587 = vset.pattern.permute.xlu0 0
        %4588 = vperm.xlu0 %4587, %v4018
        %v4589 = vpop.permute.xlu0 %4588
        %4592 = vset.pattern.permute.xlu0 0
        %4593 = vperm.xlu0 %4592, %v4019
        %v4594 = vpop.permute.xlu0 %4593
        %4597 = vset.pattern.permute.xlu0 0
        %4598 = vperm.xlu0 %4597, %v4020
        %v4599 = vpop.permute.xlu0 %4598
        %4602 = vset.pattern.permute.xlu0 0
        %4603 = vperm.xlu0 %4602, %v4021
        %v4604 = vpop.permute.xlu0 %4603
        %4607 = vset.pattern.permute.xlu0 0
        %4608 = vperm.xlu0 %4607, %v4022
        %v4609 = vpop.permute.xlu0 %4608
        %4612 = vset.pattern.permute.xlu0 0
        %4613 = vperm.xlu0 %4612, %v4023
        %v4614 = vpop.permute.xlu0 %4613
        %4617 = vset.pattern.permute.xlu0 0
        %4618 = vperm.xlu0 %4617, %v4024
        %v4619 = vpop.permute.xlu0 %4618
        %4622 = vset.pattern.permute.xlu0 0
        %4623 = vperm.xlu0 %4622, %v4025
        %v4624 = vpop.permute.xlu0 %4623
        %4627 = vset.pattern.permute.xlu0 0
        %4628 = vperm.xlu0 %4627, %v4026
        %v4629 = vpop.permute.xlu0 %4628
        %4632 = vset.pattern.permute.xlu0 0
        %4633 = vperm.xlu0 %4632, %v4027
        %v4634 = vpop.permute.xlu0 %4633
        %4637 = vset.pattern.permute.xlu0 0
        %4638 = vperm.xlu0 %4637, %v4028
        %v4639 = vpop.permute.xlu0 %4638
        %4642 = vset.pattern.permute.xlu0 0
        %4643 = vperm.xlu0 %4642, %v4029
        %v4644 = vpop.permute.xlu0 %4643
        %4647 = vset.pattern.permute.xlu0 0
        %4648 = vperm.xlu0 %4647, %v4030
        %v4649 = vpop.permute.xlu0 %4648
        %4652 = vset.pattern.permute.xlu0 0
        %4653 = vperm.xlu0 %4652, %v4031
        %v4654 = vpop.permute.xlu0 %4653
        %4657 = vset.pattern.permute.xlu0 0
        %4658 = vperm.xlu0 %4657, %v4032
        %v4659 = vpop.permute.xlu0 %4658
        %4662 = vset.pattern.permute.xlu0 0
        %4663 = vperm.xlu0 %4662, %v4033
        %v4664 = vpop.permute.xlu0 %4663
        %4667 = vset.pattern.permute.xlu0 0
        %4668 = vperm.xlu0 %4667, %v4034
        %v4669 = vpop.permute.xlu0 %4668
        %4672 = vset.pattern.permute.xlu0 0
        %4673 = vperm.xlu0 %4672, %v4035
        %v4674 = vpop.permute.xlu0 %4673
        %v4676 = vmul.f32 %v1862, %v4039
        %v4677 = vmul.f32 %v1865, %v4044
        %v4678 = vmul.f32 %v1870, %v4049
        %v4679 = vmul.f32 %v1873, %v4054
        %v4680 = vmul.f32 %v1878, %v4059
        %v4681 = vmul.f32 %v1881, %v4064
        %v4682 = vmul.f32 %v1886, %v4069
        %v4683 = vmul.f32 %v1889, %v4074
        %v4684 = vmul.f32 %v1894, %v4079
        %v4685 = vmul.f32 %v1897, %v4084
        %v4686 = vmul.f32 %v1902, %v4089
        %v4687 = vmul.f32 %v1905, %v4094
        %v4688 = vmul.f32 %v1910, %v4099
        %v4689 = vmul.f32 %v1913, %v4104
        %v4690 = vmul.f32 %v1918, %v4109
        %v4691 = vmul.f32 %v1921, %v4114
        %v4692 = vmul.f32 %v1926, %v4119
        %v4693 = vmul.f32 %v1929, %v4124
        %v4694 = vmul.f32 %v1934, %v4129
        %v4695 = vmul.f32 %v1937, %v4134
        %v4696 = vmul.f32 %v1942, %v4139
        %v4697 = vmul.f32 %v1945, %v4144
        %v4698 = vmul.f32 %v1950, %v4149
        %v4699 = vmul.f32 %v1953, %v4154
        %v4700 = vmul.f32 %v1958, %v4159
        %v4701 = vmul.f32 %v1961, %v4164
        %v4702 = vmul.f32 %v1966, %v4169
        %v4703 = vmul.f32 %v1969, %v4174
        %v4704 = vmul.f32 %v1974, %v4179
        %v4705 = vmul.f32 %v1977, %v4184
        %v4706 = vmul.f32 %v1982, %v4189
        %v4707 = vmul.f32 %v1985, %v4194
        %v4708 = vmul.f32 %v1990, %v4199
        %v4709 = vmul.f32 %v1993, %v4204
        %v4710 = vmul.f32 %v1998, %v4209
        %v4711 = vmul.f32 %v2001, %v4214
        %v4712 = vmul.f32 %v2006, %v4219
        %v4713 = vmul.f32 %v2009, %v4224
        %v4714 = vmul.f32 %v2014, %v4229
        %v4715 = vmul.f32 %v2017, %v4234
        %v4716 = vmul.f32 %v2022, %v4239
        %v4717 = vmul.f32 %v2025, %v4244
        %v4718 = vmul.f32 %v2030, %v4249
        %v4719 = vmul.f32 %v2033, %v4254
        %v4720 = vmul.f32 %v2038, %v4259
        %v4721 = vmul.f32 %v2041, %v4264
        %v4722 = vmul.f32 %v2046, %v4269
        %v4723 = vmul.f32 %v2049, %v4274
        %v4724 = vmul.f32 %v2054, %v4279
        %v4725 = vmul.f32 %v2057, %v4284
        %v4726 = vmul.f32 %v2062, %v4289
        %v4727 = vmul.f32 %v2065, %v4294
        %v4728 = vmul.f32 %v2070, %v4299
        %v4729 = vmul.f32 %v2073, %v4304
        %v4730 = vmul.f32 %v2078, %v4309
        %v4731 = vmul.f32 %v2081, %v4314
        %v4732 = vmul.f32 %v2086, %v4319
        %v4733 = vmul.f32 %v2089, %v4324
        %v4734 = vmul.f32 %v2094, %v4329
        %v4735 = vmul.f32 %v2097, %v4334
        %v4736 = vmul.f32 %v2102, %v4339
        %v4737 = vmul.f32 %v2105, %v4344
        %v4738 = vmul.f32 %v2110, %v4349
        %v4739 = vmul.f32 %v2113, %v4354
        %v4740 = vmul.f32 %v2118, %v4359
        %v4741 = vmul.f32 %v2121, %v4364
        %v4742 = vmul.f32 %v2126, %v4369
        %v4743 = vmul.f32 %v2129, %v4374
        %v4744 = vmul.f32 %v2134, %v4379
        %v4745 = vmul.f32 %v2137, %v4384
        %v4746 = vmul.f32 %v2142, %v4389
        %v4747 = vmul.f32 %v2145, %v4394
        %v4748 = vmul.f32 %v2150, %v4399
        %v4749 = vmul.f32 %v2153, %v4404
        %v4750 = vmul.f32 %v2158, %v4409
        %v4751 = vmul.f32 %v2161, %v4414
        %v4752 = vmul.f32 %v2166, %v4419
        %v4753 = vmul.f32 %v2169, %v4424
        %v4754 = vmul.f32 %v2174, %v4429
        %v4755 = vmul.f32 %v2177, %v4434
        %v4756 = vmul.f32 %v2182, %v4439
        %v4757 = vmul.f32 %v2185, %v4444
        %v4758 = vmul.f32 %v2190, %v4449
        %v4759 = vmul.f32 %v2193, %v4454
        %v4760 = vmul.f32 %v2198, %v4459
        %v4761 = vmul.f32 %v2201, %v4464
        %v4762 = vmul.f32 %v2206, %v4469
        %v4763 = vmul.f32 %v2209, %v4474
        %v4764 = vmul.f32 %v2214, %v4479
        %v4765 = vmul.f32 %v2217, %v4484
        %v4766 = vmul.f32 %v2222, %v4489
        %v4767 = vmul.f32 %v2225, %v4494
        %v4768 = vmul.f32 %v2230, %v4499
        %v4769 = vmul.f32 %v2233, %v4504
        %v4770 = vmul.f32 %v2238, %v4509
        %v4771 = vmul.f32 %v2241, %v4514
        %v4772 = vmul.f32 %v2246, %v4519
        %v4773 = vmul.f32 %v2249, %v4524
        %v4774 = vmul.f32 %v2254, %v4529
        %v4775 = vmul.f32 %v2257, %v4534
        %v4776 = vmul.f32 %v2262, %v4539
        %v4777 = vmul.f32 %v2265, %v4544
        %v4778 = vmul.f32 %v2270, %v4549
        %v4779 = vmul.f32 %v2273, %v4554
        %v4780 = vmul.f32 %v2278, %v4559
        %v4781 = vmul.f32 %v2281, %v4564
        %v4782 = vmul.f32 %v2286, %v4569
        %v4783 = vmul.f32 %v2289, %v4574
        %v4784 = vmul.f32 %v2294, %v4579
        %v4785 = vmul.f32 %v2297, %v4584
        %v4786 = vmul.f32 %v2302, %v4589
        %v4787 = vmul.f32 %v2305, %v4594
        %v4788 = vmul.f32 %v2310, %v4599
        %v4789 = vmul.f32 %v2313, %v4604
        %v4790 = vmul.f32 %v2318, %v4609
        %v4791 = vmul.f32 %v2321, %v4614
        %v4792 = vmul.f32 %v2326, %v4619
        %v4793 = vmul.f32 %v2329, %v4624
        %v4794 = vmul.f32 %v2334, %v4629
        %v4795 = vmul.f32 %v2337, %v4634
        %v4796 = vmul.f32 %v2342, %v4639
        %v4797 = vmul.f32 %v2345, %v4644
        %v4798 = vmul.f32 %v2350, %v4649
        %v4799 = vmul.f32 %v2353, %v4654
        %v4800 = vmul.f32 %v2358, %v4659
        %v4801 = vmul.f32 %v2361, %v4664
        %v4802 = vmul.f32 %v2366, %v4669
        %v4803 = vmul.f32 %v2369, %v4674
        %v4804 = vmul.f32 %v2628, %v3908
        %v4805 = vmul.f32 %v2629, %v3909
        %v4806 = vmul.f32 %v2630, %v3910
        %v4807 = vmul.f32 %v2631, %v3911
        %v4808 = vmul.f32 %v2632, %v3912
        %v4809 = vmul.f32 %v2633, %v3913
        %v4810 = vmul.f32 %v2634, %v3914
        %v4811 = vmul.f32 %v2635, %v3915
        %v4812 = vmul.f32 %v2636, %v3916
        %v4813 = vmul.f32 %v2637, %v3917
        %v4814 = vmul.f32 %v2638, %v3918
        %v4815 = vmul.f32 %v2639, %v3919
        %v4816 = vmul.f32 %v2640, %v3920
        %v4817 = vmul.f32 %v2641, %v3921
        %v4818 = vmul.f32 %v2642, %v3922
        %v4819 = vmul.f32 %v2643, %v3923
        %v4820 = vmul.f32 %v2644, %v3924
        %v4821 = vmul.f32 %v2645, %v3925
        %v4822 = vmul.f32 %v2646, %v3926
        %v4823 = vmul.f32 %v2647, %v3927
        %v4824 = vmul.f32 %v2648, %v3928
        %v4825 = vmul.f32 %v2649, %v3929
        %v4826 = vmul.f32 %v2650, %v3930
        %v4827 = vmul.f32 %v2651, %v3931
        %v4828 = vmul.f32 %v2652, %v3932
        %v4829 = vmul.f32 %v2653, %v3933
        %v4830 = vmul.f32 %v2654, %v3934
        %v4831 = vmul.f32 %v2655, %v3935
        %v4832 = vmul.f32 %v2656, %v3936
        %v4833 = vmul.f32 %v2657, %v3937
        %v4834 = vmul.f32 %v2658, %v3938
        %v4835 = vmul.f32 %v2659, %v3939
        %v4836 = vmul.f32 %v2660, %v3940
        %v4837 = vmul.f32 %v2661, %v3941
        %v4838 = vmul.f32 %v2662, %v3942
        %v4839 = vmul.f32 %v2663, %v3943
        %v4840 = vmul.f32 %v2664, %v3944
        %v4841 = vmul.f32 %v2665, %v3945
        %v4842 = vmul.f32 %v2666, %v3946
        %v4843 = vmul.f32 %v2667, %v3947
        %v4844 = vmul.f32 %v2668, %v3948
        %v4845 = vmul.f32 %v2669, %v3949
        %v4846 = vmul.f32 %v2670, %v3950
        %v4847 = vmul.f32 %v2671, %v3951
        %v4848 = vmul.f32 %v2672, %v3952
        %v4849 = vmul.f32 %v2673, %v3953
        %v4850 = vmul.f32 %v2674, %v3954
        %v4851 = vmul.f32 %v2675, %v3955
        %v4852 = vmul.f32 %v2676, %v3956
        %v4853 = vmul.f32 %v2677, %v3957
        %v4854 = vmul.f32 %v2678, %v3958
        %v4855 = vmul.f32 %v2679, %v3959
        %v4856 = vmul.f32 %v2680, %v3960
        %v4857 = vmul.f32 %v2681, %v3961
        %v4858 = vmul.f32 %v2682, %v3962
        %v4859 = vmul.f32 %v2683, %v3963
        %v4860 = vmul.f32 %v2684, %v3964
        %v4861 = vmul.f32 %v2685, %v3965
        %v4862 = vmul.f32 %v2686, %v3966
        %v4863 = vmul.f32 %v2687, %v3967
        %v4864 = vmul.f32 %v2688, %v3968
        %v4865 = vmul.f32 %v2689, %v3969
        %v4866 = vmul.f32 %v2690, %v3970
        %v4867 = vmul.f32 %v2691, %v3971
        %v4868 = vmul.f32 %v2692, %v3972
        %v4869 = vmul.f32 %v2693, %v3973
        %v4870 = vmul.f32 %v2694, %v3974
        %v4871 = vmul.f32 %v2695, %v3975
        %v4872 = vmul.f32 %v2696, %v3976
        %v4873 = vmul.f32 %v2697, %v3977
        %v4874 = vmul.f32 %v2698, %v3978
        %v4875 = vmul.f32 %v2699, %v3979
        %v4876 = vmul.f32 %v2700, %v3980
        %v4877 = vmul.f32 %v2701, %v3981
        %v4878 = vmul.f32 %v2702, %v3982
        %v4879 = vmul.f32 %v2703, %v3983
        %v4880 = vmul.f32 %v2704, %v3984
        %v4881 = vmul.f32 %v2705, %v3985
        %v4882 = vmul.f32 %v2706, %v3986
        %v4883 = vmul.f32 %v2707, %v3987
        %v4884 = vmul.f32 %v2708, %v3988
        %v4885 = vmul.f32 %v2709, %v3989
        %v4886 = vmul.f32 %v2710, %v3990
        %v4887 = vmul.f32 %v2711, %v3991
        %v4888 = vmul.f32 %v2712, %v3992
        %v4889 = vmul.f32 %v2713, %v3993
        %v4890 = vmul.f32 %v2714, %v3994
        %v4891 = vmul.f32 %v2715, %v3995
        %v4892 = vmul.f32 %v2716, %v3996
        %v4893 = vmul.f32 %v2717, %v3997
        %v4894 = vmul.f32 %v2718, %v3998
        %v4895 = vmul.f32 %v2719, %v3999
        %v4896 = vmul.f32 %v2720, %v4000
        %v4897 = vmul.f32 %v2721, %v4001
        %v4898 = vmul.f32 %v2722, %v4002
        %v4899 = vmul.f32 %v2723, %v4003
        %v4900 = vmul.f32 %v2724, %v4004
        %v4901 = vmul.f32 %v2725, %v4005
        %v4902 = vmul.f32 %v2726, %v4006
        %v4903 = vmul.f32 %v2727, %v4007
        %v4904 = vmul.f32 %v2728, %v4008
        %v4905 = vmul.f32 %v2729, %v4009
        %v4906 = vmul.f32 %v2730, %v4010
        %v4907 = vmul.f32 %v2731, %v4011
        %v4908 = vmul.f32 %v2732, %v4012
        %v4909 = vmul.f32 %v2733, %v4013
        %v4910 = vmul.f32 %v2734, %v4014
        %v4911 = vmul.f32 %v2735, %v4015
        %v4912 = vmul.f32 %v2736, %v4016
        %v4913 = vmul.f32 %v2737, %v4017
        %v4914 = vmul.f32 %v2738, %v4018
        %v4915 = vmul.f32 %v2739, %v4019
        %v4916 = vmul.f32 %v2740, %v4020
        %v4917 = vmul.f32 %v2741, %v4021
        %v4918 = vmul.f32 %v2742, %v4022
        %v4919 = vmul.f32 %v2743, %v4023
        %v4920 = vmul.f32 %v2744, %v4024
        %v4921 = vmul.f32 %v2745, %v4025
        %v4922 = vmul.f32 %v2746, %v4026
        %v4923 = vmul.f32 %v2747, %v4027
        %v4924 = vmul.f32 %v2748, %v4028
        %v4925 = vmul.f32 %v2749, %v4029
        %v4926 = vmul.f32 %v2750, %v4030
        %v4927 = vmul.f32 %v2751, %v4031
        %v4928 = vmul.f32 %v2752, %v4032
        %v4929 = vmul.f32 %v2753, %v4033
        %v4930 = vmul.f32 %v2754, %v4034
        %v4931 = vmul.f32 %v2755, %v4035
        %v4932 = vsub.f32 %v1627, %v4804
        %v4933 = vsub.f32 %v1628, %v4805
        %v4934 = vsub.f32 %v1629, %v4806
        %v4935 = vsub.f32 %v1630, %v4807
        %v4936 = vsub.f32 %v1631, %v4808
        %v4937 = vsub.f32 %v1632, %v4809
        %v4938 = vsub.f32 %v1633, %v4810
        %v4939 = vsub.f32 %v1634, %v4811
        %v4940 = vsub.f32 %v1635, %v4812
        %v4941 = vsub.f32 %v1636, %v4813
        %v4942 = vsub.f32 %v1637, %v4814
        %v4943 = vsub.f32 %v1638, %v4815
        %v4944 = vsub.f32 %v1639, %v4816
        %v4945 = vsub.f32 %v1640, %v4817
        %v4946 = vsub.f32 %v1641, %v4818
        %v4947 = vsub.f32 %v1642, %v4819
        %v4948 = vsub.f32 %v1643, %v4820
        %v4949 = vsub.f32 %v1644, %v4821
        %v4950 = vsub.f32 %v1645, %v4822
        %v4951 = vsub.f32 %v1646, %v4823
        %v4952 = vsub.f32 %v1647, %v4824
        %v4953 = vsub.f32 %v1648, %v4825
        %v4954 = vsub.f32 %v1649, %v4826
        %v4955 = vsub.f32 %v1650, %v4827
        %v4956 = vsub.f32 %v1651, %v4828
        %v4957 = vsub.f32 %v1652, %v4829
        %v4958 = vsub.f32 %v1653, %v4830
        %v4959 = vsub.f32 %v1654, %v4831
        %v4960 = vsub.f32 %v1655, %v4832
        %v4961 = vsub.f32 %v1656, %v4833
        %v4962 = vsub.f32 %v1657, %v4834
        %v4963 = vsub.f32 %v1658, %v4835
        %v4964 = vsub.f32 %v1659, %v4836
        %v4965 = vsub.f32 %v1660, %v4837
        %v4966 = vsub.f32 %v1661, %v4838
        %v4967 = vsub.f32 %v1662, %v4839
        %v4968 = vsub.f32 %v1663, %v4840
        %v4969 = vsub.f32 %v1664, %v4841
        %v4970 = vsub.f32 %v1665, %v4842
        %v4971 = vsub.f32 %v1666, %v4843
        %v4972 = vsub.f32 %v1667, %v4844
        %v4973 = vsub.f32 %v1668, %v4845
        %v4974 = vsub.f32 %v1669, %v4846
        %v4975 = vsub.f32 %v1670, %v4847
        %v4976 = vsub.f32 %v1671, %v4848
        %v4977 = vsub.f32 %v1672, %v4849
        %v4978 = vsub.f32 %v1673, %v4850
        %v4979 = vsub.f32 %v1674, %v4851
        %v4980 = vsub.f32 %v1675, %v4852
        %v4981 = vsub.f32 %v1676, %v4853
        %v4982 = vsub.f32 %v1677, %v4854
        %v4983 = vsub.f32 %v1678, %v4855
        %v4984 = vsub.f32 %v1679, %v4856
        %v4985 = vsub.f32 %v1680, %v4857
        %v4986 = vsub.f32 %v1681, %v4858
        %v4987 = vsub.f32 %v1682, %v4859
        %v4988 = vsub.f32 %v1683, %v4860
        %v4989 = vsub.f32 %v1684, %v4861
        %v4990 = vsub.f32 %v1685, %v4862
        %v4991 = vsub.f32 %v1686, %v4863
        %v4992 = vsub.f32 %v1687, %v4864
        %v4993 = vsub.f32 %v1688, %v4865
        %v4994 = vsub.f32 %v1689, %v4866
        %v4995 = vsub.f32 %v1690, %v4867
        %v4996 = vsub.f32 %v1691, %v4868
        %v4997 = vsub.f32 %v1692, %v4869
        %v4998 = vsub.f32 %v1693, %v4870
        %v4999 = vsub.f32 %v1694, %v4871
        %v5000 = vsub.f32 %v1695, %v4872
        %v5001 = vsub.f32 %v1696, %v4873
        %v5002 = vsub.f32 %v1697, %v4874
        %v5003 = vsub.f32 %v1698, %v4875
        %v5004 = vsub.f32 %v1699, %v4876
        %v5005 = vsub.f32 %v1700, %v4877
        %v5006 = vsub.f32 %v1701, %v4878
        %v5007 = vsub.f32 %v1702, %v4879
        %v5008 = vsub.f32 %v1703, %v4880
        %v5009 = vsub.f32 %v1704, %v4881
        %v5010 = vsub.f32 %v1705, %v4882
        %v5011 = vsub.f32 %v1706, %v4883
        %v5012 = vsub.f32 %v1707, %v4884
        %v5013 = vsub.f32 %v1708, %v4885
        %v5014 = vsub.f32 %v1709, %v4886
        %v5015 = vsub.f32 %v1710, %v4887
        %v5016 = vsub.f32 %v1711, %v4888
        %v5017 = vsub.f32 %v1712, %v4889
        %v5018 = vsub.f32 %v1713, %v4890
        %v5019 = vsub.f32 %v1714, %v4891
        %v5020 = vsub.f32 %v1715, %v4892
        %v5021 = vsub.f32 %v1716, %v4893
        %v5022 = vsub.f32 %v1717, %v4894
        %v5023 = vsub.f32 %v1718, %v4895
        %v5024 = vsub.f32 %v1719, %v4896
        %v5025 = vsub.f32 %v1720, %v4897
        %v5026 = vsub.f32 %v1721, %v4898
        %v5027 = vsub.f32 %v1722, %v4899
        %v5028 = vsub.f32 %v1723, %v4900
        %v5029 = vsub.f32 %v1724, %v4901
        %v5030 = vsub.f32 %v1725, %v4902
        %v5031 = vsub.f32 %v1726, %v4903
        %v5032 = vsub.f32 %v1727, %v4904
        %v5033 = vsub.f32 %v1728, %v4905
        %v5034 = vsub.f32 %v1729, %v4906
        %v5035 = vsub.f32 %v1730, %v4907
        %v5036 = vsub.f32 %v1731, %v4908
        %v5037 = vsub.f32 %v1732, %v4909
        %v5038 = vsub.f32 %v1733, %v4910
        %v5039 = vsub.f32 %v1734, %v4911
        %v5040 = vsub.f32 %v1735, %v4912
        %v5041 = vsub.f32 %v1736, %v4913
        %v5042 = vsub.f32 %v1737, %v4914
        %v5043 = vsub.f32 %v1738, %v4915
        %v5044 = vsub.f32 %v1739, %v4916
        %v5045 = vsub.f32 %v1740, %v4917
        %v5046 = vsub.f32 %v1741, %v4918
        %v5047 = vsub.f32 %v1742, %v4919
        %v5048 = vsub.f32 %v1743, %v4920
        %v5049 = vsub.f32 %v1744, %v4921
        %v5050 = vsub.f32 %v1745, %v4922
        %v5051 = vsub.f32 %v1746, %v4923
        %v5052 = vsub.f32 %v1747, %v4924
        %v5053 = vsub.f32 %v1748, %v4925
        %v5054 = vsub.f32 %v1749, %v4926
        %v5055 = vsub.f32 %v1750, %v4927
        %v5056 = vsub.f32 %v1751, %v4928
        %v5057 = vsub.f32 %v1752, %v4929
        %v5058 = vsub.f32 %v1753, %v4930
        %v5059 = vsub.f32 %v1754, %v4931
        %5061 = vset.pattern.permute.xlu0 0
        %5062 = vperm.xlu0 %5061, %v4932
        %v5063 = vpop.permute.xlu0 %5062
        %5066 = vset.pattern.permute.xlu0 0
        %5067 = vperm.xlu0 %5066, %v4933
        %v5068 = vpop.permute.xlu0 %5067
        %5071 = vset.pattern.permute.xlu0 0
        %5072 = vperm.xlu0 %5071, %v4934
        %v5073 = vpop.permute.xlu0 %5072
        %5076 = vset.pattern.permute.xlu0 0
        %5077 = vperm.xlu0 %5076, %v4935
        %v5078 = vpop.permute.xlu0 %5077
        %5081 = vset.pattern.permute.xlu0 0
        %5082 = vperm.xlu0 %5081, %v4936
        %v5083 = vpop.permute.xlu0 %5082
        %5086 = vset.pattern.permute.xlu0 0
        %5087 = vperm.xlu0 %5086, %v4937
        %v5088 = vpop.permute.xlu0 %5087
        %5091 = vset.pattern.permute.xlu0 0
        %5092 = vperm.xlu0 %5091, %v4938
        %v5093 = vpop.permute.xlu0 %5092
        %5096 = vset.pattern.permute.xlu0 0
        %5097 = vperm.xlu0 %5096, %v4939
        %v5098 = vpop.permute.xlu0 %5097
        %5101 = vset.pattern.permute.xlu0 0
        %5102 = vperm.xlu0 %5101, %v4940
        %v5103 = vpop.permute.xlu0 %5102
        %5106 = vset.pattern.permute.xlu0 0
        %5107 = vperm.xlu0 %5106, %v4941
        %v5108 = vpop.permute.xlu0 %5107
        %5111 = vset.pattern.permute.xlu0 0
        %5112 = vperm.xlu0 %5111, %v4942
        %v5113 = vpop.permute.xlu0 %5112
        %5116 = vset.pattern.permute.xlu0 0
        %5117 = vperm.xlu0 %5116, %v4943
        %v5118 = vpop.permute.xlu0 %5117
        %5121 = vset.pattern.permute.xlu0 0
        %5122 = vperm.xlu0 %5121, %v4944
        %v5123 = vpop.permute.xlu0 %5122
        %5126 = vset.pattern.permute.xlu0 0
        %5127 = vperm.xlu0 %5126, %v4945
        %v5128 = vpop.permute.xlu0 %5127
        %5131 = vset.pattern.permute.xlu0 0
        %5132 = vperm.xlu0 %5131, %v4946
        %v5133 = vpop.permute.xlu0 %5132
        %5136 = vset.pattern.permute.xlu0 0
        %5137 = vperm.xlu0 %5136, %v4947
        %v5138 = vpop.permute.xlu0 %5137
        %5141 = vset.pattern.permute.xlu0 0
        %5142 = vperm.xlu0 %5141, %v4948
        %v5143 = vpop.permute.xlu0 %5142
        %5146 = vset.pattern.permute.xlu0 0
        %5147 = vperm.xlu0 %5146, %v4949
        %v5148 = vpop.permute.xlu0 %5147
        %5151 = vset.pattern.permute.xlu0 0
        %5152 = vperm.xlu0 %5151, %v4950
        %v5153 = vpop.permute.xlu0 %5152
        %5156 = vset.pattern.permute.xlu0 0
        %5157 = vperm.xlu0 %5156, %v4951
        %v5158 = vpop.permute.xlu0 %5157
        %5161 = vset.pattern.permute.xlu0 0
        %5162 = vperm.xlu0 %5161, %v4952
        %v5163 = vpop.permute.xlu0 %5162
        %5166 = vset.pattern.permute.xlu0 0
        %5167 = vperm.xlu0 %5166, %v4953
        %v5168 = vpop.permute.xlu0 %5167
        %5171 = vset.pattern.permute.xlu0 0
        %5172 = vperm.xlu0 %5171, %v4954
        %v5173 = vpop.permute.xlu0 %5172
        %5176 = vset.pattern.permute.xlu0 0
        %5177 = vperm.xlu0 %5176, %v4955
        %v5178 = vpop.permute.xlu0 %5177
        %5181 = vset.pattern.permute.xlu0 0
        %5182 = vperm.xlu0 %5181, %v4956
        %v5183 = vpop.permute.xlu0 %5182
        %5186 = vset.pattern.permute.xlu0 0
        %5187 = vperm.xlu0 %5186, %v4957
        %v5188 = vpop.permute.xlu0 %5187
        %5191 = vset.pattern.permute.xlu0 0
        %5192 = vperm.xlu0 %5191, %v4958
        %v5193 = vpop.permute.xlu0 %5192
        %5196 = vset.pattern.permute.xlu0 0
        %5197 = vperm.xlu0 %5196, %v4959
        %v5198 = vpop.permute.xlu0 %5197
        %5201 = vset.pattern.permute.xlu0 0
        %5202 = vperm.xlu0 %5201, %v4960
        %v5203 = vpop.permute.xlu0 %5202
        %5206 = vset.pattern.permute.xlu0 0
        %5207 = vperm.xlu0 %5206, %v4961
        %v5208 = vpop.permute.xlu0 %5207
        %5211 = vset.pattern.permute.xlu0 0
        %5212 = vperm.xlu0 %5211, %v4962
        %v5213 = vpop.permute.xlu0 %5212
        %5216 = vset.pattern.permute.xlu0 0
        %5217 = vperm.xlu0 %5216, %v4963
        %v5218 = vpop.permute.xlu0 %5217
        %5221 = vset.pattern.permute.xlu0 0
        %5222 = vperm.xlu0 %5221, %v4964
        %v5223 = vpop.permute.xlu0 %5222
        %5226 = vset.pattern.permute.xlu0 0
        %5227 = vperm.xlu0 %5226, %v4965
        %v5228 = vpop.permute.xlu0 %5227
        %5231 = vset.pattern.permute.xlu0 0
        %5232 = vperm.xlu0 %5231, %v4966
        %v5233 = vpop.permute.xlu0 %5232
        %5236 = vset.pattern.permute.xlu0 0
        %5237 = vperm.xlu0 %5236, %v4967
        %v5238 = vpop.permute.xlu0 %5237
        %5241 = vset.pattern.permute.xlu0 0
        %5242 = vperm.xlu0 %5241, %v4968
        %v5243 = vpop.permute.xlu0 %5242
        %5246 = vset.pattern.permute.xlu0 0
        %5247 = vperm.xlu0 %5246, %v4969
        %v5248 = vpop.permute.xlu0 %5247
        %5251 = vset.pattern.permute.xlu0 0
        %5252 = vperm.xlu0 %5251, %v4970
        %v5253 = vpop.permute.xlu0 %5252
        %5256 = vset.pattern.permute.xlu0 0
        %5257 = vperm.xlu0 %5256, %v4971
        %v5258 = vpop.permute.xlu0 %5257
        %5261 = vset.pattern.permute.xlu0 0
        %5262 = vperm.xlu0 %5261, %v4972
        %v5263 = vpop.permute.xlu0 %5262
        %5266 = vset.pattern.permute.xlu0 0
        %5267 = vperm.xlu0 %5266, %v4973
        %v5268 = vpop.permute.xlu0 %5267
        %5271 = vset.pattern.permute.xlu0 0
        %5272 = vperm.xlu0 %5271, %v4974
        %v5273 = vpop.permute.xlu0 %5272
        %5276 = vset.pattern.permute.xlu0 0
        %5277 = vperm.xlu0 %5276, %v4975
        %v5278 = vpop.permute.xlu0 %5277
        %5281 = vset.pattern.permute.xlu0 0
        %5282 = vperm.xlu0 %5281, %v4976
        %v5283 = vpop.permute.xlu0 %5282
        %5286 = vset.pattern.permute.xlu0 0
        %5287 = vperm.xlu0 %5286, %v4977
        %v5288 = vpop.permute.xlu0 %5287
        %5291 = vset.pattern.permute.xlu0 0
        %5292 = vperm.xlu0 %5291, %v4978
        %v5293 = vpop.permute.xlu0 %5292
        %5296 = vset.pattern.permute.xlu0 0
        %5297 = vperm.xlu0 %5296, %v4979
        %v5298 = vpop.permute.xlu0 %5297
        %5301 = vset.pattern.permute.xlu0 0
        %5302 = vperm.xlu0 %5301, %v4980
        %v5303 = vpop.permute.xlu0 %5302
        %5306 = vset.pattern.permute.xlu0 0
        %5307 = vperm.xlu0 %5306, %v4981
        %v5308 = vpop.permute.xlu0 %5307
        %5311 = vset.pattern.permute.xlu0 0
        %5312 = vperm.xlu0 %5311, %v4982
        %v5313 = vpop.permute.xlu0 %5312
        %5316 = vset.pattern.permute.xlu0 0
        %5317 = vperm.xlu0 %5316, %v4983
        %v5318 = vpop.permute.xlu0 %5317
        %5321 = vset.pattern.permute.xlu0 0
        %5322 = vperm.xlu0 %5321, %v4984
        %v5323 = vpop.permute.xlu0 %5322
        %5326 = vset.pattern.permute.xlu0 0
        %5327 = vperm.xlu0 %5326, %v4985
        %v5328 = vpop.permute.xlu0 %5327
        %5331 = vset.pattern.permute.xlu0 0
        %5332 = vperm.xlu0 %5331, %v4986
        %v5333 = vpop.permute.xlu0 %5332
        %5336 = vset.pattern.permute.xlu0 0
        %5337 = vperm.xlu0 %5336, %v4987
        %v5338 = vpop.permute.xlu0 %5337
        %5341 = vset.pattern.permute.xlu0 0
        %5342 = vperm.xlu0 %5341, %v4988
        %v5343 = vpop.permute.xlu0 %5342
        %5346 = vset.pattern.permute.xlu0 0
        %5347 = vperm.xlu0 %5346, %v4989
        %v5348 = vpop.permute.xlu0 %5347
        %5351 = vset.pattern.permute.xlu0 0
        %5352 = vperm.xlu0 %5351, %v4990
        %v5353 = vpop.permute.xlu0 %5352
        %5356 = vset.pattern.permute.xlu0 0
        %5357 = vperm.xlu0 %5356, %v4991
        %v5358 = vpop.permute.xlu0 %5357
        %5361 = vset.pattern.permute.xlu0 0
        %5362 = vperm.xlu0 %5361, %v4992
        %v5363 = vpop.permute.xlu0 %5362
        %5366 = vset.pattern.permute.xlu0 0
        %5367 = vperm.xlu0 %5366, %v4993
        %v5368 = vpop.permute.xlu0 %5367
        %5371 = vset.pattern.permute.xlu0 0
        %5372 = vperm.xlu0 %5371, %v4994
        %v5373 = vpop.permute.xlu0 %5372
        %5376 = vset.pattern.permute.xlu0 0
        %5377 = vperm.xlu0 %5376, %v4995
        %v5378 = vpop.permute.xlu0 %5377
        %5381 = vset.pattern.permute.xlu0 0
        %5382 = vperm.xlu0 %5381, %v4996
        %v5383 = vpop.permute.xlu0 %5382
        %5386 = vset.pattern.permute.xlu0 0
        %5387 = vperm.xlu0 %5386, %v4997
        %v5388 = vpop.permute.xlu0 %5387
        %5391 = vset.pattern.permute.xlu0 0
        %5392 = vperm.xlu0 %5391, %v4998
        %v5393 = vpop.permute.xlu0 %5392
        %5396 = vset.pattern.permute.xlu0 0
        %5397 = vperm.xlu0 %5396, %v4999
        %v5398 = vpop.permute.xlu0 %5397
        %5401 = vset.pattern.permute.xlu0 0
        %5402 = vperm.xlu0 %5401, %v5000
        %v5403 = vpop.permute.xlu0 %5402
        %5406 = vset.pattern.permute.xlu0 0
        %5407 = vperm.xlu0 %5406, %v5001
        %v5408 = vpop.permute.xlu0 %5407
        %5411 = vset.pattern.permute.xlu0 0
        %5412 = vperm.xlu0 %5411, %v5002
        %v5413 = vpop.permute.xlu0 %5412
        %5416 = vset.pattern.permute.xlu0 0
        %5417 = vperm.xlu0 %5416, %v5003
        %v5418 = vpop.permute.xlu0 %5417
        %5421 = vset.pattern.permute.xlu0 0
        %5422 = vperm.xlu0 %5421, %v5004
        %v5423 = vpop.permute.xlu0 %5422
        %5426 = vset.pattern.permute.xlu0 0
        %5427 = vperm.xlu0 %5426, %v5005
        %v5428 = vpop.permute.xlu0 %5427
        %5431 = vset.pattern.permute.xlu0 0
        %5432 = vperm.xlu0 %5431, %v5006
        %v5433 = vpop.permute.xlu0 %5432
        %5436 = vset.pattern.permute.xlu0 0
        %5437 = vperm.xlu0 %5436, %v5007
        %v5438 = vpop.permute.xlu0 %5437
        %5441 = vset.pattern.permute.xlu0 0
        %5442 = vperm.xlu0 %5441, %v5008
        %v5443 = vpop.permute.xlu0 %5442
        %5446 = vset.pattern.permute.xlu0 0
        %5447 = vperm.xlu0 %5446, %v5009
        %v5448 = vpop.permute.xlu0 %5447
        %5451 = vset.pattern.permute.xlu0 0
        %5452 = vperm.xlu0 %5451, %v5010
        %v5453 = vpop.permute.xlu0 %5452
        %5456 = vset.pattern.permute.xlu0 0
        %5457 = vperm.xlu0 %5456, %v5011
        %v5458 = vpop.permute.xlu0 %5457
        %5461 = vset.pattern.permute.xlu0 0
        %5462 = vperm.xlu0 %5461, %v5012
        %v5463 = vpop.permute.xlu0 %5462
        %5466 = vset.pattern.permute.xlu0 0
        %5467 = vperm.xlu0 %5466, %v5013
        %v5468 = vpop.permute.xlu0 %5467
        %5471 = vset.pattern.permute.xlu0 0
        %5472 = vperm.xlu0 %5471, %v5014
        %v5473 = vpop.permute.xlu0 %5472
        %5476 = vset.pattern.permute.xlu0 0
        %5477 = vperm.xlu0 %5476, %v5015
        %v5478 = vpop.permute.xlu0 %5477
        %5481 = vset.pattern.permute.xlu0 0
        %5482 = vperm.xlu0 %5481, %v5016
        %v5483 = vpop.permute.xlu0 %5482
        %5486 = vset.pattern.permute.xlu0 0
        %5487 = vperm.xlu0 %5486, %v5017
        %v5488 = vpop.permute.xlu0 %5487
        %5491 = vset.pattern.permute.xlu0 0
        %5492 = vperm.xlu0 %5491, %v5018
        %v5493 = vpop.permute.xlu0 %5492
        %5496 = vset.pattern.permute.xlu0 0
        %5497 = vperm.xlu0 %5496, %v5019
        %v5498 = vpop.permute.xlu0 %5497
        %5501 = vset.pattern.permute.xlu0 0
        %5502 = vperm.xlu0 %5501, %v5020
        %v5503 = vpop.permute.xlu0 %5502
        %5506 = vset.pattern.permute.xlu0 0
        %5507 = vperm.xlu0 %5506, %v5021
        %v5508 = vpop.permute.xlu0 %5507
        %5511 = vset.pattern.permute.xlu0 0
        %5512 = vperm.xlu0 %5511, %v5022
        %v5513 = vpop.permute.xlu0 %5512
        %5516 = vset.pattern.permute.xlu0 0
        %5517 = vperm.xlu0 %5516, %v5023
        %v5518 = vpop.permute.xlu0 %5517
        %5521 = vset.pattern.permute.xlu0 0
        %5522 = vperm.xlu0 %5521, %v5024
        %v5523 = vpop.permute.xlu0 %5522
        %5526 = vset.pattern.permute.xlu0 0
        %5527 = vperm.xlu0 %5526, %v5025
        %v5528 = vpop.permute.xlu0 %5527
        %5531 = vset.pattern.permute.xlu0 0
        %5532 = vperm.xlu0 %5531, %v5026
        %v5533 = vpop.permute.xlu0 %5532
        %5536 = vset.pattern.permute.xlu0 0
        %5537 = vperm.xlu0 %5536, %v5027
        %v5538 = vpop.permute.xlu0 %5537
        %5541 = vset.pattern.permute.xlu0 0
        %5542 = vperm.xlu0 %5541, %v5028
        %v5543 = vpop.permute.xlu0 %5542
        %5546 = vset.pattern.permute.xlu0 0
        %5547 = vperm.xlu0 %5546, %v5029
        %v5548 = vpop.permute.xlu0 %5547
        %5551 = vset.pattern.permute.xlu0 0
        %5552 = vperm.xlu0 %5551, %v5030
        %v5553 = vpop.permute.xlu0 %5552
        %5556 = vset.pattern.permute.xlu0 0
        %5557 = vperm.xlu0 %5556, %v5031
        %v5558 = vpop.permute.xlu0 %5557
        %5561 = vset.pattern.permute.xlu0 0
        %5562 = vperm.xlu0 %5561, %v5032
        %v5563 = vpop.permute.xlu0 %5562
        %5566 = vset.pattern.permute.xlu0 0
        %5567 = vperm.xlu0 %5566, %v5033
        %v5568 = vpop.permute.xlu0 %5567
        %5571 = vset.pattern.permute.xlu0 0
        %5572 = vperm.xlu0 %5571, %v5034
        %v5573 = vpop.permute.xlu0 %5572
        %5576 = vset.pattern.permute.xlu0 0
        %5577 = vperm.xlu0 %5576, %v5035
        %v5578 = vpop.permute.xlu0 %5577
        %5581 = vset.pattern.permute.xlu0 0
        %5582 = vperm.xlu0 %5581, %v5036
        %v5583 = vpop.permute.xlu0 %5582
        %5586 = vset.pattern.permute.xlu0 0
        %5587 = vperm.xlu0 %5586, %v5037
        %v5588 = vpop.permute.xlu0 %5587
        %5591 = vset.pattern.permute.xlu0 0
        %5592 = vperm.xlu0 %5591, %v5038
        %v5593 = vpop.permute.xlu0 %5592
        %5596 = vset.pattern.permute.xlu0 0
        %5597 = vperm.xlu0 %5596, %v5039
        %v5598 = vpop.permute.xlu0 %5597
        %5601 = vset.pattern.permute.xlu0 0
        %5602 = vperm.xlu0 %5601, %v5040
        %v5603 = vpop.permute.xlu0 %5602
        %5606 = vset.pattern.permute.xlu0 0
        %5607 = vperm.xlu0 %5606, %v5041
        %v5608 = vpop.permute.xlu0 %5607
        %5611 = vset.pattern.permute.xlu0 0
        %5612 = vperm.xlu0 %5611, %v5042
        %v5613 = vpop.permute.xlu0 %5612
        %5616 = vset.pattern.permute.xlu0 0
        %5617 = vperm.xlu0 %5616, %v5043
        %v5618 = vpop.permute.xlu0 %5617
        %5621 = vset.pattern.permute.xlu0 0
        %5622 = vperm.xlu0 %5621, %v5044
        %v5623 = vpop.permute.xlu0 %5622
        %5626 = vset.pattern.permute.xlu0 0
        %5627 = vperm.xlu0 %5626, %v5045
        %v5628 = vpop.permute.xlu0 %5627
        %5631 = vset.pattern.permute.xlu0 0
        %5632 = vperm.xlu0 %5631, %v5046
        %v5633 = vpop.permute.xlu0 %5632
        %5636 = vset.pattern.permute.xlu0 0
        %5637 = vperm.xlu0 %5636, %v5047
        %v5638 = vpop.permute.xlu0 %5637
        %5641 = vset.pattern.permute.xlu0 0
        %5642 = vperm.xlu0 %5641, %v5048
        %v5643 = vpop.permute.xlu0 %5642
        %5646 = vset.pattern.permute.xlu0 0
        %5647 = vperm.xlu0 %5646, %v5049
        %v5648 = vpop.permute.xlu0 %5647
        %5651 = vset.pattern.permute.xlu0 0
        %5652 = vperm.xlu0 %5651, %v5050
        %v5653 = vpop.permute.xlu0 %5652
        %5656 = vset.pattern.permute.xlu0 0
        %5657 = vperm.xlu0 %5656, %v5051
        %v5658 = vpop.permute.xlu0 %5657
        %5661 = vset.pattern.permute.xlu0 0
        %5662 = vperm.xlu0 %5661, %v5052
        %v5663 = vpop.permute.xlu0 %5662
        %5666 = vset.pattern.permute.xlu0 0
        %5667 = vperm.xlu0 %5666, %v5053
        %v5668 = vpop.permute.xlu0 %5667
        %5671 = vset.pattern.permute.xlu0 0
        %5672 = vperm.xlu0 %5671, %v5054
        %v5673 = vpop.permute.xlu0 %5672
        %5676 = vset.pattern.permute.xlu0 0
        %5677 = vperm.xlu0 %5676, %v5055
        %v5678 = vpop.permute.xlu0 %5677
        %5681 = vset.pattern.permute.xlu0 0
        %5682 = vperm.xlu0 %5681, %v5056
        %v5683 = vpop.permute.xlu0 %5682
        %5686 = vset.pattern.permute.xlu0 0
        %5687 = vperm.xlu0 %5686, %v5057
        %v5688 = vpop.permute.xlu0 %5687
        %5691 = vset.pattern.permute.xlu0 0
        %5692 = vperm.xlu0 %5691, %v5058
        %v5693 = vpop.permute.xlu0 %5692
        %5696 = vset.pattern.permute.xlu0 0
        %5697 = vperm.xlu0 %5696, %v5059
        %v5698 = vpop.permute.xlu0 %5697
        %v5700 = vadd.f32 %v4676, %v5063
        %v5701 = vadd.f32 %v4677, %v5068
        %v5702 = vadd.f32 %v4678, %v5073
        %v5703 = vadd.f32 %v4679, %v5078
        %v5704 = vadd.f32 %v4680, %v5083
        %v5705 = vadd.f32 %v4681, %v5088
        %v5706 = vadd.f32 %v4682, %v5093
        %v5707 = vadd.f32 %v4683, %v5098
        %v5708 = vadd.f32 %v4684, %v5103
        %v5709 = vadd.f32 %v4685, %v5108
        %v5710 = vadd.f32 %v4686, %v5113
        %v5711 = vadd.f32 %v4687, %v5118
        %v5712 = vadd.f32 %v4688, %v5123
        %v5713 = vadd.f32 %v4689, %v5128
        %v5714 = vadd.f32 %v4690, %v5133
        %v5715 = vadd.f32 %v4691, %v5138
        %v5716 = vadd.f32 %v4692, %v5143
        %v5717 = vadd.f32 %v4693, %v5148
        %v5718 = vadd.f32 %v4694, %v5153
        %v5719 = vadd.f32 %v4695, %v5158
        %v5720 = vadd.f32 %v4696, %v5163
        %v5721 = vadd.f32 %v4697, %v5168
        %v5722 = vadd.f32 %v4698, %v5173
        %v5723 = vadd.f32 %v4699, %v5178
        %v5724 = vadd.f32 %v4700, %v5183
        %v5725 = vadd.f32 %v4701, %v5188
        %v5726 = vadd.f32 %v4702, %v5193
        %v5727 = vadd.f32 %v4703, %v5198
        %v5728 = vadd.f32 %v4704, %v5203
        %v5729 = vadd.f32 %v4705, %v5208
        %v5730 = vadd.f32 %v4706, %v5213
        %v5731 = vadd.f32 %v4707, %v5218
        %v5732 = vadd.f32 %v4708, %v5223
        %v5733 = vadd.f32 %v4709, %v5228
        %v5734 = vadd.f32 %v4710, %v5233
        %v5735 = vadd.f32 %v4711, %v5238
        %v5736 = vadd.f32 %v4712, %v5243
        %v5737 = vadd.f32 %v4713, %v5248
        %v5738 = vadd.f32 %v4714, %v5253
        %v5739 = vadd.f32 %v4715, %v5258
        %v5740 = vadd.f32 %v4716, %v5263
        %v5741 = vadd.f32 %v4717, %v5268
        %v5742 = vadd.f32 %v4718, %v5273
        %v5743 = vadd.f32 %v4719, %v5278
        %v5744 = vadd.f32 %v4720, %v5283
        %v5745 = vadd.f32 %v4721, %v5288
        %v5746 = vadd.f32 %v4722, %v5293
        %v5747 = vadd.f32 %v4723, %v5298
        %v5748 = vadd.f32 %v4724, %v5303
        %v5749 = vadd.f32 %v4725, %v5308
        %v5750 = vadd.f32 %v4726, %v5313
        %v5751 = vadd.f32 %v4727, %v5318
        %v5752 = vadd.f32 %v4728, %v5323
        %v5753 = vadd.f32 %v4729, %v5328
        %v5754 = vadd.f32 %v4730, %v5333
        %v5755 = vadd.f32 %v4731, %v5338
        %v5756 = vadd.f32 %v4732, %v5343
        %v5757 = vadd.f32 %v4733, %v5348
        %v5758 = vadd.f32 %v4734, %v5353
        %v5759 = vadd.f32 %v4735, %v5358
        %v5760 = vadd.f32 %v4736, %v5363
        %v5761 = vadd.f32 %v4737, %v5368
        %v5762 = vadd.f32 %v4738, %v5373
        %v5763 = vadd.f32 %v4739, %v5378
        %v5764 = vadd.f32 %v4740, %v5383
        %v5765 = vadd.f32 %v4741, %v5388
        %v5766 = vadd.f32 %v4742, %v5393
        %v5767 = vadd.f32 %v4743, %v5398
        %v5768 = vadd.f32 %v4744, %v5403
        %v5769 = vadd.f32 %v4745, %v5408
        %v5770 = vadd.f32 %v4746, %v5413
        %v5771 = vadd.f32 %v4747, %v5418
        %v5772 = vadd.f32 %v4748, %v5423
        %v5773 = vadd.f32 %v4749, %v5428
        %v5774 = vadd.f32 %v4750, %v5433
        %v5775 = vadd.f32 %v4751, %v5438
        %v5776 = vadd.f32 %v4752, %v5443
        %v5777 = vadd.f32 %v4753, %v5448
        %v5778 = vadd.f32 %v4754, %v5453
        %v5779 = vadd.f32 %v4755, %v5458
        %v5780 = vadd.f32 %v4756, %v5463
        %v5781 = vadd.f32 %v4757, %v5468
        %v5782 = vadd.f32 %v4758, %v5473
        %v5783 = vadd.f32 %v4759, %v5478
        %v5784 = vadd.f32 %v4760, %v5483
        %v5785 = vadd.f32 %v4761, %v5488
        %v5786 = vadd.f32 %v4762, %v5493
        %v5787 = vadd.f32 %v4763, %v5498
        %v5788 = vadd.f32 %v4764, %v5503
        %v5789 = vadd.f32 %v4765, %v5508
        %v5790 = vadd.f32 %v4766, %v5513
        %v5791 = vadd.f32 %v4767, %v5518
        %v5792 = vadd.f32 %v4768, %v5523
        %v5793 = vadd.f32 %v4769, %v5528
        %v5794 = vadd.f32 %v4770, %v5533
        %v5795 = vadd.f32 %v4771, %v5538
        %v5796 = vadd.f32 %v4772, %v5543
        %v5797 = vadd.f32 %v4773, %v5548
        %v5798 = vadd.f32 %v4774, %v5553
        %v5799 = vadd.f32 %v4775, %v5558
        %v5800 = vadd.f32 %v4776, %v5563
        %v5801 = vadd.f32 %v4777, %v5568
        %v5802 = vadd.f32 %v4778, %v5573
        %v5803 = vadd.f32 %v4779, %v5578
        %v5804 = vadd.f32 %v4780, %v5583
        %v5805 = vadd.f32 %v4781, %v5588
        %v5806 = vadd.f32 %v4782, %v5593
        %v5807 = vadd.f32 %v4783, %v5598
        %v5808 = vadd.f32 %v4784, %v5603
        %v5809 = vadd.f32 %v4785, %v5608
        %v5810 = vadd.f32 %v4786, %v5613
        %v5811 = vadd.f32 %v4787, %v5618
        %v5812 = vadd.f32 %v4788, %v5623
        %v5813 = vadd.f32 %v4789, %v5628
        %v5814 = vadd.f32 %v4790, %v5633
        %v5815 = vadd.f32 %v4791, %v5638
        %v5816 = vadd.f32 %v4792, %v5643
        %v5817 = vadd.f32 %v4793, %v5648
        %v5818 = vadd.f32 %v4794, %v5653
        %v5819 = vadd.f32 %v4795, %v5658
        %v5820 = vadd.f32 %v4796, %v5663
        %v5821 = vadd.f32 %v4797, %v5668
        %v5822 = vadd.f32 %v4798, %v5673
        %v5823 = vadd.f32 %v4799, %v5678
        %v5824 = vadd.f32 %v4800, %v5683
        %v5825 = vadd.f32 %v4801, %v5688
        %v5826 = vadd.f32 %v4802, %v5693
        %v5827 = vadd.f32 %v4803, %v5698
        %vm5828 = vcmp.ge.f32.partialorder %v5700, 0.0
        %vm5829 = vcmp.ge.f32.partialorder %v5701, 0.0
        %vm5830 = vcmp.ge.f32.partialorder %v5702, 0.0
        %vm5831 = vcmp.ge.f32.partialorder %v5703, 0.0
        %vm5832 = vcmp.ge.f32.partialorder %v5704, 0.0
        %vm5833 = vcmp.ge.f32.partialorder %v5705, 0.0
        %vm5834 = vcmp.ge.f32.partialorder %v5706, 0.0
        %vm5835 = vcmp.ge.f32.partialorder %v5707, 0.0
        %vm5836 = vcmp.ge.f32.partialorder %v5708, 0.0
        %vm5837 = vcmp.ge.f32.partialorder %v5709, 0.0
        %vm5838 = vcmp.ge.f32.partialorder %v5710, 0.0
        %vm5839 = vcmp.ge.f32.partialorder %v5711, 0.0
        %vm5840 = vcmp.ge.f32.partialorder %v5712, 0.0
        %vm5841 = vcmp.ge.f32.partialorder %v5713, 0.0
        %vm5842 = vcmp.ge.f32.partialorder %v5714, 0.0
        %vm5843 = vcmp.ge.f32.partialorder %v5715, 0.0
        %vm5844 = vcmp.ge.f32.partialorder %v5716, 0.0
        %vm5845 = vcmp.ge.f32.partialorder %v5717, 0.0
        %vm5846 = vcmp.ge.f32.partialorder %v5718, 0.0
        %vm5847 = vcmp.ge.f32.partialorder %v5719, 0.0
        %vm5848 = vcmp.ge.f32.partialorder %v5720, 0.0
        %vm5849 = vcmp.ge.f32.partialorder %v5721, 0.0
        %vm5850 = vcmp.ge.f32.partialorder %v5722, 0.0
        %vm5851 = vcmp.ge.f32.partialorder %v5723, 0.0
        %vm5852 = vcmp.ge.f32.partialorder %v5724, 0.0
        %vm5853 = vcmp.ge.f32.partialorder %v5725, 0.0
        %vm5854 = vcmp.ge.f32.partialorder %v5726, 0.0
        %vm5855 = vcmp.ge.f32.partialorder %v5727, 0.0
        %vm5856 = vcmp.ge.f32.partialorder %v5728, 0.0
        %vm5857 = vcmp.ge.f32.partialorder %v5729, 0.0
        %vm5858 = vcmp.ge.f32.partialorder %v5730, 0.0
        %vm5859 = vcmp.ge.f32.partialorder %v5731, 0.0
        %vm5860 = vcmp.ge.f32.partialorder %v5732, 0.0
        %vm5861 = vcmp.ge.f32.partialorder %v5733, 0.0
        %vm5862 = vcmp.ge.f32.partialorder %v5734, 0.0
        %vm5863 = vcmp.ge.f32.partialorder %v5735, 0.0
        %vm5864 = vcmp.ge.f32.partialorder %v5736, 0.0
        %vm5865 = vcmp.ge.f32.partialorder %v5737, 0.0
        %vm5866 = vcmp.ge.f32.partialorder %v5738, 0.0
        %vm5867 = vcmp.ge.f32.partialorder %v5739, 0.0
        %vm5868 = vcmp.ge.f32.partialorder %v5740, 0.0
        %vm5869 = vcmp.ge.f32.partialorder %v5741, 0.0
        %vm5870 = vcmp.ge.f32.partialorder %v5742, 0.0
        %vm5871 = vcmp.ge.f32.partialorder %v5743, 0.0
        %vm5872 = vcmp.ge.f32.partialorder %v5744, 0.0
        %vm5873 = vcmp.ge.f32.partialorder %v5745, 0.0
        %vm5874 = vcmp.ge.f32.partialorder %v5746, 0.0
        %vm5875 = vcmp.ge.f32.partialorder %v5747, 0.0
        %vm5876 = vcmp.ge.f32.partialorder %v5748, 0.0
        %vm5877 = vcmp.ge.f32.partialorder %v5749, 0.0
        %vm5878 = vcmp.ge.f32.partialorder %v5750, 0.0
        %vm5879 = vcmp.ge.f32.partialorder %v5751, 0.0
        %vm5880 = vcmp.ge.f32.partialorder %v5752, 0.0
        %vm5881 = vcmp.ge.f32.partialorder %v5753, 0.0
        %vm5882 = vcmp.ge.f32.partialorder %v5754, 0.0
        %vm5883 = vcmp.ge.f32.partialorder %v5755, 0.0
        %vm5884 = vcmp.ge.f32.partialorder %v5756, 0.0
        %vm5885 = vcmp.ge.f32.partialorder %v5757, 0.0
        %vm5886 = vcmp.ge.f32.partialorder %v5758, 0.0
        %vm5887 = vcmp.ge.f32.partialorder %v5759, 0.0
        %vm5888 = vcmp.ge.f32.partialorder %v5760, 0.0
        %vm5889 = vcmp.ge.f32.partialorder %v5761, 0.0
        %vm5890 = vcmp.ge.f32.partialorder %v5762, 0.0
        %vm5891 = vcmp.ge.f32.partialorder %v5763, 0.0
        %vm5892 = vcmp.ge.f32.partialorder %v5764, 0.0
        %vm5893 = vcmp.ge.f32.partialorder %v5765, 0.0
        %vm5894 = vcmp.ge.f32.partialorder %v5766, 0.0
        %vm5895 = vcmp.ge.f32.partialorder %v5767, 0.0
        %vm5896 = vcmp.ge.f32.partialorder %v5768, 0.0
        %vm5897 = vcmp.ge.f32.partialorder %v5769, 0.0
        %vm5898 = vcmp.ge.f32.partialorder %v5770, 0.0
        %vm5899 = vcmp.ge.f32.partialorder %v5771, 0.0
        %vm5900 = vcmp.ge.f32.partialorder %v5772, 0.0
        %vm5901 = vcmp.ge.f32.partialorder %v5773, 0.0
        %vm5902 = vcmp.ge.f32.partialorder %v5774, 0.0
        %vm5903 = vcmp.ge.f32.partialorder %v5775, 0.0
        %vm5904 = vcmp.ge.f32.partialorder %v5776, 0.0
        %vm5905 = vcmp.ge.f32.partialorder %v5777, 0.0
        %vm5906 = vcmp.ge.f32.partialorder %v5778, 0.0
        %vm5907 = vcmp.ge.f32.partialorder %v5779, 0.0
        %vm5908 = vcmp.ge.f32.partialorder %v5780, 0.0
        %vm5909 = vcmp.ge.f32.partialorder %v5781, 0.0
        %vm5910 = vcmp.ge.f32.partialorder %v5782, 0.0
        %vm5911 = vcmp.ge.f32.partialorder %v5783, 0.0
        %vm5912 = vcmp.ge.f32.partialorder %v5784, 0.0
        %vm5913 = vcmp.ge.f32.partialorder %v5785, 0.0
        %vm5914 = vcmp.ge.f32.partialorder %v5786, 0.0
        %vm5915 = vcmp.ge.f32.partialorder %v5787, 0.0
        %vm5916 = vcmp.ge.f32.partialorder %v5788, 0.0
        %vm5917 = vcmp.ge.f32.partialorder %v5789, 0.0
        %vm5918 = vcmp.ge.f32.partialorder %v5790, 0.0
        %vm5919 = vcmp.ge.f32.partialorder %v5791, 0.0
        %vm5920 = vcmp.ge.f32.partialorder %v5792, 0.0
        %vm5921 = vcmp.ge.f32.partialorder %v5793, 0.0
        %vm5922 = vcmp.ge.f32.partialorder %v5794, 0.0
        %vm5923 = vcmp.ge.f32.partialorder %v5795, 0.0
        %vm5924 = vcmp.ge.f32.partialorder %v5796, 0.0
        %vm5925 = vcmp.ge.f32.partialorder %v5797, 0.0
        %vm5926 = vcmp.ge.f32.partialorder %v5798, 0.0
        %vm5927 = vcmp.ge.f32.partialorder %v5799, 0.0
        %vm5928 = vcmp.ge.f32.partialorder %v5800, 0.0
        %vm5929 = vcmp.ge.f32.partialorder %v5801, 0.0
        %vm5930 = vcmp.ge.f32.partialorder %v5802, 0.0
        %vm5931 = vcmp.ge.f32.partialorder %v5803, 0.0
        %vm5932 = vcmp.ge.f32.partialorder %v5804, 0.0
        %vm5933 = vcmp.ge.f32.partialorder %v5805, 0.0
        %vm5934 = vcmp.ge.f32.partialorder %v5806, 0.0
        %vm5935 = vcmp.ge.f32.partialorder %v5807, 0.0
        %vm5936 = vcmp.ge.f32.partialorder %v5808, 0.0
        %vm5937 = vcmp.ge.f32.partialorder %v5809, 0.0
        %vm5938 = vcmp.ge.f32.partialorder %v5810, 0.0
        %vm5939 = vcmp.ge.f32.partialorder %v5811, 0.0
        %vm5940 = vcmp.ge.f32.partialorder %v5812, 0.0
        %vm5941 = vcmp.ge.f32.partialorder %v5813, 0.0
        %vm5942 = vcmp.ge.f32.partialorder %v5814, 0.0
        %vm5943 = vcmp.ge.f32.partialorder %v5815, 0.0
        %vm5944 = vcmp.ge.f32.partialorder %v5816, 0.0
        %vm5945 = vcmp.ge.f32.partialorder %v5817, 0.0
        %vm5946 = vcmp.ge.f32.partialorder %v5818, 0.0
        %vm5947 = vcmp.ge.f32.partialorder %v5819, 0.0
        %vm5948 = vcmp.ge.f32.partialorder %v5820, 0.0
        %vm5949 = vcmp.ge.f32.partialorder %v5821, 0.0
        %vm5950 = vcmp.ge.f32.partialorder %v5822, 0.0
        %vm5951 = vcmp.ge.f32.partialorder %v5823, 0.0
        %vm5952 = vcmp.ge.f32.partialorder %v5824, 0.0
        %vm5953 = vcmp.ge.f32.partialorder %v5825, 0.0
        %vm5954 = vcmp.ge.f32.partialorder %v5826, 0.0
        %vm5955 = vcmp.ge.f32.partialorder %v5827, 0.0
        %v5956 = vmul.f32 %v5700, 0.01
        %v5957 = vmul.f32 %v5701, 0.01
        %v5958 = vmul.f32 %v5702, 0.01
        %v5959 = vmul.f32 %v5703, 0.01
        %v5960 = vmul.f32 %v5704, 0.01
        %v5961 = vmul.f32 %v5705, 0.01
        %v5962 = vmul.f32 %v5706, 0.01
        %v5963 = vmul.f32 %v5707, 0.01
        %v5964 = vmul.f32 %v5708, 0.01
        %v5965 = vmul.f32 %v5709, 0.01
        %v5966 = vmul.f32 %v5710, 0.01
        %v5967 = vmul.f32 %v5711, 0.01
        %v5968 = vmul.f32 %v5712, 0.01
        %v5969 = vmul.f32 %v5713, 0.01
        %v5970 = vmul.f32 %v5714, 0.01
        %v5971 = vmul.f32 %v5715, 0.01
        %v5972 = vmul.f32 %v5716, 0.01
        %v5973 = vmul.f32 %v5717, 0.01
        %v5974 = vmul.f32 %v5718, 0.01
        %v5975 = vmul.f32 %v5719, 0.01
        %v5976 = vmul.f32 %v5720, 0.01
        %v5977 = vmul.f32 %v5721, 0.01
        %v5978 = vmul.f32 %v5722, 0.01
        %v5979 = vmul.f32 %v5723, 0.01
        %v5980 = vmul.f32 %v5724, 0.01
        %v5981 = vmul.f32 %v5725, 0.01
        %v5982 = vmul.f32 %v5726, 0.01
        %v5983 = vmul.f32 %v5727, 0.01
        %v5984 = vmul.f32 %v5728, 0.01
        %v5985 = vmul.f32 %v5729, 0.01
        %v5986 = vmul.f32 %v5730, 0.01
        %v5987 = vmul.f32 %v5731, 0.01
        %v5988 = vmul.f32 %v5732, 0.01
        %v5989 = vmul.f32 %v5733, 0.01
        %v5990 = vmul.f32 %v5734, 0.01
        %v5991 = vmul.f32 %v5735, 0.01
        %v5992 = vmul.f32 %v5736, 0.01
        %v5993 = vmul.f32 %v5737, 0.01
        %v5994 = vmul.f32 %v5738, 0.01
        %v5995 = vmul.f32 %v5739, 0.01
        %v5996 = vmul.f32 %v5740, 0.01
        %v5997 = vmul.f32 %v5741, 0.01
        %v5998 = vmul.f32 %v5742, 0.01
        %v5999 = vmul.f32 %v5743, 0.01
        %v6000 = vmul.f32 %v5744, 0.01
        %v6001 = vmul.f32 %v5745, 0.01
        %v6002 = vmul.f32 %v5746, 0.01
        %v6003 = vmul.f32 %v5747, 0.01
        %v6004 = vmul.f32 %v5748, 0.01
        %v6005 = vmul.f32 %v5749, 0.01
        %v6006 = vmul.f32 %v5750, 0.01
        %v6007 = vmul.f32 %v5751, 0.01
        %v6008 = vmul.f32 %v5752, 0.01
        %v6009 = vmul.f32 %v5753, 0.01
        %v6010 = vmul.f32 %v5754, 0.01
        %v6011 = vmul.f32 %v5755, 0.01
        %v6012 = vmul.f32 %v5756, 0.01
        %v6013 = vmul.f32 %v5757, 0.01
        %v6014 = vmul.f32 %v5758, 0.01
        %v6015 = vmul.f32 %v5759, 0.01
        %v6016 = vmul.f32 %v5760, 0.01
        %v6017 = vmul.f32 %v5761, 0.01
        %v6018 = vmul.f32 %v5762, 0.01
        %v6019 = vmul.f32 %v5763, 0.01
        %v6020 = vmul.f32 %v5764, 0.01
        %v6021 = vmul.f32 %v5765, 0.01
        %v6022 = vmul.f32 %v5766, 0.01
        %v6023 = vmul.f32 %v5767, 0.01
        %v6024 = vmul.f32 %v5768, 0.01
        %v6025 = vmul.f32 %v5769, 0.01
        %v6026 = vmul.f32 %v5770, 0.01
        %v6027 = vmul.f32 %v5771, 0.01
        %v6028 = vmul.f32 %v5772, 0.01
        %v6029 = vmul.f32 %v5773, 0.01
        %v6030 = vmul.f32 %v5774, 0.01
        %v6031 = vmul.f32 %v5775, 0.01
        %v6032 = vmul.f32 %v5776, 0.01
        %v6033 = vmul.f32 %v5777, 0.01
        %v6034 = vmul.f32 %v5778, 0.01
        %v6035 = vmul.f32 %v5779, 0.01
        %v6036 = vmul.f32 %v5780, 0.01
        %v6037 = vmul.f32 %v5781, 0.01
        %v6038 = vmul.f32 %v5782, 0.01
        %v6039 = vmul.f32 %v5783, 0.01
        %v6040 = vmul.f32 %v5784, 0.01
        %v6041 = vmul.f32 %v5785, 0.01
        %v6042 = vmul.f32 %v5786, 0.01
        %v6043 = vmul.f32 %v5787, 0.01
        %v6044 = vmul.f32 %v5788, 0.01
        %v6045 = vmul.f32 %v5789, 0.01
        %v6046 = vmul.f32 %v5790, 0.01
        %v6047 = vmul.f32 %v5791, 0.01
        %v6048 = vmul.f32 %v5792, 0.01
        %v6049 = vmul.f32 %v5793, 0.01
        %v6050 = vmul.f32 %v5794, 0.01
        %v6051 = vmul.f32 %v5795, 0.01
        %v6052 = vmul.f32 %v5796, 0.01
        %v6053 = vmul.f32 %v5797, 0.01
        %v6054 = vmul.f32 %v5798, 0.01
        %v6055 = vmul.f32 %v5799, 0.01
        %v6056 = vmul.f32 %v5800, 0.01
        %v6057 = vmul.f32 %v5801, 0.01
        %v6058 = vmul.f32 %v5802, 0.01
        %v6059 = vmul.f32 %v5803, 0.01
        %v6060 = vmul.f32 %v5804, 0.01
        %v6061 = vmul.f32 %v5805, 0.01
        %v6062 = vmul.f32 %v5806, 0.01
        %v6063 = vmul.f32 %v5807, 0.01
        %v6064 = vmul.f32 %v5808, 0.01
        %v6065 = vmul.f32 %v5809, 0.01
        %v6066 = vmul.f32 %v5810, 0.01
        %v6067 = vmul.f32 %v5811, 0.01
        %v6068 = vmul.f32 %v5812, 0.01
        %v6069 = vmul.f32 %v5813, 0.01
        %v6070 = vmul.f32 %v5814, 0.01
        %v6071 = vmul.f32 %v5815, 0.01
        %v6072 = vmul.f32 %v5816, 0.01
        %v6073 = vmul.f32 %v5817, 0.01
        %v6074 = vmul.f32 %v5818, 0.01
        %v6075 = vmul.f32 %v5819, 0.01
        %v6076 = vmul.f32 %v5820, 0.01
        %v6077 = vmul.f32 %v5821, 0.01
        %v6078 = vmul.f32 %v5822, 0.01
        %v6079 = vmul.f32 %v5823, 0.01
        %v6080 = vmul.f32 %v5824, 0.01
        %v6081 = vmul.f32 %v5825, 0.01
        %v6082 = vmul.f32 %v5826, 0.01
        %v6083 = vmul.f32 %v5827, 0.01
        %v6084 = vsel %vm5828, %v5700, %v5956
        %v6085 = vsel %vm5829, %v5701, %v5957
        %v6086 = vsel %vm5830, %v5702, %v5958
        %v6087 = vsel %vm5831, %v5703, %v5959
        %v6088 = vsel %vm5832, %v5704, %v5960
        %v6089 = vsel %vm5833, %v5705, %v5961
        %v6090 = vsel %vm5834, %v5706, %v5962
        %v6091 = vsel %vm5835, %v5707, %v5963
        %v6092 = vsel %vm5836, %v5708, %v5964
        %v6093 = vsel %vm5837, %v5709, %v5965
        %v6094 = vsel %vm5838, %v5710, %v5966
        %v6095 = vsel %vm5839, %v5711, %v5967
        %v6096 = vsel %vm5840, %v5712, %v5968
        %v6097 = vsel %vm5841, %v5713, %v5969
        %v6098 = vsel %vm5842, %v5714, %v5970
        %v6099 = vsel %vm5843, %v5715, %v5971
        %v6100 = vsel %vm5844, %v5716, %v5972
        %v6101 = vsel %vm5845, %v5717, %v5973
        %v6102 = vsel %vm5846, %v5718, %v5974
        %v6103 = vsel %vm5847, %v5719, %v5975
        %v6104 = vsel %vm5848, %v5720, %v5976
        %v6105 = vsel %vm5849, %v5721, %v5977
        %v6106 = vsel %vm5850, %v5722, %v5978
        %v6107 = vsel %vm5851, %v5723, %v5979
        %v6108 = vsel %vm5852, %v5724, %v5980
        %v6109 = vsel %vm5853, %v5725, %v5981
        %v6110 = vsel %vm5854, %v5726, %v5982
        %v6111 = vsel %vm5855, %v5727, %v5983
        %v6112 = vsel %vm5856, %v5728, %v5984
        %v6113 = vsel %vm5857, %v5729, %v5985
        %v6114 = vsel %vm5858, %v5730, %v5986
        %v6115 = vsel %vm5859, %v5731, %v5987
        %v6116 = vsel %vm5860, %v5732, %v5988
        %v6117 = vsel %vm5861, %v5733, %v5989
        %v6118 = vsel %vm5862, %v5734, %v5990
        %v6119 = vsel %vm5863, %v5735, %v5991
        %v6120 = vsel %vm5864, %v5736, %v5992
        %v6121 = vsel %vm5865, %v5737, %v5993
        %v6122 = vsel %vm5866, %v5738, %v5994
        %v6123 = vsel %vm5867, %v5739, %v5995
        %v6124 = vsel %vm5868, %v5740, %v5996
        %v6125 = vsel %vm5869, %v5741, %v5997
        %v6126 = vsel %vm5870, %v5742, %v5998
        %v6127 = vsel %vm5871, %v5743, %v5999
        %v6128 = vsel %vm5872, %v5744, %v6000
        %v6129 = vsel %vm5873, %v5745, %v6001
        %v6130 = vsel %vm5874, %v5746, %v6002
        %v6131 = vsel %vm5875, %v5747, %v6003
        %v6132 = vsel %vm5876, %v5748, %v6004
        %v6133 = vsel %vm5877, %v5749, %v6005
        %v6134 = vsel %vm5878, %v5750, %v6006
        %v6135 = vsel %vm5879, %v5751, %v6007
        %v6136 = vsel %vm5880, %v5752, %v6008
        %v6137 = vsel %vm5881, %v5753, %v6009
        %v6138 = vsel %vm5882, %v5754, %v6010
        %v6139 = vsel %vm5883, %v5755, %v6011
        %v6140 = vsel %vm5884, %v5756, %v6012
        %v6141 = vsel %vm5885, %v5757, %v6013
        %v6142 = vsel %vm5886, %v5758, %v6014
        %v6143 = vsel %vm5887, %v5759, %v6015
        %v6144 = vsel %vm5888, %v5760, %v6016
        %v6145 = vsel %vm5889, %v5761, %v6017
        %v6146 = vsel %vm5890, %v5762, %v6018
        %v6147 = vsel %vm5891, %v5763, %v6019
        %v6148 = vsel %vm5892, %v5764, %v6020
        %v6149 = vsel %vm5893, %v5765, %v6021
        %v6150 = vsel %vm5894, %v5766, %v6022
        %v6151 = vsel %vm5895, %v5767, %v6023
        %v6152 = vsel %vm5896, %v5768, %v6024
        %v6153 = vsel %vm5897, %v5769, %v6025
        %v6154 = vsel %vm5898, %v5770, %v6026
        %v6155 = vsel %vm5899, %v5771, %v6027
        %v6156 = vsel %vm5900, %v5772, %v6028
        %v6157 = vsel %vm5901, %v5773, %v6029
        %v6158 = vsel %vm5902, %v5774, %v6030
        %v6159 = vsel %vm5903, %v5775, %v6031
        %v6160 = vsel %vm5904, %v5776, %v6032
        %v6161 = vsel %vm5905, %v5777, %v6033
        %v6162 = vsel %vm5906, %v5778, %v6034
        %v6163 = vsel %vm5907, %v5779, %v6035
        %v6164 = vsel %vm5908, %v5780, %v6036
        %v6165 = vsel %vm5909, %v5781, %v6037
        %v6166 = vsel %vm5910, %v5782, %v6038
        %v6167 = vsel %vm5911, %v5783, %v6039
        %v6168 = vsel %vm5912, %v5784, %v6040
        %v6169 = vsel %vm5913, %v5785, %v6041
        %v6170 = vsel %vm5914, %v5786, %v6042
        %v6171 = vsel %vm5915, %v5787, %v6043
        %v6172 = vsel %vm5916, %v5788, %v6044
        %v6173 = vsel %vm5917, %v5789, %v6045
        %v6174 = vsel %vm5918, %v5790, %v6046
        %v6175 = vsel %vm5919, %v5791, %v6047
        %v6176 = vsel %vm5920, %v5792, %v6048
        %v6177 = vsel %vm5921, %v5793, %v6049
        %v6178 = vsel %vm5922, %v5794, %v6050
        %v6179 = vsel %vm5923, %v5795, %v6051
        %v6180 = vsel %vm5924, %v5796, %v6052
        %v6181 = vsel %vm5925, %v5797, %v6053
        %v6182 = vsel %vm5926, %v5798, %v6054
        %v6183 = vsel %vm5927, %v5799, %v6055
        %v6184 = vsel %vm5928, %v5800, %v6056
        %v6185 = vsel %vm5929, %v5801, %v6057
        %v6186 = vsel %vm5930, %v5802, %v6058
        %v6187 = vsel %vm5931, %v5803, %v6059
        %v6188 = vsel %vm5932, %v5804, %v6060
        %v6189 = vsel %vm5933, %v5805, %v6061
        %v6190 = vsel %vm5934, %v5806, %v6062
        %v6191 = vsel %vm5935, %v5807, %v6063
        %v6192 = vsel %vm5936, %v5808, %v6064
        %v6193 = vsel %vm5937, %v5809, %v6065
        %v6194 = vsel %vm5938, %v5810, %v6066
        %v6195 = vsel %vm5939, %v5811, %v6067
        %v6196 = vsel %vm5940, %v5812, %v6068
        %v6197 = vsel %vm5941, %v5813, %v6069
        %v6198 = vsel %vm5942, %v5814, %v6070
        %v6199 = vsel %vm5943, %v5815, %v6071
        %v6200 = vsel %vm5944, %v5816, %v6072
        %v6201 = vsel %vm5945, %v5817, %v6073
        %v6202 = vsel %vm5946, %v5818, %v6074
        %v6203 = vsel %vm5947, %v5819, %v6075
        %v6204 = vsel %vm5948, %v5820, %v6076
        %v6205 = vsel %vm5949, %v5821, %v6077
        %v6206 = vsel %vm5950, %v5822, %v6078
        %v6207 = vsel %vm5951, %v5823, %v6079
        %v6208 = vsel %vm5952, %v5824, %v6080
        %v6209 = vsel %vm5953, %v5825, %v6081
        %v6210 = vsel %vm5954, %v5826, %v6082
        %v6211 = vsel %vm5955, %v5827, %v6083
        %v6212 = vpack.c.bf16 %v6085, %v6084
        %v6213 = vpack.c.bf16 %v6087, %v6086
        %v6214 = vpack.c.bf16 %v6089, %v6088
        %v6215 = vpack.c.bf16 %v6091, %v6090
        %v6216 = vpack.c.bf16 %v6093, %v6092
        %v6217 = vpack.c.bf16 %v6095, %v6094
        %v6218 = vpack.c.bf16 %v6097, %v6096
        %v6219 = vpack.c.bf16 %v6099, %v6098
        %v6220 = vpack.c.bf16 %v6101, %v6100
        %v6221 = vpack.c.bf16 %v6103, %v6102
        %v6222 = vpack.c.bf16 %v6105, %v6104
        %v6223 = vpack.c.bf16 %v6107, %v6106
        %v6224 = vpack.c.bf16 %v6109, %v6108
        %v6225 = vpack.c.bf16 %v6111, %v6110
        %v6226 = vpack.c.bf16 %v6113, %v6112
        %v6227 = vpack.c.bf16 %v6115, %v6114
        %v6228 = vpack.c.bf16 %v6117, %v6116
        %v6229 = vpack.c.bf16 %v6119, %v6118
        %v6230 = vpack.c.bf16 %v6121, %v6120
        %v6231 = vpack.c.bf16 %v6123, %v6122
        %v6232 = vpack.c.bf16 %v6125, %v6124
        %v6233 = vpack.c.bf16 %v6127, %v6126
        %v6234 = vpack.c.bf16 %v6129, %v6128
        %v6235 = vpack.c.bf16 %v6131, %v6130
        %v6236 = vpack.c.bf16 %v6133, %v6132
        %v6237 = vpack.c.bf16 %v6135, %v6134
        %v6238 = vpack.c.bf16 %v6137, %v6136
        %v6239 = vpack.c.bf16 %v6139, %v6138
        %v6240 = vpack.c.bf16 %v6141, %v6140
        %v6241 = vpack.c.bf16 %v6143, %v6142
        %v6242 = vpack.c.bf16 %v6145, %v6144
        %v6243 = vpack.c.bf16 %v6147, %v6146
        %v6244 = vpack.c.bf16 %v6149, %v6148
        %v6245 = vpack.c.bf16 %v6151, %v6150
        %v6246 = vpack.c.bf16 %v6153, %v6152
        %v6247 = vpack.c.bf16 %v6155, %v6154
        %v6248 = vpack.c.bf16 %v6157, %v6156
        %v6249 = vpack.c.bf16 %v6159, %v6158
        %v6250 = vpack.c.bf16 %v6161, %v6160
        %v6251 = vpack.c.bf16 %v6163, %v6162
        %v6252 = vpack.c.bf16 %v6165, %v6164
        %v6253 = vpack.c.bf16 %v6167, %v6166
        %v6254 = vpack.c.bf16 %v6169, %v6168
        %v6255 = vpack.c.bf16 %v6171, %v6170
        %v6256 = vpack.c.bf16 %v6173, %v6172
        %v6257 = vpack.c.bf16 %v6175, %v6174
        %v6258 = vpack.c.bf16 %v6177, %v6176
        %v6259 = vpack.c.bf16 %v6179, %v6178
        %v6260 = vpack.c.bf16 %v6181, %v6180
        %v6261 = vpack.c.bf16 %v6183, %v6182
        %v6262 = vpack.c.bf16 %v6185, %v6184
        %v6263 = vpack.c.bf16 %v6187, %v6186
        %v6264 = vpack.c.bf16 %v6189, %v6188
        %v6265 = vpack.c.bf16 %v6191, %v6190
        %v6266 = vpack.c.bf16 %v6193, %v6192
        %v6267 = vpack.c.bf16 %v6195, %v6194
        %v6268 = vpack.c.bf16 %v6197, %v6196
        %v6269 = vpack.c.bf16 %v6199, %v6198
        %v6270 = vpack.c.bf16 %v6201, %v6200
        %v6271 = vpack.c.bf16 %v6203, %v6202
        %v6272 = vpack.c.bf16 %v6205, %v6204
        %v6273 = vpack.c.bf16 %v6207, %v6206
        %v6274 = vpack.c.bf16 %v6209, %v6208
        %v6275 = vpack.c.bf16 %v6211, %v6210
        %v6340 = vunpack.c.l.b16 %v6212
        %v6341 = vunpack.c.h.b16 %v6212
        %v6342 = vunpack.c.l.b16 %v6213
        %v6343 = vunpack.c.h.b16 %v6213
        %v6344 = vunpack.c.l.b16 %v6214
        %v6345 = vunpack.c.h.b16 %v6214
        %v6346 = vunpack.c.l.b16 %v6215
        %v6347 = vunpack.c.h.b16 %v6215
        %v6348 = vunpack.c.l.b16 %v6216
        %v6349 = vunpack.c.h.b16 %v6216
        %v6350 = vunpack.c.l.b16 %v6217
        %v6351 = vunpack.c.h.b16 %v6217
        %v6352 = vunpack.c.l.b16 %v6218
        %v6353 = vunpack.c.h.b16 %v6218
        %v6354 = vunpack.c.l.b16 %v6219
        %v6355 = vunpack.c.h.b16 %v6219
        %v6356 = vunpack.c.l.b16 %v6220
        %v6357 = vunpack.c.h.b16 %v6220
        %v6358 = vunpack.c.l.b16 %v6221
        %v6359 = vunpack.c.h.b16 %v6221
        %v6360 = vunpack.c.l.b16 %v6222
        %v6361 = vunpack.c.h.b16 %v6222
        %v6362 = vunpack.c.l.b16 %v6223
        %v6363 = vunpack.c.h.b16 %v6223
        %v6364 = vunpack.c.l.b16 %v6224
        %v6365 = vunpack.c.h.b16 %v6224
        %v6366 = vunpack.c.l.b16 %v6225
        %v6367 = vunpack.c.h.b16 %v6225
        %v6368 = vunpack.c.l.b16 %v6226
        %v6369 = vunpack.c.h.b16 %v6226
        %v6370 = vunpack.c.l.b16 %v6227
        %v6371 = vunpack.c.h.b16 %v6227
        %v6372 = vunpack.c.l.b16 %v6228
        %v6373 = vunpack.c.h.b16 %v6228
        %v6374 = vunpack.c.l.b16 %v6229
        %v6375 = vunpack.c.h.b16 %v6229
        %v6376 = vunpack.c.l.b16 %v6230
        %v6377 = vunpack.c.h.b16 %v6230
        %v6378 = vunpack.c.l.b16 %v6231
        %v6379 = vunpack.c.h.b16 %v6231
        %v6380 = vunpack.c.l.b16 %v6232
        %v6381 = vunpack.c.h.b16 %v6232
        %v6382 = vunpack.c.l.b16 %v6233
        %v6383 = vunpack.c.h.b16 %v6233
        %v6384 = vunpack.c.l.b16 %v6234
        %v6385 = vunpack.c.h.b16 %v6234
        %v6386 = vunpack.c.l.b16 %v6235
        %v6387 = vunpack.c.h.b16 %v6235
        %v6388 = vunpack.c.l.b16 %v6236
        %v6389 = vunpack.c.h.b16 %v6236
        %v6390 = vunpack.c.l.b16 %v6237
        %v6391 = vunpack.c.h.b16 %v6237
        %v6392 = vunpack.c.l.b16 %v6238
        %v6393 = vunpack.c.h.b16 %v6238
        %v6394 = vunpack.c.l.b16 %v6239
        %v6395 = vunpack.c.h.b16 %v6239
        %v6396 = vunpack.c.l.b16 %v6240
        %v6397 = vunpack.c.h.b16 %v6240
        %v6398 = vunpack.c.l.b16 %v6241
        %v6399 = vunpack.c.h.b16 %v6241
        %v6400 = vunpack.c.l.b16 %v6242
        %v6401 = vunpack.c.h.b16 %v6242
        %v6402 = vunpack.c.l.b16 %v6243
        %v6403 = vunpack.c.h.b16 %v6243
        %v6404 = vunpack.c.l.b16 %v6244
        %v6405 = vunpack.c.h.b16 %v6244
        %v6406 = vunpack.c.l.b16 %v6245
        %v6407 = vunpack.c.h.b16 %v6245
        %v6408 = vunpack.c.l.b16 %v6246
        %v6409 = vunpack.c.h.b16 %v6246
        %v6410 = vunpack.c.l.b16 %v6247
        %v6411 = vunpack.c.h.b16 %v6247
        %v6412 = vunpack.c.l.b16 %v6248
        %v6413 = vunpack.c.h.b16 %v6248
        %v6414 = vunpack.c.l.b16 %v6249
        %v6415 = vunpack.c.h.b16 %v6249
        %v6416 = vunpack.c.l.b16 %v6250
        %v6417 = vunpack.c.h.b16 %v6250
        %v6418 = vunpack.c.l.b16 %v6251
        %v6419 = vunpack.c.h.b16 %v6251
        %v6420 = vunpack.c.l.b16 %v6252
        %v6421 = vunpack.c.h.b16 %v6252
        %v6422 = vunpack.c.l.b16 %v6253
        %v6423 = vunpack.c.h.b16 %v6253
        %v6424 = vunpack.c.l.b16 %v6254
        %v6425 = vunpack.c.h.b16 %v6254
        %v6426 = vunpack.c.l.b16 %v6255
        %v6427 = vunpack.c.h.b16 %v6255
        %v6428 = vunpack.c.l.b16 %v6256
        %v6429 = vunpack.c.h.b16 %v6256
        %v6430 = vunpack.c.l.b16 %v6257
        %v6431 = vunpack.c.h.b16 %v6257
        %v6432 = vunpack.c.l.b16 %v6258
        %v6433 = vunpack.c.h.b16 %v6258
        %v6434 = vunpack.c.l.b16 %v6259
        %v6435 = vunpack.c.h.b16 %v6259
        %v6436 = vunpack.c.l.b16 %v6260
        %v6437 = vunpack.c.h.b16 %v6260
        %v6438 = vunpack.c.l.b16 %v6261
        %v6439 = vunpack.c.h.b16 %v6261
        %v6440 = vunpack.c.l.b16 %v6262
        %v6441 = vunpack.c.h.b16 %v6262
        %v6442 = vunpack.c.l.b16 %v6263
        %v6443 = vunpack.c.h.b16 %v6263
        %v6444 = vunpack.c.l.b16 %v6264
        %v6445 = vunpack.c.h.b16 %v6264
        %v6446 = vunpack.c.l.b16 %v6265
        %v6447 = vunpack.c.h.b16 %v6265
        %v6448 = vunpack.c.l.b16 %v6266
        %v6449 = vunpack.c.h.b16 %v6266
        %v6450 = vunpack.c.l.b16 %v6267
        %v6451 = vunpack.c.h.b16 %v6267
        %v6452 = vunpack.c.l.b16 %v6268
        %v6453 = vunpack.c.h.b16 %v6268
        %v6454 = vunpack.c.l.b16 %v6269
        %v6455 = vunpack.c.h.b16 %v6269
        %v6456 = vunpack.c.l.b16 %v6270
        %v6457 = vunpack.c.h.b16 %v6270
        %v6458 = vunpack.c.l.b16 %v6271
        %v6459 = vunpack.c.h.b16 %v6271
        %v6460 = vunpack.c.l.b16 %v6272
        %v6461 = vunpack.c.h.b16 %v6272
        %v6462 = vunpack.c.l.b16 %v6273
        %v6463 = vunpack.c.h.b16 %v6273
        %v6464 = vunpack.c.l.b16 %v6274
        %v6465 = vunpack.c.h.b16 %v6274
        %v6466 = vunpack.c.l.b16 %v6275
        %v6467 = vunpack.c.h.b16 %v6275
        %v6468 = vpack.c.b16 %v6340, %v6340
        %v6469 = vpack.c.b16 %v6341, %v6341
        %v6470 = vpack.c.b16 %v6342, %v6342
        %v6471 = vpack.c.b16 %v6343, %v6343
        %v6472 = vpack.c.b16 %v6344, %v6344
        %v6473 = vpack.c.b16 %v6345, %v6345
        %v6474 = vpack.c.b16 %v6346, %v6346
        %v6475 = vpack.c.b16 %v6347, %v6347
        %v6476 = vpack.c.b16 %v6348, %v6348
        %v6477 = vpack.c.b16 %v6349, %v6349
        %v6478 = vpack.c.b16 %v6350, %v6350
        %v6479 = vpack.c.b16 %v6351, %v6351
        %v6480 = vpack.c.b16 %v6352, %v6352
        %v6481 = vpack.c.b16 %v6353, %v6353
        %v6482 = vpack.c.b16 %v6354, %v6354
        %v6483 = vpack.c.b16 %v6355, %v6355
        %v6484 = vpack.c.b16 %v6356, %v6356
        %v6485 = vpack.c.b16 %v6357, %v6357
        %v6486 = vpack.c.b16 %v6358, %v6358
        %v6487 = vpack.c.b16 %v6359, %v6359
        %v6488 = vpack.c.b16 %v6360, %v6360
        %v6489 = vpack.c.b16 %v6361, %v6361
        %v6490 = vpack.c.b16 %v6362, %v6362
        %v6491 = vpack.c.b16 %v6363, %v6363
        %v6492 = vpack.c.b16 %v6364, %v6364
        %v6493 = vpack.c.b16 %v6365, %v6365
        %v6494 = vpack.c.b16 %v6366, %v6366
        %v6495 = vpack.c.b16 %v6367, %v6367
        %v6496 = vpack.c.b16 %v6368, %v6368
        %v6497 = vpack.c.b16 %v6369, %v6369
        %v6498 = vpack.c.b16 %v6370, %v6370
        %v6499 = vpack.c.b16 %v6371, %v6371
        %v6500 = vpack.c.b16 %v6372, %v6372
        %v6501 = vpack.c.b16 %v6373, %v6373
        %v6502 = vpack.c.b16 %v6374, %v6374
        %v6503 = vpack.c.b16 %v6375, %v6375
        %v6504 = vpack.c.b16 %v6376, %v6376
        %v6505 = vpack.c.b16 %v6377, %v6377
        %v6506 = vpack.c.b16 %v6378, %v6378
        %v6507 = vpack.c.b16 %v6379, %v6379
        %v6508 = vpack.c.b16 %v6380, %v6380
        %v6509 = vpack.c.b16 %v6381, %v6381
        %v6510 = vpack.c.b16 %v6382, %v6382
        %v6511 = vpack.c.b16 %v6383, %v6383
        %v6512 = vpack.c.b16 %v6384, %v6384
        %v6513 = vpack.c.b16 %v6385, %v6385
        %v6514 = vpack.c.b16 %v6386, %v6386
        %v6515 = vpack.c.b16 %v6387, %v6387
        %v6516 = vpack.c.b16 %v6388, %v6388
        %v6517 = vpack.c.b16 %v6389, %v6389
        %v6518 = vpack.c.b16 %v6390, %v6390
        %v6519 = vpack.c.b16 %v6391, %v6391
        %v6520 = vpack.c.b16 %v6392, %v6392
        %v6521 = vpack.c.b16 %v6393, %v6393
        %v6522 = vpack.c.b16 %v6394, %v6394
        %v6523 = vpack.c.b16 %v6395, %v6395
        %v6524 = vpack.c.b16 %v6396, %v6396
        %v6525 = vpack.c.b16 %v6397, %v6397
        %v6526 = vpack.c.b16 %v6398, %v6398
        %v6527 = vpack.c.b16 %v6399, %v6399
        %v6528 = vpack.c.b16 %v6400, %v6400
        %v6529 = vpack.c.b16 %v6401, %v6401
        %v6530 = vpack.c.b16 %v6402, %v6402
        %v6531 = vpack.c.b16 %v6403, %v6403
        %v6532 = vpack.c.b16 %v6404, %v6404
        %v6533 = vpack.c.b16 %v6405, %v6405
        %v6534 = vpack.c.b16 %v6406, %v6406
        %v6535 = vpack.c.b16 %v6407, %v6407
        %v6536 = vpack.c.b16 %v6408, %v6408
        %v6537 = vpack.c.b16 %v6409, %v6409
        %v6538 = vpack.c.b16 %v6410, %v6410
        %v6539 = vpack.c.b16 %v6411, %v6411
        %v6540 = vpack.c.b16 %v6412, %v6412
        %v6541 = vpack.c.b16 %v6413, %v6413
        %v6542 = vpack.c.b16 %v6414, %v6414
        %v6543 = vpack.c.b16 %v6415, %v6415
        %v6544 = vpack.c.b16 %v6416, %v6416
        %v6545 = vpack.c.b16 %v6417, %v6417
        %v6546 = vpack.c.b16 %v6418, %v6418
        %v6547 = vpack.c.b16 %v6419, %v6419
        %v6548 = vpack.c.b16 %v6420, %v6420
        %v6549 = vpack.c.b16 %v6421, %v6421
        %v6550 = vpack.c.b16 %v6422, %v6422
        %v6551 = vpack.c.b16 %v6423, %v6423
        %v6552 = vpack.c.b16 %v6424, %v6424
        %v6553 = vpack.c.b16 %v6425, %v6425
        %v6554 = vpack.c.b16 %v6426, %v6426
        %v6555 = vpack.c.b16 %v6427, %v6427
        %v6556 = vpack.c.b16 %v6428, %v6428
        %v6557 = vpack.c.b16 %v6429, %v6429
        %v6558 = vpack.c.b16 %v6430, %v6430
        %v6559 = vpack.c.b16 %v6431, %v6431
        %v6560 = vpack.c.b16 %v6432, %v6432
        %v6561 = vpack.c.b16 %v6433, %v6433
        %v6562 = vpack.c.b16 %v6434, %v6434
        %v6563 = vpack.c.b16 %v6435, %v6435
        %v6564 = vpack.c.b16 %v6436, %v6436
        %v6565 = vpack.c.b16 %v6437, %v6437
        %v6566 = vpack.c.b16 %v6438, %v6438
        %v6567 = vpack.c.b16 %v6439, %v6439
        %v6568 = vpack.c.b16 %v6440, %v6440
        %v6569 = vpack.c.b16 %v6441, %v6441
        %v6570 = vpack.c.b16 %v6442, %v6442
        %v6571 = vpack.c.b16 %v6443, %v6443
        %v6572 = vpack.c.b16 %v6444, %v6444
        %v6573 = vpack.c.b16 %v6445, %v6445
        %v6574 = vpack.c.b16 %v6446, %v6446
        %v6575 = vpack.c.b16 %v6447, %v6447
        %v6576 = vpack.c.b16 %v6448, %v6448
        %v6577 = vpack.c.b16 %v6449, %v6449
        %v6578 = vpack.c.b16 %v6450, %v6450
        %v6579 = vpack.c.b16 %v6451, %v6451
        %v6580 = vpack.c.b16 %v6452, %v6452
        %v6581 = vpack.c.b16 %v6453, %v6453
        %v6582 = vpack.c.b16 %v6454, %v6454
        %v6583 = vpack.c.b16 %v6455, %v6455
        %v6584 = vpack.c.b16 %v6456, %v6456
        %v6585 = vpack.c.b16 %v6457, %v6457
        %v6586 = vpack.c.b16 %v6458, %v6458
        %v6587 = vpack.c.b16 %v6459, %v6459
        %v6588 = vpack.c.b16 %v6460, %v6460
        %v6589 = vpack.c.b16 %v6461, %v6461
        %v6590 = vpack.c.b16 %v6462, %v6462
        %v6591 = vpack.c.b16 %v6463, %v6463
        %v6592 = vpack.c.b16 %v6464, %v6464
        %v6593 = vpack.c.b16 %v6465, %v6465
        %v6594 = vpack.c.b16 %v6466, %v6466
        %v6595 = vpack.c.b16 %v6467, %v6467
        %6724 = vst [vmem:[%s350] sm:$0xf] %v6468
        %6725 = vst [vmem:[%s350 + $0x4] sm:$0xf] %v6469
        %6726 = vst [vmem:[%s350 + $0x8] sm:$0xf] %v6470
        %6727 = vst [vmem:[%s350 + $0xc] sm:$0xf] %v6471
        %6728 = vst [vmem:[%s350 + $0x10] sm:$0xf] %v6472
        %6729 = vst [vmem:[%s350 + $0x14] sm:$0xf] %v6473
        %6730 = vst [vmem:[%s350 + $0x18] sm:$0xf] %v6474
        %6731 = vst [vmem:[%s350 + $0x1c] sm:$0xf] %v6475
        %6732 = vst [vmem:[%s350 + $0x20] sm:$0xf] %v6476
        %6733 = vst [vmem:[%s350 + $0x24] sm:$0xf] %v6477
        %6734 = vst [vmem:[%s350 + $0x28] sm:$0xf] %v6478
        %6735 = vst [vmem:[%s350 + $0x2c] sm:$0xf] %v6479
        %6736 = vst [vmem:[%s350 + $0x30] sm:$0xf] %v6480
        %6737 = vst [vmem:[%s350 + $0x34] sm:$0xf] %v6481
        %6738 = vst [vmem:[%s350 + $0x38] sm:$0xf] %v6482
        %6739 = vst [vmem:[%s350 + $0x3c] sm:$0xf] %v6483
        %6740 = vst [vmem:[%s350 + $0x40] sm:$0xf] %v6484
        %6741 = vst [vmem:[%s350 + $0x44] sm:$0xf] %v6485
        %6742 = vst [vmem:[%s350 + $0x48] sm:$0xf] %v6486
        %6743 = vst [vmem:[%s350 + $0x4c] sm:$0xf] %v6487
        %6744 = vst [vmem:[%s350 + $0x50] sm:$0xf] %v6488
        %6745 = vst [vmem:[%s350 + $0x54] sm:$0xf] %v6489
        %6746 = vst [vmem:[%s350 + $0x58] sm:$0xf] %v6490
        %6747 = vst [vmem:[%s350 + $0x5c] sm:$0xf] %v6491
        %6748 = vst [vmem:[%s350 + $0x60] sm:$0xf] %v6492
        %6749 = vst [vmem:[%s350 + $0x64] sm:$0xf] %v6493
        %6750 = vst [vmem:[%s350 + $0x68] sm:$0xf] %v6494
        %6751 = vst [vmem:[%s350 + $0x6c] sm:$0xf] %v6495
        %6752 = vst [vmem:[%s350 + $0x70] sm:$0xf] %v6496
        %6753 = vst [vmem:[%s350 + $0x74] sm:$0xf] %v6497
        %6754 = vst [vmem:[%s350 + $0x78] sm:$0xf] %v6498
        %6755 = vst [vmem:[%s350 + $0x7c] sm:$0xf] %v6499
        %6756 = vst [vmem:[%s350 + $0x80] sm:$0xf] %v6500
        %6757 = vst [vmem:[%s350 + $0x84] sm:$0xf] %v6501
        %6758 = vst [vmem:[%s350 + $0x88] sm:$0xf] %v6502
        %6759 = vst [vmem:[%s350 + $0x8c] sm:$0xf] %v6503
        %6760 = vst [vmem:[%s350 + $0x90] sm:$0xf] %v6504
        %6761 = vst [vmem:[%s350 + $0x94] sm:$0xf] %v6505
        %6762 = vst [vmem:[%s350 + $0x98] sm:$0xf] %v6506
        %6763 = vst [vmem:[%s350 + $0x9c] sm:$0xf] %v6507
        %6764 = vst [vmem:[%s350 + $0xa0] sm:$0xf] %v6508
        %6765 = vst [vmem:[%s350 + $0xa4] sm:$0xf] %v6509
        %6766 = vst [vmem:[%s350 + $0xa8] sm:$0xf] %v6510
        %6767 = vst [vmem:[%s350 + $0xac] sm:$0xf] %v6511
        %6768 = vst [vmem:[%s350 + $0xb0] sm:$0xf] %v6512
        %6769 = vst [vmem:[%s350 + $0xb4] sm:$0xf] %v6513
        %6770 = vst [vmem:[%s350 + $0xb8] sm:$0xf] %v6514
        %6771 = vst [vmem:[%s350 + $0xbc] sm:$0xf] %v6515
        %6772 = vst [vmem:[%s350 + $0xc0] sm:$0xf] %v6516
        %6773 = vst [vmem:[%s350 + $0xc4] sm:$0xf] %v6517
        %6774 = vst [vmem:[%s350 + $0xc8] sm:$0xf] %v6518
        %6775 = vst [vmem:[%s350 + $0xcc] sm:$0xf] %v6519
        %6776 = vst [vmem:[%s350 + $0xd0] sm:$0xf] %v6520
        %6777 = vst [vmem:[%s350 + $0xd4] sm:$0xf] %v6521
        %6778 = vst [vmem:[%s350 + $0xd8] sm:$0xf] %v6522
        %6779 = vst [vmem:[%s350 + $0xdc] sm:$0xf] %v6523
        %6780 = vst [vmem:[%s350 + $0xe0] sm:$0xf] %v6524
        %6781 = vst [vmem:[%s350 + $0xe4] sm:$0xf] %v6525
        %6782 = vst [vmem:[%s350 + $0xe8] sm:$0xf] %v6526
        %6783 = vst [vmem:[%s350 + $0xec] sm:$0xf] %v6527
        %6784 = vst [vmem:[%s350 + $0xf0] sm:$0xf] %v6528
        %6785 = vst [vmem:[%s350 + $0xf4] sm:$0xf] %v6529
        %6786 = vst [vmem:[%s350 + $0xf8] sm:$0xf] %v6530
        %6787 = vst [vmem:[%s350 + $0xfc] sm:$0xf] %v6531
        %6788 = vst [vmem:[%s350 + $0x100] sm:$0xf] %v6532
        %6789 = vst [vmem:[%s350 + $0x104] sm:$0xf] %v6533
        %6790 = vst [vmem:[%s350 + $0x108] sm:$0xf] %v6534
        %6791 = vst [vmem:[%s350 + $0x10c] sm:$0xf] %v6535
        %6792 = vst [vmem:[%s350 + $0x110] sm:$0xf] %v6536
        %6793 = vst [vmem:[%s350 + $0x114] sm:$0xf] %v6537
        %6794 = vst [vmem:[%s350 + $0x118] sm:$0xf] %v6538
        %6795 = vst [vmem:[%s350 + $0x11c] sm:$0xf] %v6539
        %6796 = vst [vmem:[%s350 + $0x120] sm:$0xf] %v6540
        %6797 = vst [vmem:[%s350 + $0x124] sm:$0xf] %v6541
        %6798 = vst [vmem:[%s350 + $0x128] sm:$0xf] %v6542
        %6799 = vst [vmem:[%s350 + $0x12c] sm:$0xf] %v6543
        %6800 = vst [vmem:[%s350 + $0x130] sm:$0xf] %v6544
        %6801 = vst [vmem:[%s350 + $0x134] sm:$0xf] %v6545
        %6802 = vst [vmem:[%s350 + $0x138] sm:$0xf] %v6546
        %6803 = vst [vmem:[%s350 + $0x13c] sm:$0xf] %v6547
        %6804 = vst [vmem:[%s350 + $0x140] sm:$0xf] %v6548
        %6805 = vst [vmem:[%s350 + $0x144] sm:$0xf] %v6549
        %6806 = vst [vmem:[%s350 + $0x148] sm:$0xf] %v6550
        %6807 = vst [vmem:[%s350 + $0x14c] sm:$0xf] %v6551
        %6808 = vst [vmem:[%s350 + $0x150] sm:$0xf] %v6552
        %6809 = vst [vmem:[%s350 + $0x154] sm:$0xf] %v6553
        %6810 = vst [vmem:[%s350 + $0x158] sm:$0xf] %v6554
        %6811 = vst [vmem:[%s350 + $0x15c] sm:$0xf] %v6555
        %6812 = vst [vmem:[%s350 + $0x160] sm:$0xf] %v6556
        %6813 = vst [vmem:[%s350 + $0x164] sm:$0xf] %v6557
        %6814 = vst [vmem:[%s350 + $0x168] sm:$0xf] %v6558
        %6815 = vst [vmem:[%s350 + $0x16c] sm:$0xf] %v6559
        %6816 = vst [vmem:[%s350 + $0x170] sm:$0xf] %v6560
        %6817 = vst [vmem:[%s350 + $0x174] sm:$0xf] %v6561
        %6818 = vst [vmem:[%s350 + $0x178] sm:$0xf] %v6562
        %6819 = vst [vmem:[%s350 + $0x17c] sm:$0xf] %v6563
        %6820 = vst [vmem:[%s350 + $0x180] sm:$0xf] %v6564
        %6821 = vst [vmem:[%s350 + $0x184] sm:$0xf] %v6565
        %6822 = vst [vmem:[%s350 + $0x188] sm:$0xf] %v6566
        %6823 = vst [vmem:[%s350 + $0x18c] sm:$0xf] %v6567
        %6824 = vst [vmem:[%s350 + $0x190] sm:$0xf] %v6568
        %6825 = vst [vmem:[%s350 + $0x194] sm:$0xf] %v6569
        %6826 = vst [vmem:[%s350 + $0x198] sm:$0xf] %v6570
        %6827 = vst [vmem:[%s350 + $0x19c] sm:$0xf] %v6571
        %6828 = vst [vmem:[%s350 + $0x1a0] sm:$0xf] %v6572
        %6829 = vst [vmem:[%s350 + $0x1a4] sm:$0xf] %v6573
        %6830 = vst [vmem:[%s350 + $0x1a8] sm:$0xf] %v6574
        %6831 = vst [vmem:[%s350 + $0x1ac] sm:$0xf] %v6575
        %6832 = vst [vmem:[%s350 + $0x1b0] sm:$0xf] %v6576
        %6833 = vst [vmem:[%s350 + $0x1b4] sm:$0xf] %v6577
        %6834 = vst [vmem:[%s350 + $0x1b8] sm:$0xf] %v6578
        %6835 = vst [vmem:[%s350 + $0x1bc] sm:$0xf] %v6579
        %6836 = vst [vmem:[%s350 + $0x1c0] sm:$0xf] %v6580
        %6837 = vst [vmem:[%s350 + $0x1c4] sm:$0xf] %v6581
        %6838 = vst [vmem:[%s350 + $0x1c8] sm:$0xf] %v6582
        %6839 = vst [vmem:[%s350 + $0x1cc] sm:$0xf] %v6583
        %6840 = vst [vmem:[%s350 + $0x1d0] sm:$0xf] %v6584
        %6841 = vst [vmem:[%s350 + $0x1d4] sm:$0xf] %v6585
        %6842 = vst [vmem:[%s350 + $0x1d8] sm:$0xf] %v6586
        %6843 = vst [vmem:[%s350 + $0x1dc] sm:$0xf] %v6587
        %6844 = vst [vmem:[%s350 + $0x1e0] sm:$0xf] %v6588
        %6845 = vst [vmem:[%s350 + $0x1e4] sm:$0xf] %v6589
        %6846 = vst [vmem:[%s350 + $0x1e8] sm:$0xf] %v6590
        %6847 = vst [vmem:[%s350 + $0x1ec] sm:$0xf] %v6591
        %6848 = vst [vmem:[%s350 + $0x1f0] sm:$0xf] %v6592
        %6849 = vst [vmem:[%s350 + $0x1f4] sm:$0xf] %v6593
        %6850 = vst [vmem:[%s350 + $0x1f8] sm:$0xf] %v6594
        %6851 = vst [vmem:[%s350 + $0x1fc] sm:$0xf] %v6595
        %s6852 = sand.u32 %s247, 1
        %s6853 = scalar_lea.sflag [#allocation3], %s6852
        %s6854 = sand.u32 %s247, 1
        %s6855 = smul.addr %s6854, 512
        %s6856 = scalar_lea.vmem [#allocation2], %s6855
        // Predicated region
        $region61: #{tpu_custom_call.1} parent=59 // pred_check
          %p6857 = pneg %p257
        $region62: #{tpu_custom_call.1} parent=59 // pred_check_branch
          %6859 = sbr.rel (%p6857) target = $region64
        $region63: #{tpu_custom_call.1} parent=59 // pred_region
          %s6861 = ssub.s32 8192, 8192
          %6862 = vsyncadd %s6853, %s6861
          %s6863 = smul.addr %s24, 128
          %s6864 = smul.addr %s6863, 64
          %s6865 = scalar_lea.hbm %s10, %s6864
          %s6866 = sshll.u32 %s6856, 4
          %s6867 = int_to_ptr.vmem [resolvable:$true] %s6866
          %6872 = dma.vmem_to_hbm [thread:$0]  %s6867, 8192, %s6865, %s6853, 64, 64, 4
        $region64: #{tpu_custom_call.1} parent=59 // pred_fallthru
          _
      $region60: #{tpu_custom_call.1} parent=5 // pred_fallthru
        _
      %p6873 = scmp.le.s32.totalorder 2, %s19
      // Predicated region
      $region65: #{tpu_custom_call.1} parent=5 // pred_check
        %p6874 = pneg %p6873
      $region66: #{tpu_custom_call.1} parent=5 // pred_check_branch
        %6876 = sbr.rel (%p6874) target = $region68
      $region67: #{tpu_custom_call.1} parent=5 // pred_region
        %s6877 = ssub.s32 %s19, 2
        // Predicated region
        $region69: #{tpu_custom_call.1} parent=67 // pred_check
          %p6878 = pneg %p263
        $region70: #{tpu_custom_call.1} parent=67 // pred_check_branch
          %6880 = sbr.rel (%p6878) target = $region72
        $region71: #{tpu_custom_call.1} parent=67 // pred_region
          %s6881 = sand.u32 %s248, 1
          %s6882 = scalar_lea.sflag [#allocation3], %s6881
          %s6883 = sand.u32 %s248, 1
          %s6884 = smul.addr %s6883, 512
          %s6885 = scalar_lea.vmem [#allocation2], %s6884
          %6886 = dma.done %s6882, 8192
        $region72: #{tpu_custom_call.1} parent=67 // pred_fallthru
          _
      $region68: #{tpu_custom_call.1} parent=5 // pred_fallthru
        _
    $region6: #{tpu_custom_call.1} parent=1 // loop_footer
      %s23 = sadd.s32 1, %s19
    $region7: #{tpu_custom_call.1} parent=1 // loop_footer_branch
      %18 = sbr.rel target = $region3
    $region8: #{tpu_custom_call.1} parent=1 // loop_exit
      _
    %6887 = vsyncpa [#allocation3], 1
    %s6888 = scalar_lea.sflag [#allocation3], 1
    %6889 = vsyncpa %s6888, 1

</llo_original>
